<compile_context>
chip_gen: v7x
topology: tpu7x:2x2x1
jax: 0.10.0
libtpu: 0.0.40
codegen_flags: <defaults>
</compile_context>

<pallas_src>
import functools

import jax
import jax.numpy as jnp
import numpy as np
from jax import lax
from jax.experimental import pallas as pl
from jax.experimental.pallas import tpu as pltpu


# ----------------------------------------------------------------------------
# Fused Pallas kernel: all LSTM layers (both directions) + FC head
# ----------------------------------------------------------------------------
def _make_fused_bilstm_kernel(num_layers, T, B, H):
    """Build the fused kernel.

    Ref order (single invocation, everything resident in VMEM):
      x_ref    : (T*B, d_input)        time-major inputs flattened over (T, B)
      h0_ref   : (2*num_layers, B, H)  initial hidden [l0_fwd, l0_bwd, l1_fwd, ...]
      c0_ref   : (2*num_layers, B, H)  initial cell
      per layer l (6 refs): wih_f (Din_l, 4H), whh_f (H, 4H), b_f (1, 4H),
                            wih_b (Din_l, 4H), whh_b (H, 4H), b_b (1, 4H)
      fc_w_ref : (2H, 1)
      fc_b_ref : (1, 1)
      out_ref  : (T*B, 1)
      hf_scr   : (T*B, H)  VMEM scratch - fwd hiddens of the current layer
      hb_scr   : (T*B, H)  VMEM scratch - bwd hiddens of the current layer
    """

    def kernel(x_ref, h0_ref, c0_ref, *refs):
        w_refs = refs[:6 * num_layers]
        fc_w_ref = refs[6 * num_layers]
        fc_b_ref = refs[6 * num_layers + 1]
        out_ref = refs[6 * num_layers + 2]
        hf_scr = refs[6 * num_layers + 3]
        hb_scr = refs[6 * num_layers + 4]

        for layer in range(num_layers):
            wih_f, whh_f, b_f, wih_b, whh_b, b_b = w_refs[6 * layer:6 * layer + 6]

            # ---- input projection hoisted out of the recurrence: one batched
            #      matmul over all T steps per direction (independent of h). ----
            if layer == 0:
                x2d = x_ref[...]                                      # (T*B, Din)
                gxf = jnp.dot(x2d, wih_f[...],
                              preferred_element_type=jnp.float32) + b_f[...]
                gxb = jnp.dot(x2d, wih_b[...],
                              preferred_element_type=jnp.float32) + b_b[...]
            else:
                hf_prev = hf_scr[...]                                 # (T*B, H)
                hb_prev = hb_scr[...]                                 # (T*B, H)
                gxf = (jnp.dot(hf_prev, wih_f[0:H, :], preferred_element_type=jnp.float32)
                       + jnp.dot(hb_prev, wih_f[H:2 * H, :], preferred_element_type=jnp.float32)
                       + b_f[...])
                gxb = (jnp.dot(hf_prev, wih_b[0:H, :], preferred_element_type=jnp.float32)
                       + jnp.dot(hb_prev, wih_b[H:2 * H, :], preferred_element_type=jnp.float32)
                       + b_b[...])

            # Hoist recurrent-weight loads out of the unrolled loop.
            whh_f_v = whh_f[...]                                      # (H, 4H)
            whh_b_v = whh_b[...]                                      # (H, 4H)

            h_f = h0_ref[2 * layer]                                   # (B, H)
            c_f = c0_ref[2 * layer]
            h_b = h0_ref[2 * layer + 1]
            c_b = c0_ref[2 * layer + 1]

            # ---- serial time recurrence, fully unrolled in-kernel (T is small).
            #      fwd / bwd chains are independent and interleave on the MXU. ----
            for t in range(T):
                tb = T - 1 - t                                        # backward time index

                # forward direction, time t
                gates_f = gxf[t * B:(t + 1) * B, :] + jnp.dot(
                    h_f, whh_f_v, preferred_element_type=jnp.float32)  # (B, 4H)
                # gate order: i, f, g, o (PyTorch)
                # TODO(synk): gate slices are H(=32)-lane wide, only lane-aligned when
                #             H is a multiple of 128; acceptable at this toy size.
                i_f = jax.nn.sigmoid(gates_f[:, 0 * H:1 * H])
                f_f = jax.nn.sigmoid(gates_f[:, 1 * H:2 * H])
                g_f = jnp.tanh(gates_f[:, 2 * H:3 * H])
                o_f = jax.nn.sigmoid(gates_f[:, 3 * H:4 * H])
                c_f = f_f * c_f + i_f * g_f
                h_f = o_f * jnp.tanh(c_f)
                hf_scr[t * B:(t + 1) * B, :] = h_f

                # backward direction, time tb (reversed index, no data reversal)
                gates_b = gxb[tb * B:(tb + 1) * B, :] + jnp.dot(
                    h_b, whh_b_v, preferred_element_type=jnp.float32)  # (B, 4H)
                i_b = jax.nn.sigmoid(gates_b[:, 0 * H:1 * H])
                f_b = jax.nn.sigmoid(gates_b[:, 1 * H:2 * H])
                g_b = jnp.tanh(gates_b[:, 2 * H:3 * H])
                o_b = jax.nn.sigmoid(gates_b[:, 3 * H:4 * H])
                c_b = f_b * c_b + i_b * g_b
                h_b = o_b * jnp.tanh(c_b)
                hb_scr[tb * B:(tb + 1) * B, :] = h_b

            # TODO(synk): inter-layer dropout is identity (inference mode / p=0.0).

        # ---- FC head fused as epilogue: y = [out_f | out_b] @ W_fc + b_fc ----
        hf_all = hf_scr[...]                                          # (T*B, H)
        hb_all = hb_scr[...]                                          # (T*B, H)
        y = (jnp.dot(hf_all, fc_w_ref[0:H, :], preferred_element_type=jnp.float32)
             + jnp.dot(hb_all, fc_w_ref[H:2 * H, :], preferred_element_type=jnp.float32)
             + fc_b_ref[...])                                         # (T*B, 1)
        out_ref[...] = y

    return kernel


# ----------------------------------------------------------------------------
# Wrapper
# ----------------------------------------------------------------------------
@functools.partial(jax.jit, static_argnames=("num_layers",))
def seq2seq_lstm_forward(inputs, h0, c0, params, num_layers):
    """Forward pass equivalent to SeqToSeqLSTMModule.forward (eval-mode dropout).

    inputs: (T, B, d_input) float32
    h0, c0: (num_layers*2, B, H) float32
    returns (T, B, 1)
    """
    T, B, d_in = inputs.shape
    H = params["lstm"][0]["whh_f"].shape[0]

    weight_args = []
    for layer in range(num_layers):
        p = params["lstm"][layer]
        weight_args += [p["wih_f"], p["whh_f"], p["b_f"],
                        p["wih_b"], p["whh_b"], p["b_b"]]

    kernel = _make_fused_bilstm_kernel(num_layers, T, B, H)
    out2d = pl.pallas_call(
        kernel,
        out_shape=jax.ShapeDtypeStruct((T * B, 1), jnp.float32),
        scratch_shapes=[pltpu.VMEM((T * B, H), jnp.float32),
                        pltpu.VMEM((T * B, H), jnp.float32)],
    )(inputs.reshape(T * B, d_in), h0, c0, *weight_args,
      params["fc_w"], params["fc_b"])
    return out2d.reshape(T, B, 1)


# ----------------------------------------------------------------------------
# Pure-JAX reference (for correctness check)
# ----------------------------------------------------------------------------
def _ref_dir(x, wih, whh, b, h0, c0):
    H = whh.shape[0]
    hp = lax.Precision.HIGHEST

    def step(carry, x_t):
        h, c = carry
        gates = jnp.dot(x_t, wih, precision=hp) + jnp.dot(h, whh, precision=hp) + b
        i = jax.nn.sigmoid(gates[:, 0 * H:1 * H])
        f = jax.nn.sigmoid(gates[:, 1 * H:2 * H])
        g = jnp.tanh(gates[:, 2 * H:3 * H])
        o = jax.nn.sigmoid(gates[:, 3 * H:4 * H])
        c_new = f * c + i * g
        h_new = o * jnp.tanh(c_new)
        return (h_new, c_new), h_new

    _, hs = lax.scan(step, (h0, c0), x)
    return hs


def seq2seq_lstm_reference(inputs, h0, c0, params, num_layers):
    hp = lax.Precision.HIGHEST
    x = inputs
    for layer in range(num_layers):
        p = params["lstm"][layer]
        out_f = _ref_dir(x, p["wih_f"], p["whh_f"], p["b_f"],
                         h0[2 * layer], c0[2 * layer])
        out_b = _ref_dir(x[::-1], p["wih_b"], p["whh_b"], p["b_b"],
                         h0[2 * layer + 1], c0[2 * layer + 1])[::-1]
        x = jnp.concatenate([out_f, out_b], axis=-1)
    T, B, F = x.shape
    return (jnp.dot(x.reshape(T * B, F), params["fc_w"], precision=hp)
            + params["fc_b"]).reshape(T, B, 1)


# ----------------------------------------------------------------------------
# Deterministic parameter construction (PyTorch-style uniform init)
# ----------------------------------------------------------------------------
def init_params(key, d_input, d_hidden, num_layers):
    H = d_hidden
    scale = 1.0 / np.sqrt(H)
    params = {"lstm": []}
    for layer in range(num_layers):
        din = d_input if layer == 0 else 2 * H
        layer_p = {}
        for tag, d_in in (("f", din), ("b", din)):
            key, k1, k2, k3, k4 = jax.random.split(key, 5)
            # PyTorch stores (4H, in); we keep (in, 4H) for x @ W.  Gate order: i, f, g, o.
            layer_p[f"wih_{tag}"] = jax.random.uniform(
                k1, (d_in, 4 * H), jnp.float32, -scale, scale)
            layer_p[f"whh_{tag}"] = jax.random.uniform(
                k2, (H, 4 * H), jnp.float32, -scale, scale)
            b_ih = jax.random.uniform(k3, (4 * H,), jnp.float32, -scale, scale)
            b_hh = jax.random.uniform(k4, (4 * H,), jnp.float32, -scale, scale)
            layer_p[f"b_{tag}"] = (b_ih + b_hh).reshape(1, 4 * H)
        params["lstm"].append(layer_p)
    key, kw, kb = jax.random.split(key, 3)
    fc_scale = 1.0 / np.sqrt(2 * H)
    params["fc_w"] = jax.random.uniform(kw, (2 * H, 1), jnp.float32, -fc_scale, fc_scale)
    params["fc_b"] = jax.random.uniform(kb, (1, 1), jnp.float32, -fc_scale, fc_scale)
    return params


# ----------------------------------------------------------------------------
if __name__ == "__main__":
    # Small shapes consistent with the module.
    T, B = 8, 2            # sequence length, batch
    d_input, d_hidden, N = 4, 32, 2
    dropout = 0.0          # Dropout is identity in eval / p=0

    key = jax.random.PRNGKey(0)
    key, kx, kh, kc = jax.random.split(key, 4)
    params = init_params(key, d_input, d_hidden, N)

    inputs = jax.random.normal(kx, (T, B, d_input), jnp.float32)
    h0 = jax.random.normal(kh, (N * 2, B, d_hidden), jnp.float32)
    c0 = jax.random.normal(kc, (N * 2, B, d_hidden), jnp.float32)

    out = seq2seq_lstm_forward(inputs, h0, c0, params, num_layers=N)
    out = jax.block_until_ready(out)

    ref = seq2seq_lstm_reference(inputs, h0, c0, params, N)
    np.testing.assert_allclose(np.asarray(out), np.asarray(ref), rtol=1e-5, atol=1e-5)
    assert out.shape == (T, B, 1)

    print("KERNEL_OK")
</pallas_src>

<mosaic_0001>
module attributes {stable_mosaic.version = 11 : i64} {
  func.func @kernel(%arg0: memref<16x4xf32, #tpu.memory_space<vmem>>, %arg1: memref<4x2x32xf32, #tpu.memory_space<vmem>>, %arg2: memref<4x2x32xf32, #tpu.memory_space<vmem>>, %arg3: memref<4x128xf32, #tpu.memory_space<vmem>>, %arg4: memref<32x128xf32, #tpu.memory_space<vmem>>, %arg5: memref<1x128xf32, #tpu.memory_space<vmem>>, %arg6: memref<4x128xf32, #tpu.memory_space<vmem>>, %arg7: memref<32x128xf32, #tpu.memory_space<vmem>>, %arg8: memref<1x128xf32, #tpu.memory_space<vmem>>, %arg9: memref<64x128xf32, #tpu.memory_space<vmem>>, %arg10: memref<32x128xf32, #tpu.memory_space<vmem>>, %arg11: memref<1x128xf32, #tpu.memory_space<vmem>>, %arg12: memref<64x128xf32, #tpu.memory_space<vmem>>, %arg13: memref<32x128xf32, #tpu.memory_space<vmem>>, %arg14: memref<1x128xf32, #tpu.memory_space<vmem>>, %arg15: memref<64x1xf32, #tpu.memory_space<vmem>>, %arg16: memref<1x1xf32, #tpu.memory_space<vmem>>, %arg17: memref<16x1xf32, #tpu.memory_space<vmem>>, %arg18: memref<16x32xf32, #tpu.memory_space<vmem>>, %arg19: memref<16x32xf32, #tpu.memory_space<vmem>>) attributes {dimension_semantics = [], scalar_prefetch = 0 : i64, scratch_operands = 2 : i64, tpu.core_type = #tpu.core_type<tc>} {
    %c0 = arith.constant 0 : index
    %c0_0 = arith.constant 0 : index
    %0 = vector.load %arg0[%c0, %c0_0] : memref<16x4xf32, #tpu.memory_space<vmem>>, vector<16x4xf32>
    %c0_1 = arith.constant 0 : index
    %c0_2 = arith.constant 0 : index
    %1 = vector.load %arg3[%c0_1, %c0_2] : memref<4x128xf32, #tpu.memory_space<vmem>>, vector<4x128xf32>
    %cst = arith.constant dense<0.000000e+00> : vector<16x128xf32>
    %2 = tpu.matmul %0, %1, %cst {dimension_numbers = #tpu.dot_dimension_numbers<[1], [0], [0], [1], [0, 0, 1, 1], [], []>} : vector<16x4xf32>, vector<4x128xf32>, vector<16x128xf32> -> vector<16x128xf32>
    %c0_3 = arith.constant 0 : index
    %c0_4 = arith.constant 0 : index
    %3 = vector.load %arg5[%c0_3, %c0_4] : memref<1x128xf32, #tpu.memory_space<vmem>>, vector<1x128xf32>
    %4 = vector.broadcast %3 : vector<1x128xf32> to vector<16x128xf32>
    %5 = arith.addf %2, %4 : vector<16x128xf32>
    %c0_5 = arith.constant 0 : index
    %c0_6 = arith.constant 0 : index
    %6 = vector.load %arg6[%c0_5, %c0_6] : memref<4x128xf32, #tpu.memory_space<vmem>>, vector<4x128xf32>
    %cst_7 = arith.constant dense<0.000000e+00> : vector<16x128xf32>
    %7 = tpu.matmul %0, %6, %cst_7 {dimension_numbers = #tpu.dot_dimension_numbers<[1], [0], [0], [1], [0, 0, 1, 1], [], []>} : vector<16x4xf32>, vector<4x128xf32>, vector<16x128xf32> -> vector<16x128xf32>
    %c0_8 = arith.constant 0 : index
    %c0_9 = arith.constant 0 : index
    %8 = vector.load %arg8[%c0_8, %c0_9] : memref<1x128xf32, #tpu.memory_space<vmem>>, vector<1x128xf32>
    %9 = vector.broadcast %8 : vector<1x128xf32> to vector<16x128xf32>
    %10 = arith.addf %7, %9 : vector<16x128xf32>
    %c0_10 = arith.constant 0 : index
    %c0_11 = arith.constant 0 : index
    %11 = vector.load %arg4[%c0_10, %c0_11] : memref<32x128xf32, #tpu.memory_space<vmem>>, vector<32x128xf32>
    %c0_12 = arith.constant 0 : index
    %c0_13 = arith.constant 0 : index
    %12 = vector.load %arg7[%c0_12, %c0_13] : memref<32x128xf32, #tpu.memory_space<vmem>>, vector<32x128xf32>
    %c0_14 = arith.constant 0 : index
    %c0_15 = arith.constant 0 : index
    %c0_16 = arith.constant 0 : index
    %13 = vector.load %arg1[%c0_14, %c0_15, %c0_16] : memref<4x2x32xf32, #tpu.memory_space<vmem>>, vector<1x2x32xf32>
    %14 = vector.shape_cast %13 : vector<1x2x32xf32> to vector<2x32xf32>
    %c0_17 = arith.constant 0 : index
    %c0_18 = arith.constant 0 : index
    %c0_19 = arith.constant 0 : index
    %15 = vector.load %arg2[%c0_17, %c0_18, %c0_19] : memref<4x2x32xf32, #tpu.memory_space<vmem>>, vector<1x2x32xf32>
    %16 = vector.shape_cast %15 : vector<1x2x32xf32> to vector<2x32xf32>
    %c1 = arith.constant 1 : index
    %c0_20 = arith.constant 0 : index
    %c0_21 = arith.constant 0 : index
    %17 = vector.load %arg1[%c1, %c0_20, %c0_21] : memref<4x2x32xf32, #tpu.memory_space<vmem>>, vector<1x2x32xf32>
    %18 = vector.shape_cast %17 : vector<1x2x32xf32> to vector<2x32xf32>
    %c1_22 = arith.constant 1 : index
    %c0_23 = arith.constant 0 : index
    %c0_24 = arith.constant 0 : index
    %19 = vector.load %arg2[%c1_22, %c0_23, %c0_24] : memref<4x2x32xf32, #tpu.memory_space<vmem>>, vector<1x2x32xf32>
    %20 = vector.shape_cast %19 : vector<1x2x32xf32> to vector<2x32xf32>
    %21 = vector.extract_strided_slice %5 {offsets = [0, 0], sizes = [2, 128], strides = [1, 1]} : vector<16x128xf32> to vector<2x128xf32>
    %cst_25 = arith.constant dense<0.000000e+00> : vector<2x128xf32>
    %22 = tpu.matmul %14, %11, %cst_25 {dimension_numbers = #tpu.dot_dimension_numbers<[1], [0], [0], [1], [0, 0, 1, 1], [], []>} : vector<2x32xf32>, vector<32x128xf32>, vector<2x128xf32> -> vector<2x128xf32>
    %23 = arith.addf %21, %22 : vector<2x128xf32>
    %24 = vector.extract_strided_slice %23 {offsets = [0, 0], sizes = [2, 32], strides = [1, 1]} : vector<2x128xf32> to vector<2x32xf32>
    %25 = arith.negf %24 : vector<2x32xf32>
    %26 = math.exp %25 : vector<2x32xf32>
    %cst_26 = arith.constant 1.000000e+00 : f32
    %27 = vector.broadcast %cst_26 : f32 to vector<2x32xf32>
    %28 = arith.addf %27, %26 : vector<2x32xf32>
    %29 = arith.divf %27, %28 : vector<2x32xf32>
    %30 = vector.extract_strided_slice %23 {offsets = [0, 32], sizes = [2, 32], strides = [1, 1]} : vector<2x128xf32> to vector<2x32xf32>
    %31 = arith.negf %30 : vector<2x32xf32>
    %32 = math.exp %31 : vector<2x32xf32>
    %cst_27 = arith.constant 1.000000e+00 : f32
    %33 = vector.broadcast %cst_27 : f32 to vector<2x32xf32>
    %34 = arith.addf %33, %32 : vector<2x32xf32>
    %35 = arith.divf %33, %34 : vector<2x32xf32>
    %36 = vector.extract_strided_slice %23 {offsets = [0, 64], sizes = [2, 32], strides = [1, 1]} : vector<2x128xf32> to vector<2x32xf32>
    %37 = math.tanh %36 : vector<2x32xf32>
    %38 = vector.extract_strided_slice %23 {offsets = [0, 96], sizes = [2, 32], strides = [1, 1]} : vector<2x128xf32> to vector<2x32xf32>
    %39 = arith.negf %38 : vector<2x32xf32>
    %40 = math.exp %39 : vector<2x32xf32>
    %cst_28 = arith.constant 1.000000e+00 : f32
    %41 = vector.broadcast %cst_28 : f32 to vector<2x32xf32>
    %42 = arith.addf %41, %40 : vector<2x32xf32>
    %43 = arith.divf %41, %42 : vector<2x32xf32>
    %44 = arith.mulf %35, %16 : vector<2x32xf32>
    %45 = arith.mulf %29, %37 : vector<2x32xf32>
    %46 = arith.addf %44, %45 : vector<2x32xf32>
    %47 = math.tanh %46 : vector<2x32xf32>
    %48 = arith.mulf %43, %47 : vector<2x32xf32>
    %c0_29 = arith.constant 0 : index
    %c0_30 = arith.constant 0 : index
    %49 = vector.load %arg18[%c0_29, %c0_30] : memref<16x32xf32, #tpu.memory_space<vmem>>, vector<2x32xf32>
    tpu.vector_store %arg18[%c0_29, %c0_30], %48 {strides = array<i32>} : memref<16x32xf32, #tpu.memory_space<vmem>>, vector<2x32xf32>,
    %50 = vector.extract_strided_slice %10 {offsets = [14, 0], sizes = [2, 128], strides = [1, 1]} : vector<16x128xf32> to vector<2x128xf32>
    %cst_31 = arith.constant dense<0.000000e+00> : vector<2x128xf32>
    %51 = tpu.matmul %18, %12, %cst_31 {dimension_numbers = #tpu.dot_dimension_numbers<[1], [0], [0], [1], [0, 0, 1, 1], [], []>} : vector<2x32xf32>, vector<32x128xf32>, vector<2x128xf32> -> vector<2x128xf32>
    %52 = arith.addf %50, %51 : vector<2x128xf32>
    %53 = vector.extract_strided_slice %52 {offsets = [0, 0], sizes = [2, 32], strides = [1, 1]} : vector<2x128xf32> to vector<2x32xf32>
    %54 = arith.negf %53 : vector<2x32xf32>
    %55 = math.exp %54 : vector<2x32xf32>
    %cst_32 = arith.constant 1.000000e+00 : f32
    %56 = vector.broadcast %cst_32 : f32 to vector<2x32xf32>
    %57 = arith.addf %56, %55 : vector<2x32xf32>
    %58 = arith.divf %56, %57 : vector<2x32xf32>
    %59 = vector.extract_strided_slice %52 {offsets = [0, 32], sizes = [2, 32], strides = [1, 1]} : vector<2x128xf32> to vector<2x32xf32>
    %60 = arith.negf %59 : vector<2x32xf32>
    %61 = math.exp %60 : vector<2x32xf32>
    %cst_33 = arith.constant 1.000000e+00 : f32
    %62 = vector.broadcast %cst_33 : f32 to vector<2x32xf32>
    %63 = arith.addf %62, %61 : vector<2x32xf32>
    %64 = arith.divf %62, %63 : vector<2x32xf32>
    %65 = vector.extract_strided_slice %52 {offsets = [0, 64], sizes = [2, 32], strides = [1, 1]} : vector<2x128xf32> to vector<2x32xf32>
    %66 = math.tanh %65 : vector<2x32xf32>
    %67 = vector.extract_strided_slice %52 {offsets = [0, 96], sizes = [2, 32], strides = [1, 1]} : vector<2x128xf32> to vector<2x32xf32>
    %68 = arith.negf %67 : vector<2x32xf32>
    %69 = math.exp %68 : vector<2x32xf32>
    %cst_34 = arith.constant 1.000000e+00 : f32
    %70 = vector.broadcast %cst_34 : f32 to vector<2x32xf32>
    %71 = arith.addf %70, %69 : vector<2x32xf32>
    %72 = arith.divf %70, %71 : vector<2x32xf32>
    %73 = arith.mulf %64, %20 : vector<2x32xf32>
    %74 = arith.mulf %58, %66 : vector<2x32xf32>
    %75 = arith.addf %73, %74 : vector<2x32xf32>
    %76 = math.tanh %75 : vector<2x32xf32>
    %77 = arith.mulf %72, %76 : vector<2x32xf32>
    %c14 = arith.constant 14 : index
    %c0_35 = arith.constant 0 : index
    %78 = vector.load %arg19[%c14, %c0_35] : memref<16x32xf32, #tpu.memory_space<vmem>>, vector<2x32xf32>
    tpu.vector_store %arg19[%c14, %c0_35], %77 {strides = array<i32>} : memref<16x32xf32, #tpu.memory_space<vmem>>, vector<2x32xf32>,
    %79 = vector.extract_strided_slice %5 {offsets = [2, 0], sizes = [2, 128], strides = [1, 1]} : vector<16x128xf32> to vector<2x128xf32>
    %cst_36 = arith.constant dense<0.000000e+00> : vector<2x128xf32>
    %80 = tpu.matmul %48, %11, %cst_36 {dimension_numbers = #tpu.dot_dimension_numbers<[1], [0], [0], [1], [0, 0, 1, 1], [], []>} : vector<2x32xf32>, vector<32x128xf32>, vector<2x128xf32> -> vector<2x128xf32>
    %81 = arith.addf %79, %80 : vector<2x128xf32>
    %82 = vector.extract_strided_slice %81 {offsets = [0, 0], sizes = [2, 32], strides = [1, 1]} : vector<2x128xf32> to vector<2x32xf32>
    %83 = arith.negf %82 : vector<2x32xf32>
    %84 = math.exp %83 : vector<2x32xf32>
    %cst_37 = arith.constant 1.000000e+00 : f32
    %85 = vector.broadcast %cst_37 : f32 to vector<2x32xf32>
    %86 = arith.addf %85, %84 : vector<2x32xf32>
    %87 = arith.divf %85, %86 : vector<2x32xf32>
    %88 = vector.extract_strided_slice %81 {offsets = [0, 32], sizes = [2, 32], strides = [1, 1]} : vector<2x128xf32> to vector<2x32xf32>
    %89 = arith.negf %88 : vector<2x32xf32>
    %90 = math.exp %89 : vector<2x32xf32>
    %cst_38 = arith.constant 1.000000e+00 : f32
    %91 = vector.broadcast %cst_38 : f32 to vector<2x32xf32>
    %92 = arith.addf %91, %90 : vector<2x32xf32>
    %93 = arith.divf %91, %92 : vector<2x32xf32>
    %94 = vector.extract_strided_slice %81 {offsets = [0, 64], sizes = [2, 32], strides = [1, 1]} : vector<2x128xf32> to vector<2x32xf32>
    %95 = math.tanh %94 : vector<2x32xf32>
    %96 = vector.extract_strided_slice %81 {offsets = [0, 96], sizes = [2, 32], strides = [1, 1]} : vector<2x128xf32> to vector<2x32xf32>
    %97 = arith.negf %96 : vector<2x32xf32>
    %98 = math.exp %97 : vector<2x32xf32>
    %cst_39 = arith.constant 1.000000e+00 : f32
    %99 = vector.broadcast %cst_39 : f32 to vector<2x32xf32>
    %100 = arith.addf %99, %98 : vector<2x32xf32>
    %101 = arith.divf %99, %100 : vector<2x32xf32>
    %102 = arith.mulf %93, %46 : vector<2x32xf32>
    %103 = arith.mulf %87, %95 : vector<2x32xf32>
    %104 = arith.addf %102, %103 : vector<2x32xf32>
    %105 = math.tanh %104 : vector<2x32xf32>
    %106 = arith.mulf %101, %105 : vector<2x32xf32>
    %c2 = arith.constant 2 : index
    %c0_40 = arith.constant 0 : index
    %107 = vector.load %arg18[%c2, %c0_40] : memref<16x32xf32, #tpu.memory_space<vmem>>, vector<2x32xf32>
    tpu.vector_store %arg18[%c2, %c0_40], %106 {strides = array<i32>} : memref<16x32xf32, #tpu.memory_space<vmem>>, vector<2x32xf32>,
    %108 = vector.extract_strided_slice %10 {offsets = [12, 0], sizes = [2, 128], strides = [1, 1]} : vector<16x128xf32> to vector<2x128xf32>
    %cst_41 = arith.constant dense<0.000000e+00> : vector<2x128xf32>
    %109 = tpu.matmul %77, %12, %cst_41 {dimension_numbers = #tpu.dot_dimension_numbers<[1], [0], [0], [1], [0, 0, 1, 1], [], []>} : vector<2x32xf32>, vector<32x128xf32>, vector<2x128xf32> -> vector<2x128xf32>
    %110 = arith.addf %108, %109 : vector<2x128xf32>
    %111 = vector.extract_strided_slice %110 {offsets = [0, 0], sizes = [2, 32], strides = [1, 1]} : vector<2x128xf32> to vector<2x32xf32>
    %112 = arith.negf %111 : vector<2x32xf32>
    %113 = math.exp %112 : vector<2x32xf32>
    %cst_42 = arith.constant 1.000000e+00 : f32
    %114 = vector.broadcast %cst_42 : f32 to vector<2x32xf32>
    %115 = arith.addf %114, %113 : vector<2x32xf32>
    %116 = arith.divf %114, %115 : vector<2x32xf32>
    %117 = vector.extract_strided_slice %110 {offsets = [0, 32], sizes = [2, 32], strides = [1, 1]} : vector<2x128xf32> to vector<2x32xf32>
    %118 = arith.negf %117 : vector<2x32xf32>
    %119 = math.exp %118 : vector<2x32xf32>
    %cst_43 = arith.constant 1.000000e+00 : f32
    %120 = vector.broadcast %cst_43 : f32 to vector<2x32xf32>
    %121 = arith.addf %120, %119 : vector<2x32xf32>
    %122 = arith.divf %120, %121 : vector<2x32xf32>
    %123 = vector.extract_strided_slice %110 {offsets = [0, 64], sizes = [2, 32], strides = [1, 1]} : vector<2x128xf32> to vector<2x32xf32>
    %124 = math.tanh %123 : vector<2x32xf32>
    %125 = vector.extract_strided_slice %110 {offsets = [0, 96], sizes = [2, 32], strides = [1, 1]} : vector<2x128xf32> to vector<2x32xf32>
    %126 = arith.negf %125 : vector<2x32xf32>
    %127 = math.exp %126 : vector<2x32xf32>
    %cst_44 = arith.constant 1.000000e+00 : f32
    %128 = vector.broadcast %cst_44 : f32 to vector<2x32xf32>
    %129 = arith.addf %128, %127 : vector<2x32xf32>
    %130 = arith.divf %128, %129 : vector<2x32xf32>
    %131 = arith.mulf %122, %75 : vector<2x32xf32>
    %132 = arith.mulf %116, %124 : vector<2x32xf32>
    %133 = arith.addf %131, %132 : vector<2x32xf32>
    %134 = math.tanh %133 : vector<2x32xf32>
    %135 = arith.mulf %130, %134 : vector<2x32xf32>
    %c12 = arith.constant 12 : index
    %c0_45 = arith.constant 0 : index
    %136 = vector.load %arg19[%c12, %c0_45] : memref<16x32xf32, #tpu.memory_space<vmem>>, vector<2x32xf32>
    tpu.vector_store %arg19[%c12, %c0_45], %135 {strides = array<i32>} : memref<16x32xf32, #tpu.memory_space<vmem>>, vector<2x32xf32>,
    %137 = vector.extract_strided_slice %5 {offsets = [4, 0], sizes = [2, 128], strides = [1, 1]} : vector<16x128xf32> to vector<2x128xf32>
    %cst_46 = arith.constant dense<0.000000e+00> : vector<2x128xf32>
    %138 = tpu.matmul %106, %11, %cst_46 {dimension_numbers = #tpu.dot_dimension_numbers<[1], [0], [0], [1], [0, 0, 1, 1], [], []>} : vector<2x32xf32>, vector<32x128xf32>, vector<2x128xf32> -> vector<2x128xf32>
    %139 = arith.addf %137, %138 : vector<2x128xf32>
    %140 = vector.extract_strided_slice %139 {offsets = [0, 0], sizes = [2, 32], strides = [1, 1]} : vector<2x128xf32> to vector<2x32xf32>
    %141 = arith.negf %140 : vector<2x32xf32>
    %142 = math.exp %141 : vector<2x32xf32>
    %cst_47 = arith.constant 1.000000e+00 : f32
    %143 = vector.broadcast %cst_47 : f32 to vector<2x32xf32>
    %144 = arith.addf %143, %142 : vector<2x32xf32>
    %145 = arith.divf %143, %144 : vector<2x32xf32>
    %146 = vector.extract_strided_slice %139 {offsets = [0, 32], sizes = [2, 32], strides = [1, 1]} : vector<2x128xf32> to vector<2x32xf32>
    %147 = arith.negf %146 : vector<2x32xf32>
    %148 = math.exp %147 : vector<2x32xf32>
    %cst_48 = arith.constant 1.000000e+00 : f32
    %149 = vector.broadcast %cst_48 : f32 to vector<2x32xf32>
    %150 = arith.addf %149, %148 : vector<2x32xf32>
    %151 = arith.divf %149, %150 : vector<2x32xf32>
    %152 = vector.extract_strided_slice %139 {offsets = [0, 64], sizes = [2, 32], strides = [1, 1]} : vector<2x128xf32> to vector<2x32xf32>
    %153 = math.tanh %152 : vector<2x32xf32>
    %154 = vector.extract_strided_slice %139 {offsets = [0, 96], sizes = [2, 32], strides = [1, 1]} : vector<2x128xf32> to vector<2x32xf32>
    %155 = arith.negf %154 : vector<2x32xf32>
    %156 = math.exp %155 : vector<2x32xf32>
    %cst_49 = arith.constant 1.000000e+00 : f32
    %157 = vector.broadcast %cst_49 : f32 to vector<2x32xf32>
    %158 = arith.addf %157, %156 : vector<2x32xf32>
    %159 = arith.divf %157, %158 : vector<2x32xf32>
    %160 = arith.mulf %151, %104 : vector<2x32xf32>
    %161 = arith.mulf %145, %153 : vector<2x32xf32>
    %162 = arith.addf %160, %161 : vector<2x32xf32>
    %163 = math.tanh %162 : vector<2x32xf32>
    %164 = arith.mulf %159, %163 : vector<2x32xf32>
    %c4 = arith.constant 4 : index
    %c0_50 = arith.constant 0 : index
    %165 = vector.load %arg18[%c4, %c0_50] : memref<16x32xf32, #tpu.memory_space<vmem>>, vector<2x32xf32>
    tpu.vector_store %arg18[%c4, %c0_50], %164 {strides = array<i32>} : memref<16x32xf32, #tpu.memory_space<vmem>>, vector<2x32xf32>,
    %166 = vector.extract_strided_slice %10 {offsets = [10, 0], sizes = [2, 128], strides = [1, 1]} : vector<16x128xf32> to vector<2x128xf32>
    %cst_51 = arith.constant dense<0.000000e+00> : vector<2x128xf32>
    %167 = tpu.matmul %135, %12, %cst_51 {dimension_numbers = #tpu.dot_dimension_numbers<[1], [0], [0], [1], [0, 0, 1, 1], [], []>} : vector<2x32xf32>, vector<32x128xf32>, vector<2x128xf32> -> vector<2x128xf32>
    %168 = arith.addf %166, %167 : vector<2x128xf32>
    %169 = vector.extract_strided_slice %168 {offsets = [0, 0], sizes = [2, 32], strides = [1, 1]} : vector<2x128xf32> to vector<2x32xf32>
    %170 = arith.negf %169 : vector<2x32xf32>
    %171 = math.exp %170 : vector<2x32xf32>
    %cst_52 = arith.constant 1.000000e+00 : f32
    %172 = vector.broadcast %cst_52 : f32 to vector<2x32xf32>
    %173 = arith.addf %172, %171 : vector<2x32xf32>
    %174 = arith.divf %172, %173 : vector<2x32xf32>
    %175 = vector.extract_strided_slice %168 {offsets = [0, 32], sizes = [2, 32], strides = [1, 1]} : vector<2x128xf32> to vector<2x32xf32>
    %176 = arith.negf %175 : vector<2x32xf32>
    %177 = math.exp %176 : vector<2x32xf32>
    %cst_53 = arith.constant 1.000000e+00 : f32
    %178 = vector.broadcast %cst_53 : f32 to vector<2x32xf32>
    %179 = arith.addf %178, %177 : vector<2x32xf32>
    %180 = arith.divf %178, %179 : vector<2x32xf32>
    %181 = vector.extract_strided_slice %168 {offsets = [0, 64], sizes = [2, 32], strides = [1, 1]} : vector<2x128xf32> to vector<2x32xf32>
    %182 = math.tanh %181 : vector<2x32xf32>
    %183 = vector.extract_strided_slice %168 {offsets = [0, 96], sizes = [2, 32], strides = [1, 1]} : vector<2x128xf32> to vector<2x32xf32>
    %184 = arith.negf %183 : vector<2x32xf32>
    %185 = math.exp %184 : vector<2x32xf32>
    %cst_54 = arith.constant 1.000000e+00 : f32
    %186 = vector.broadcast %cst_54 : f32 to vector<2x32xf32>
    %187 = arith.addf %186, %185 : vector<2x32xf32>
    %188 = arith.divf %186, %187 : vector<2x32xf32>
    %189 = arith.mulf %180, %133 : vector<2x32xf32>
    %190 = arith.mulf %174, %182 : vector<2x32xf32>
    %191 = arith.addf %189, %190 : vector<2x32xf32>
    %192 = math.tanh %191 : vector<2x32xf32>
    %193 = arith.mulf %188, %192 : vector<2x32xf32>
    %c10 = arith.constant 10 : index
    %c0_55 = arith.constant 0 : index
    %194 = vector.load %arg19[%c10, %c0_55] : memref<16x32xf32, #tpu.memory_space<vmem>>, vector<2x32xf32>
    tpu.vector_store %arg19[%c10, %c0_55], %193 {strides = array<i32>} : memref<16x32xf32, #tpu.memory_space<vmem>>, vector<2x32xf32>,
    %195 = vector.extract_strided_slice %5 {offsets = [6, 0], sizes = [2, 128], strides = [1, 1]} : vector<16x128xf32> to vector<2x128xf32>
    %cst_56 = arith.constant dense<0.000000e+00> : vector<2x128xf32>
    %196 = tpu.matmul %164, %11, %cst_56 {dimension_numbers = #tpu.dot_dimension_numbers<[1], [0], [0], [1], [0, 0, 1, 1], [], []>} : vector<2x32xf32>, vector<32x128xf32>, vector<2x128xf32> -> vector<2x128xf32>
    %197 = arith.addf %195, %196 : vector<2x128xf32>
    %198 = vector.extract_strided_slice %197 {offsets = [0, 0], sizes = [2, 32], strides = [1, 1]} : vector<2x128xf32> to vector<2x32xf32>
    %199 = arith.negf %198 : vector<2x32xf32>
    %200 = math.exp %199 : vector<2x32xf32>
    %cst_57 = arith.constant 1.000000e+00 : f32
    %201 = vector.broadcast %cst_57 : f32 to vector<2x32xf32>
    %202 = arith.addf %201, %200 : vector<2x32xf32>
    %203 = arith.divf %201, %202 : vector<2x32xf32>
    %204 = vector.extract_strided_slice %197 {offsets = [0, 32], sizes = [2, 32], strides = [1, 1]} : vector<2x128xf32> to vector<2x32xf32>
    %205 = arith.negf %204 : vector<2x32xf32>
    %206 = math.exp %205 : vector<2x32xf32>
    %cst_58 = arith.constant 1.000000e+00 : f32
    %207 = vector.broadcast %cst_58 : f32 to vector<2x32xf32>
    %208 = arith.addf %207, %206 : vector<2x32xf32>
    %209 = arith.divf %207, %208 : vector<2x32xf32>
    %210 = vector.extract_strided_slice %197 {offsets = [0, 64], sizes = [2, 32], strides = [1, 1]} : vector<2x128xf32> to vector<2x32xf32>
    %211 = math.tanh %210 : vector<2x32xf32>
    %212 = vector.extract_strided_slice %197 {offsets = [0, 96], sizes = [2, 32], strides = [1, 1]} : vector<2x128xf32> to vector<2x32xf32>
    %213 = arith.negf %212 : vector<2x32xf32>
    %214 = math.exp %213 : vector<2x32xf32>
    %cst_59 = arith.constant 1.000000e+00 : f32
    %215 = vector.broadcast %cst_59 : f32 to vector<2x32xf32>
    %216 = arith.addf %215, %214 : vector<2x32xf32>
    %217 = arith.divf %215, %216 : vector<2x32xf32>
    %218 = arith.mulf %209, %162 : vector<2x32xf32>
    %219 = arith.mulf %203, %211 : vector<2x32xf32>
    %220 = arith.addf %218, %219 : vector<2x32xf32>
    %221 = math.tanh %220 : vector<2x32xf32>
    %222 = arith.mulf %217, %221 : vector<2x32xf32>
    %c6 = arith.constant 6 : index
    %c0_60 = arith.constant 0 : index
    %223 = vector.load %arg18[%c6, %c0_60] : memref<16x32xf32, #tpu.memory_space<vmem>>, vector<2x32xf32>
    tpu.vector_store %arg18[%c6, %c0_60], %222 {strides = array<i32>} : memref<16x32xf32, #tpu.memory_space<vmem>>, vector<2x32xf32>,
    %224 = vector.extract_strided_slice %10 {offsets = [8, 0], sizes = [2, 128], strides = [1, 1]} : vector<16x128xf32> to vector<2x128xf32>
    %cst_61 = arith.constant dense<0.000000e+00> : vector<2x128xf32>
    %225 = tpu.matmul %193, %12, %cst_61 {dimension_numbers = #tpu.dot_dimension_numbers<[1], [0], [0], [1], [0, 0, 1, 1], [], []>} : vector<2x32xf32>, vector<32x128xf32>, vector<2x128xf32> -> vector<2x128xf32>
    %226 = arith.addf %224, %225 : vector<2x128xf32>
    %227 = vector.extract_strided_slice %226 {offsets = [0, 0], sizes = [2, 32], strides = [1, 1]} : vector<2x128xf32> to vector<2x32xf32>
    %228 = arith.negf %227 : vector<2x32xf32>
    %229 = math.exp %228 : vector<2x32xf32>
    %cst_62 = arith.constant 1.000000e+00 : f32
    %230 = vector.broadcast %cst_62 : f32 to vector<2x32xf32>
    %231 = arith.addf %230, %229 : vector<2x32xf32>
    %232 = arith.divf %230, %231 : vector<2x32xf32>
    %233 = vector.extract_strided_slice %226 {offsets = [0, 32], sizes = [2, 32], strides = [1, 1]} : vector<2x128xf32> to vector<2x32xf32>
    %234 = arith.negf %233 : vector<2x32xf32>
    %235 = math.exp %234 : vector<2x32xf32>
    %cst_63 = arith.constant 1.000000e+00 : f32
    %236 = vector.broadcast %cst_63 : f32 to vector<2x32xf32>
    %237 = arith.addf %236, %235 : vector<2x32xf32>
    %238 = arith.divf %236, %237 : vector<2x32xf32>
    %239 = vector.extract_strided_slice %226 {offsets = [0, 64], sizes = [2, 32], strides = [1, 1]} : vector<2x128xf32> to vector<2x32xf32>
    %240 = math.tanh %239 : vector<2x32xf32>
    %241 = vector.extract_strided_slice %226 {offsets = [0, 96], sizes = [2, 32], strides = [1, 1]} : vector<2x128xf32> to vector<2x32xf32>
    %242 = arith.negf %241 : vector<2x32xf32>
    %243 = math.exp %242 : vector<2x32xf32>
    %cst_64 = arith.constant 1.000000e+00 : f32
    %244 = vector.broadcast %cst_64 : f32 to vector<2x32xf32>
    %245 = arith.addf %244, %243 : vector<2x32xf32>
    %246 = arith.divf %244, %245 : vector<2x32xf32>
    %247 = arith.mulf %238, %191 : vector<2x32xf32>
    %248 = arith.mulf %232, %240 : vector<2x32xf32>
    %249 = arith.addf %247, %248 : vector<2x32xf32>
    %250 = math.tanh %249 : vector<2x32xf32>
    %251 = arith.mulf %246, %250 : vector<2x32xf32>
    %c8 = arith.constant 8 : index
    %c0_65 = arith.constant 0 : index
    %252 = vector.load %arg19[%c8, %c0_65] : memref<16x32xf32, #tpu.memory_space<vmem>>, vector<2x32xf32>
    tpu.vector_store %arg19[%c8, %c0_65], %251 {strides = array<i32>} : memref<16x32xf32, #tpu.memory_space<vmem>>, vector<2x32xf32>,
    %253 = vector.extract_strided_slice %5 {offsets = [8, 0], sizes = [2, 128], strides = [1, 1]} : vector<16x128xf32> to vector<2x128xf32>
    %cst_66 = arith.constant dense<0.000000e+00> : vector<2x128xf32>
    %254 = tpu.matmul %222, %11, %cst_66 {dimension_numbers = #tpu.dot_dimension_numbers<[1], [0], [0], [1], [0, 0, 1, 1], [], []>} : vector<2x32xf32>, vector<32x128xf32>, vector<2x128xf32> -> vector<2x128xf32>
    %255 = arith.addf %253, %254 : vector<2x128xf32>
    %256 = vector.extract_strided_slice %255 {offsets = [0, 0], sizes = [2, 32], strides = [1, 1]} : vector<2x128xf32> to vector<2x32xf32>
    %257 = arith.negf %256 : vector<2x32xf32>
    %258 = math.exp %257 : vector<2x32xf32>
    %cst_67 = arith.constant 1.000000e+00 : f32
    %259 = vector.broadcast %cst_67 : f32 to vector<2x32xf32>
    %260 = arith.addf %259, %258 : vector<2x32xf32>
    %261 = arith.divf %259, %260 : vector<2x32xf32>
    %262 = vector.extract_strided_slice %255 {offsets = [0, 32], sizes = [2, 32], strides = [1, 1]} : vector<2x128xf32> to vector<2x32xf32>
    %263 = arith.negf %262 : vector<2x32xf32>
    %264 = math.exp %263 : vector<2x32xf32>
    %cst_68 = arith.constant 1.000000e+00 : f32
    %265 = vector.broadcast %cst_68 : f32 to vector<2x32xf32>
    %266 = arith.addf %265, %264 : vector<2x32xf32>
    %267 = arith.divf %265, %266 : vector<2x32xf32>
    %268 = vector.extract_strided_slice %255 {offsets = [0, 64], sizes = [2, 32], strides = [1, 1]} : vector<2x128xf32> to vector<2x32xf32>
    %269 = math.tanh %268 : vector<2x32xf32>
    %270 = vector.extract_strided_slice %255 {offsets = [0, 96], sizes = [2, 32], strides = [1, 1]} : vector<2x128xf32> to vector<2x32xf32>
    %271 = arith.negf %270 : vector<2x32xf32>
    %272 = math.exp %271 : vector<2x32xf32>
    %cst_69 = arith.constant 1.000000e+00 : f32
    %273 = vector.broadcast %cst_69 : f32 to vector<2x32xf32>
    %274 = arith.addf %273, %272 : vector<2x32xf32>
    %275 = arith.divf %273, %274 : vector<2x32xf32>
    %276 = arith.mulf %267, %220 : vector<2x32xf32>
    %277 = arith.mulf %261, %269 : vector<2x32xf32>
    %278 = arith.addf %276, %277 : vector<2x32xf32>
    %279 = math.tanh %278 : vector<2x32xf32>
    %280 = arith.mulf %275, %279 : vector<2x32xf32>
    %c8_70 = arith.constant 8 : index
    %c0_71 = arith.constant 0 : index
    %281 = vector.load %arg18[%c8_70, %c0_71] : memref<16x32xf32, #tpu.memory_space<vmem>>, vector<2x32xf32>
    tpu.vector_store %arg18[%c8_70, %c0_71], %280 {strides = array<i32>} : memref<16x32xf32, #tpu.memory_space<vmem>>, vector<2x32xf32>,
    %282 = vector.extract_strided_slice %10 {offsets = [6, 0], sizes = [2, 128], strides = [1, 1]} : vector<16x128xf32> to vector<2x128xf32>
    %cst_72 = arith.constant dense<0.000000e+00> : vector<2x128xf32>
    %283 = tpu.matmul %251, %12, %cst_72 {dimension_numbers = #tpu.dot_dimension_numbers<[1], [0], [0], [1], [0, 0, 1, 1], [], []>} : vector<2x32xf32>, vector<32x128xf32>, vector<2x128xf32> -> vector<2x128xf32>
    %284 = arith.addf %282, %283 : vector<2x128xf32>
    %285 = vector.extract_strided_slice %284 {offsets = [0, 0], sizes = [2, 32], strides = [1, 1]} : vector<2x128xf32> to vector<2x32xf32>
    %286 = arith.negf %285 : vector<2x32xf32>
    %287 = math.exp %286 : vector<2x32xf32>
    %cst_73 = arith.constant 1.000000e+00 : f32
    %288 = vector.broadcast %cst_73 : f32 to vector<2x32xf32>
    %289 = arith.addf %288, %287 : vector<2x32xf32>
    %290 = arith.divf %288, %289 : vector<2x32xf32>
    %291 = vector.extract_strided_slice %284 {offsets = [0, 32], sizes = [2, 32], strides = [1, 1]} : vector<2x128xf32> to vector<2x32xf32>
    %292 = arith.negf %291 : vector<2x32xf32>
    %293 = math.exp %292 : vector<2x32xf32>
    %cst_74 = arith.constant 1.000000e+00 : f32
    %294 = vector.broadcast %cst_74 : f32 to vector<2x32xf32>
    %295 = arith.addf %294, %293 : vector<2x32xf32>
    %296 = arith.divf %294, %295 : vector<2x32xf32>
    %297 = vector.extract_strided_slice %284 {offsets = [0, 64], sizes = [2, 32], strides = [1, 1]} : vector<2x128xf32> to vector<2x32xf32>
    %298 = math.tanh %297 : vector<2x32xf32>
    %299 = vector.extract_strided_slice %284 {offsets = [0, 96], sizes = [2, 32], strides = [1, 1]} : vector<2x128xf32> to vector<2x32xf32>
    %300 = arith.negf %299 : vector<2x32xf32>
    %301 = math.exp %300 : vector<2x32xf32>
    %cst_75 = arith.constant 1.000000e+00 : f32
    %302 = vector.broadcast %cst_75 : f32 to vector<2x32xf32>
    %303 = arith.addf %302, %301 : vector<2x32xf32>
    %304 = arith.divf %302, %303 : vector<2x32xf32>
    %305 = arith.mulf %296, %249 : vector<2x32xf32>
    %306 = arith.mulf %290, %298 : vector<2x32xf32>
    %307 = arith.addf %305, %306 : vector<2x32xf32>
    %308 = math.tanh %307 : vector<2x32xf32>
    %309 = arith.mulf %304, %308 : vector<2x32xf32>
    %c6_76 = arith.constant 6 : index
    %c0_77 = arith.constant 0 : index
    %310 = vector.load %arg19[%c6_76, %c0_77] : memref<16x32xf32, #tpu.memory_space<vmem>>, vector<2x32xf32>
    tpu.vector_store %arg19[%c6_76, %c0_77], %309 {strides = array<i32>} : memref<16x32xf32, #tpu.memory_space<vmem>>, vector<2x32xf32>,
    %311 = vector.extract_strided_slice %5 {offsets = [10, 0], sizes = [2, 128], strides = [1, 1]} : vector<16x128xf32> to vector<2x128xf32>
    %cst_78 = arith.constant dense<0.000000e+00> : vector<2x128xf32>
    %312 = tpu.matmul %280, %11, %cst_78 {dimension_numbers = #tpu.dot_dimension_numbers<[1], [0], [0], [1], [0, 0, 1, 1], [], []>} : vector<2x32xf32>, vector<32x128xf32>, vector<2x128xf32> -> vector<2x128xf32>
    %313 = arith.addf %311, %312 : vector<2x128xf32>
    %314 = vector.extract_strided_slice %313 {offsets = [0, 0], sizes = [2, 32], strides = [1, 1]} : vector<2x128xf32> to vector<2x32xf32>
    %315 = arith.negf %314 : vector<2x32xf32>
    %316 = math.exp %315 : vector<2x32xf32>
    %cst_79 = arith.constant 1.000000e+00 : f32
    %317 = vector.broadcast %cst_79 : f32 to vector<2x32xf32>
    %318 = arith.addf %317, %316 : vector<2x32xf32>
    %319 = arith.divf %317, %318 : vector<2x32xf32>
    %320 = vector.extract_strided_slice %313 {offsets = [0, 32], sizes = [2, 32], strides = [1, 1]} : vector<2x128xf32> to vector<2x32xf32>
    %321 = arith.negf %320 : vector<2x32xf32>
    %322 = math.exp %321 : vector<2x32xf32>
    %cst_80 = arith.constant 1.000000e+00 : f32
    %323 = vector.broadcast %cst_80 : f32 to vector<2x32xf32>
    %324 = arith.addf %323, %322 : vector<2x32xf32>
    %325 = arith.divf %323, %324 : vector<2x32xf32>
    %326 = vector.extract_strided_slice %313 {offsets = [0, 64], sizes = [2, 32], strides = [1, 1]} : vector<2x128xf32> to vector<2x32xf32>
    %327 = math.tanh %326 : vector<2x32xf32>
    %328 = vector.extract_strided_slice %313 {offsets = [0, 96], sizes = [2, 32], strides = [1, 1]} : vector<2x128xf32> to vector<2x32xf32>
    %329 = arith.negf %328 : vector<2x32xf32>
    %330 = math.exp %329 : vector<2x32xf32>
    %cst_81 = arith.constant 1.000000e+00 : f32
    %331 = vector.broadcast %cst_81 : f32 to vector<2x32xf32>
    %332 = arith.addf %331, %330 : vector<2x32xf32>
    %333 = arith.divf %331, %332 : vector<2x32xf32>
    %334 = arith.mulf %325, %278 : vector<2x32xf32>
    %335 = arith.mulf %319, %327 : vector<2x32xf32>
    %336 = arith.addf %334, %335 : vector<2x32xf32>
    %337 = math.tanh %336 : vector<2x32xf32>
    %338 = arith.mulf %333, %337 : vector<2x32xf32>
    %c10_82 = arith.constant 10 : index
    %c0_83 = arith.constant 0 : index
    %339 = vector.load %arg18[%c10_82, %c0_83] : memref<16x32xf32, #tpu.memory_space<vmem>>, vector<2x32xf32>
    tpu.vector_store %arg18[%c10_82, %c0_83], %338 {strides = array<i32>} : memref<16x32xf32, #tpu.memory_space<vmem>>, vector<2x32xf32>,
    %340 = vector.extract_strided_slice %10 {offsets = [4, 0], sizes = [2, 128], strides = [1, 1]} : vector<16x128xf32> to vector<2x128xf32>
    %cst_84 = arith.constant dense<0.000000e+00> : vector<2x128xf32>
    %341 = tpu.matmul %309, %12, %cst_84 {dimension_numbers = #tpu.dot_dimension_numbers<[1], [0], [0], [1], [0, 0, 1, 1], [], []>} : vector<2x32xf32>, vector<32x128xf32>, vector<2x128xf32> -> vector<2x128xf32>
    %342 = arith.addf %340, %341 : vector<2x128xf32>
    %343 = vector.extract_strided_slice %342 {offsets = [0, 0], sizes = [2, 32], strides = [1, 1]} : vector<2x128xf32> to vector<2x32xf32>
    %344 = arith.negf %343 : vector<2x32xf32>
    %345 = math.exp %344 : vector<2x32xf32>
    %cst_85 = arith.constant 1.000000e+00 : f32
    %346 = vector.broadcast %cst_85 : f32 to vector<2x32xf32>
    %347 = arith.addf %346, %345 : vector<2x32xf32>
    %348 = arith.divf %346, %347 : vector<2x32xf32>
    %349 = vector.extract_strided_slice %342 {offsets = [0, 32], sizes = [2, 32], strides = [1, 1]} : vector<2x128xf32> to vector<2x32xf32>
    %350 = arith.negf %349 : vector<2x32xf32>
    %351 = math.exp %350 : vector<2x32xf32>
    %cst_86 = arith.constant 1.000000e+00 : f32
    %352 = vector.broadcast %cst_86 : f32 to vector<2x32xf32>
    %353 = arith.addf %352, %351 : vector<2x32xf32>
    %354 = arith.divf %352, %353 : vector<2x32xf32>
    %355 = vector.extract_strided_slice %342 {offsets = [0, 64], sizes = [2, 32], strides = [1, 1]} : vector<2x128xf32> to vector<2x32xf32>
    %356 = math.tanh %355 : vector<2x32xf32>
    %357 = vector.extract_strided_slice %342 {offsets = [0, 96], sizes = [2, 32], strides = [1, 1]} : vector<2x128xf32> to vector<2x32xf32>
    %358 = arith.negf %357 : vector<2x32xf32>
    %359 = math.exp %358 : vector<2x32xf32>
    %cst_87 = arith.constant 1.000000e+00 : f32
    %360 = vector.broadcast %cst_87 : f32 to vector<2x32xf32>
    %361 = arith.addf %360, %359 : vector<2x32xf32>
    %362 = arith.divf %360, %361 : vector<2x32xf32>
    %363 = arith.mulf %354, %307 : vector<2x32xf32>
    %364 = arith.mulf %348, %356 : vector<2x32xf32>
    %365 = arith.addf %363, %364 : vector<2x32xf32>
    %366 = math.tanh %365 : vector<2x32xf32>
    %367 = arith.mulf %362, %366 : vector<2x32xf32>
    %c4_88 = arith.constant 4 : index
    %c0_89 = arith.constant 0 : index
    %368 = vector.load %arg19[%c4_88, %c0_89] : memref<16x32xf32, #tpu.memory_space<vmem>>, vector<2x32xf32>
    tpu.vector_store %arg19[%c4_88, %c0_89], %367 {strides = array<i32>} : memref<16x32xf32, #tpu.memory_space<vmem>>, vector<2x32xf32>,
    %369 = vector.extract_strided_slice %5 {offsets = [12, 0], sizes = [2, 128], strides = [1, 1]} : vector<16x128xf32> to vector<2x128xf32>
    %cst_90 = arith.constant dense<0.000000e+00> : vector<2x128xf32>
    %370 = tpu.matmul %338, %11, %cst_90 {dimension_numbers = #tpu.dot_dimension_numbers<[1], [0], [0], [1], [0, 0, 1, 1], [], []>} : vector<2x32xf32>, vector<32x128xf32>, vector<2x128xf32> -> vector<2x128xf32>
    %371 = arith.addf %369, %370 : vector<2x128xf32>
    %372 = vector.extract_strided_slice %371 {offsets = [0, 0], sizes = [2, 32], strides = [1, 1]} : vector<2x128xf32> to vector<2x32xf32>
    %373 = arith.negf %372 : vector<2x32xf32>
    %374 = math.exp %373 : vector<2x32xf32>
    %cst_91 = arith.constant 1.000000e+00 : f32
    %375 = vector.broadcast %cst_91 : f32 to vector<2x32xf32>
    %376 = arith.addf %375, %374 : vector<2x32xf32>
    %377 = arith.divf %375, %376 : vector<2x32xf32>
    %378 = vector.extract_strided_slice %371 {offsets = [0, 32], sizes = [2, 32], strides = [1, 1]} : vector<2x128xf32> to vector<2x32xf32>
    %379 = arith.negf %378 : vector<2x32xf32>
    %380 = math.exp %379 : vector<2x32xf32>
    %cst_92 = arith.constant 1.000000e+00 : f32
    %381 = vector.broadcast %cst_92 : f32 to vector<2x32xf32>
    %382 = arith.addf %381, %380 : vector<2x32xf32>
    %383 = arith.divf %381, %382 : vector<2x32xf32>
    %384 = vector.extract_strided_slice %371 {offsets = [0, 64], sizes = [2, 32], strides = [1, 1]} : vector<2x128xf32> to vector<2x32xf32>
    %385 = math.tanh %384 : vector<2x32xf32>
    %386 = vector.extract_strided_slice %371 {offsets = [0, 96], sizes = [2, 32], strides = [1, 1]} : vector<2x128xf32> to vector<2x32xf32>
    %387 = arith.negf %386 : vector<2x32xf32>
    %388 = math.exp %387 : vector<2x32xf32>
    %cst_93 = arith.constant 1.000000e+00 : f32
    %389 = vector.broadcast %cst_93 : f32 to vector<2x32xf32>
    %390 = arith.addf %389, %388 : vector<2x32xf32>
    %391 = arith.divf %389, %390 : vector<2x32xf32>
    %392 = arith.mulf %383, %336 : vector<2x32xf32>
    %393 = arith.mulf %377, %385 : vector<2x32xf32>
    %394 = arith.addf %392, %393 : vector<2x32xf32>
    %395 = math.tanh %394 : vector<2x32xf32>
    %396 = arith.mulf %391, %395 : vector<2x32xf32>
    %c12_94 = arith.constant 12 : index
    %c0_95 = arith.constant 0 : index
    %397 = vector.load %arg18[%c12_94, %c0_95] : memref<16x32xf32, #tpu.memory_space<vmem>>, vector<2x32xf32>
    tpu.vector_store %arg18[%c12_94, %c0_95], %396 {strides = array<i32>} : memref<16x32xf32, #tpu.memory_space<vmem>>, vector<2x32xf32>,
    %398 = vector.extract_strided_slice %10 {offsets = [2, 0], sizes = [2, 128], strides = [1, 1]} : vector<16x128xf32> to vector<2x128xf32>
    %cst_96 = arith.constant dense<0.000000e+00> : vector<2x128xf32>
    %399 = tpu.matmul %367, %12, %cst_96 {dimension_numbers = #tpu.dot_dimension_numbers<[1], [0], [0], [1], [0, 0, 1, 1], [], []>} : vector<2x32xf32>, vector<32x128xf32>, vector<2x128xf32> -> vector<2x128xf32>
    %400 = arith.addf %398, %399 : vector<2x128xf32>
    %401 = vector.extract_strided_slice %400 {offsets = [0, 0], sizes = [2, 32], strides = [1, 1]} : vector<2x128xf32> to vector<2x32xf32>
    %402 = arith.negf %401 : vector<2x32xf32>
    %403 = math.exp %402 : vector<2x32xf32>
    %cst_97 = arith.constant 1.000000e+00 : f32
    %404 = vector.broadcast %cst_97 : f32 to vector<2x32xf32>
    %405 = arith.addf %404, %403 : vector<2x32xf32>
    %406 = arith.divf %404, %405 : vector<2x32xf32>
    %407 = vector.extract_strided_slice %400 {offsets = [0, 32], sizes = [2, 32], strides = [1, 1]} : vector<2x128xf32> to vector<2x32xf32>
    %408 = arith.negf %407 : vector<2x32xf32>
    %409 = math.exp %408 : vector<2x32xf32>
    %cst_98 = arith.constant 1.000000e+00 : f32
    %410 = vector.broadcast %cst_98 : f32 to vector<2x32xf32>
    %411 = arith.addf %410, %409 : vector<2x32xf32>
    %412 = arith.divf %410, %411 : vector<2x32xf32>
    %413 = vector.extract_strided_slice %400 {offsets = [0, 64], sizes = [2, 32], strides = [1, 1]} : vector<2x128xf32> to vector<2x32xf32>
    %414 = math.tanh %413 : vector<2x32xf32>
    %415 = vector.extract_strided_slice %400 {offsets = [0, 96], sizes = [2, 32], strides = [1, 1]} : vector<2x128xf32> to vector<2x32xf32>
    %416 = arith.negf %415 : vector<2x32xf32>
    %417 = math.exp %416 : vector<2x32xf32>
    %cst_99 = arith.constant 1.000000e+00 : f32
    %418 = vector.broadcast %cst_99 : f32 to vector<2x32xf32>
    %419 = arith.addf %418, %417 : vector<2x32xf32>
    %420 = arith.divf %418, %419 : vector<2x32xf32>
    %421 = arith.mulf %412, %365 : vector<2x32xf32>
    %422 = arith.mulf %406, %414 : vector<2x32xf32>
    %423 = arith.addf %421, %422 : vector<2x32xf32>
    %424 = math.tanh %423 : vector<2x32xf32>
    %425 = arith.mulf %420, %424 : vector<2x32xf32>
    %c2_100 = arith.constant 2 : index
    %c0_101 = arith.constant 0 : index
    %426 = vector.load %arg19[%c2_100, %c0_101] : memref<16x32xf32, #tpu.memory_space<vmem>>, vector<2x32xf32>
    tpu.vector_store %arg19[%c2_100, %c0_101], %425 {strides = array<i32>} : memref<16x32xf32, #tpu.memory_space<vmem>>, vector<2x32xf32>,
    %427 = vector.extract_strided_slice %5 {offsets = [14, 0], sizes = [2, 128], strides = [1, 1]} : vector<16x128xf32> to vector<2x128xf32>
    %cst_102 = arith.constant dense<0.000000e+00> : vector<2x128xf32>
    %428 = tpu.matmul %396, %11, %cst_102 {dimension_numbers = #tpu.dot_dimension_numbers<[1], [0], [0], [1], [0, 0, 1, 1], [], []>} : vector<2x32xf32>, vector<32x128xf32>, vector<2x128xf32> -> vector<2x128xf32>
    %429 = arith.addf %427, %428 : vector<2x128xf32>
    %430 = vector.extract_strided_slice %429 {offsets = [0, 0], sizes = [2, 32], strides = [1, 1]} : vector<2x128xf32> to vector<2x32xf32>
    %431 = arith.negf %430 : vector<2x32xf32>
    %432 = math.exp %431 : vector<2x32xf32>
    %cst_103 = arith.constant 1.000000e+00 : f32
    %433 = vector.broadcast %cst_103 : f32 to vector<2x32xf32>
    %434 = arith.addf %433, %432 : vector<2x32xf32>
    %435 = arith.divf %433, %434 : vector<2x32xf32>
    %436 = vector.extract_strided_slice %429 {offsets = [0, 32], sizes = [2, 32], strides = [1, 1]} : vector<2x128xf32> to vector<2x32xf32>
    %437 = arith.negf %436 : vector<2x32xf32>
    %438 = math.exp %437 : vector<2x32xf32>
    %cst_104 = arith.constant 1.000000e+00 : f32
    %439 = vector.broadcast %cst_104 : f32 to vector<2x32xf32>
    %440 = arith.addf %439, %438 : vector<2x32xf32>
    %441 = arith.divf %439, %440 : vector<2x32xf32>
    %442 = vector.extract_strided_slice %429 {offsets = [0, 64], sizes = [2, 32], strides = [1, 1]} : vector<2x128xf32> to vector<2x32xf32>
    %443 = math.tanh %442 : vector<2x32xf32>
    %444 = vector.extract_strided_slice %429 {offsets = [0, 96], sizes = [2, 32], strides = [1, 1]} : vector<2x128xf32> to vector<2x32xf32>
    %445 = arith.negf %444 : vector<2x32xf32>
    %446 = math.exp %445 : vector<2x32xf32>
    %cst_105 = arith.constant 1.000000e+00 : f32
    %447 = vector.broadcast %cst_105 : f32 to vector<2x32xf32>
    %448 = arith.addf %447, %446 : vector<2x32xf32>
    %449 = arith.divf %447, %448 : vector<2x32xf32>
    %450 = arith.mulf %441, %394 : vector<2x32xf32>
    %451 = arith.mulf %435, %443 : vector<2x32xf32>
    %452 = arith.addf %450, %451 : vector<2x32xf32>
    %453 = math.tanh %452 : vector<2x32xf32>
    %454 = arith.mulf %449, %453 : vector<2x32xf32>
    %c14_106 = arith.constant 14 : index
    %c0_107 = arith.constant 0 : index
    %455 = vector.load %arg18[%c14_106, %c0_107] : memref<16x32xf32, #tpu.memory_space<vmem>>, vector<2x32xf32>
    tpu.vector_store %arg18[%c14_106, %c0_107], %454 {strides = array<i32>} : memref<16x32xf32, #tpu.memory_space<vmem>>, vector<2x32xf32>,
    %456 = vector.extract_strided_slice %10 {offsets = [0, 0], sizes = [2, 128], strides = [1, 1]} : vector<16x128xf32> to vector<2x128xf32>
    %cst_108 = arith.constant dense<0.000000e+00> : vector<2x128xf32>
    %457 = tpu.matmul %425, %12, %cst_108 {dimension_numbers = #tpu.dot_dimension_numbers<[1], [0], [0], [1], [0, 0, 1, 1], [], []>} : vector<2x32xf32>, vector<32x128xf32>, vector<2x128xf32> -> vector<2x128xf32>
    %458 = arith.addf %456, %457 : vector<2x128xf32>
    %459 = vector.extract_strided_slice %458 {offsets = [0, 0], sizes = [2, 32], strides = [1, 1]} : vector<2x128xf32> to vector<2x32xf32>
    %460 = arith.negf %459 : vector<2x32xf32>
    %461 = math.exp %460 : vector<2x32xf32>
    %cst_109 = arith.constant 1.000000e+00 : f32
    %462 = vector.broadcast %cst_109 : f32 to vector<2x32xf32>
    %463 = arith.addf %462, %461 : vector<2x32xf32>
    %464 = arith.divf %462, %463 : vector<2x32xf32>
    %465 = vector.extract_strided_slice %458 {offsets = [0, 32], sizes = [2, 32], strides = [1, 1]} : vector<2x128xf32> to vector<2x32xf32>
    %466 = arith.negf %465 : vector<2x32xf32>
    %467 = math.exp %466 : vector<2x32xf32>
    %cst_110 = arith.constant 1.000000e+00 : f32
    %468 = vector.broadcast %cst_110 : f32 to vector<2x32xf32>
    %469 = arith.addf %468, %467 : vector<2x32xf32>
    %470 = arith.divf %468, %469 : vector<2x32xf32>
    %471 = vector.extract_strided_slice %458 {offsets = [0, 64], sizes = [2, 32], strides = [1, 1]} : vector<2x128xf32> to vector<2x32xf32>
    %472 = math.tanh %471 : vector<2x32xf32>
    %473 = vector.extract_strided_slice %458 {offsets = [0, 96], sizes = [2, 32], strides = [1, 1]} : vector<2x128xf32> to vector<2x32xf32>
    %474 = arith.negf %473 : vector<2x32xf32>
    %475 = math.exp %474 : vector<2x32xf32>
    %cst_111 = arith.constant 1.000000e+00 : f32
    %476 = vector.broadcast %cst_111 : f32 to vector<2x32xf32>
    %477 = arith.addf %476, %475 : vector<2x32xf32>
    %478 = arith.divf %476, %477 : vector<2x32xf32>
    %479 = arith.mulf %470, %423 : vector<2x32xf32>
    %480 = arith.mulf %464, %472 : vector<2x32xf32>
    %481 = arith.addf %479, %480 : vector<2x32xf32>
    %482 = math.tanh %481 : vector<2x32xf32>
    %483 = arith.mulf %478, %482 : vector<2x32xf32>
    %c0_112 = arith.constant 0 : index
    %c0_113 = arith.constant 0 : index
    %484 = vector.load %arg19[%c0_112, %c0_113] : memref<16x32xf32, #tpu.memory_space<vmem>>, vector<2x32xf32>
    tpu.vector_store %arg19[%c0_112, %c0_113], %483 {strides = array<i32>} : memref<16x32xf32, #tpu.memory_space<vmem>>, vector<2x32xf32>,
    %c0_114 = arith.constant 0 : index
    %c0_115 = arith.constant 0 : index
    %485 = vector.load %arg18[%c0_114, %c0_115] : memref<16x32xf32, #tpu.memory_space<vmem>>, vector<16x32xf32>
    %c0_116 = arith.constant 0 : index
    %c0_117 = arith.constant 0 : index
    %486 = vector.load %arg19[%c0_116, %c0_117] : memref<16x32xf32, #tpu.memory_space<vmem>>, vector<16x32xf32>
    %c0_118 = arith.constant 0 : index
    %c0_119 = arith.constant 0 : index
    %487 = vector.load %arg9[%c0_118, %c0_119] : memref<64x128xf32, #tpu.memory_space<vmem>>, vector<32x128xf32>
    %cst_120 = arith.constant dense<0.000000e+00> : vector<16x128xf32>
    %488 = tpu.matmul %485, %487, %cst_120 {dimension_numbers = #tpu.dot_dimension_numbers<[1], [0], [0], [1], [0, 0, 1, 1], [], []>} : vector<16x32xf32>, vector<32x128xf32>, vector<16x128xf32> -> vector<16x128xf32>
    %c32 = arith.constant 32 : index
    %c0_121 = arith.constant 0 : index
    %489 = vector.load %arg9[%c32, %c0_121] : memref<64x128xf32, #tpu.memory_space<vmem>>, vector<32x128xf32>
    %cst_122 = arith.constant dense<0.000000e+00> : vector<16x128xf32>
    %490 = tpu.matmul %486, %489, %cst_122 {dimension_numbers = #tpu.dot_dimension_numbers<[1], [0], [0], [1], [0, 0, 1, 1], [], []>} : vector<16x32xf32>, vector<32x128xf32>, vector<16x128xf32> -> vector<16x128xf32>
    %491 = arith.addf %488, %490 : vector<16x128xf32>
    %c0_123 = arith.constant 0 : index
    %c0_124 = arith.constant 0 : index
    %492 = vector.load %arg11[%c0_123, %c0_124] : memref<1x128xf32, #tpu.memory_space<vmem>>, vector<1x128xf32>
    %493 = vector.broadcast %492 : vector<1x128xf32> to vector<16x128xf32>
    %494 = arith.addf %491, %493 : vector<16x128xf32>
    %c0_125 = arith.constant 0 : index
    %c0_126 = arith.constant 0 : index
    %495 = vector.load %arg12[%c0_125, %c0_126] : memref<64x128xf32, #tpu.memory_space<vmem>>, vector<32x128xf32>
    %cst_127 = arith.constant dense<0.000000e+00> : vector<16x128xf32>
    %496 = tpu.matmul %485, %495, %cst_127 {dimension_numbers = #tpu.dot_dimension_numbers<[1], [0], [0], [1], [0, 0, 1, 1], [], []>} : vector<16x32xf32>, vector<32x128xf32>, vector<16x128xf32> -> vector<16x128xf32>
    %c32_128 = arith.constant 32 : index
    %c0_129 = arith.constant 0 : index
    %497 = vector.load %arg12[%c32_128, %c0_129] : memref<64x128xf32, #tpu.memory_space<vmem>>, vector<32x128xf32>
    %cst_130 = arith.constant dense<0.000000e+00> : vector<16x128xf32>
    %498 = tpu.matmul %486, %497, %cst_130 {dimension_numbers = #tpu.dot_dimension_numbers<[1], [0], [0], [1], [0, 0, 1, 1], [], []>} : vector<16x32xf32>, vector<32x128xf32>, vector<16x128xf32> -> vector<16x128xf32>
    %499 = arith.addf %496, %498 : vector<16x128xf32>
    %c0_131 = arith.constant 0 : index
    %c0_132 = arith.constant 0 : index
    %500 = vector.load %arg14[%c0_131, %c0_132] : memref<1x128xf32, #tpu.memory_space<vmem>>, vector<1x128xf32>
    %501 = vector.broadcast %500 : vector<1x128xf32> to vector<16x128xf32>
    %502 = arith.addf %499, %501 : vector<16x128xf32>
    %c0_133 = arith.constant 0 : index
    %c0_134 = arith.constant 0 : index
    %503 = vector.load %arg10[%c0_133, %c0_134] : memref<32x128xf32, #tpu.memory_space<vmem>>, vector<32x128xf32>
    %c0_135 = arith.constant 0 : index
    %c0_136 = arith.constant 0 : index
    %504 = vector.load %arg13[%c0_135, %c0_136] : memref<32x128xf32, #tpu.memory_space<vmem>>, vector<32x128xf32>
    %c2_137 = arith.constant 2 : index
    %c0_138 = arith.constant 0 : index
    %c0_139 = arith.constant 0 : index
    %505 = vector.load %arg1[%c2_137, %c0_138, %c0_139] : memref<4x2x32xf32, #tpu.memory_space<vmem>>, vector<1x2x32xf32>
    %506 = vector.shape_cast %505 : vector<1x2x32xf32> to vector<2x32xf32>
    %c2_140 = arith.constant 2 : index
    %c0_141 = arith.constant 0 : index
    %c0_142 = arith.constant 0 : index
    %507 = vector.load %arg2[%c2_140, %c0_141, %c0_142] : memref<4x2x32xf32, #tpu.memory_space<vmem>>, vector<1x2x32xf32>
    %508 = vector.shape_cast %507 : vector<1x2x32xf32> to vector<2x32xf32>
    %c3 = arith.constant 3 : index
    %c0_143 = arith.constant 0 : index
    %c0_144 = arith.constant 0 : index
    %509 = vector.load %arg1[%c3, %c0_143, %c0_144] : memref<4x2x32xf32, #tpu.memory_space<vmem>>, vector<1x2x32xf32>
    %510 = vector.shape_cast %509 : vector<1x2x32xf32> to vector<2x32xf32>
    %c3_145 = arith.constant 3 : index
    %c0_146 = arith.constant 0 : index
    %c0_147 = arith.constant 0 : index
    %511 = vector.load %arg2[%c3_145, %c0_146, %c0_147] : memref<4x2x32xf32, #tpu.memory_space<vmem>>, vector<1x2x32xf32>
    %512 = vector.shape_cast %511 : vector<1x2x32xf32> to vector<2x32xf32>
    %513 = vector.extract_strided_slice %494 {offsets = [0, 0], sizes = [2, 128], strides = [1, 1]} : vector<16x128xf32> to vector<2x128xf32>
    %cst_148 = arith.constant dense<0.000000e+00> : vector<2x128xf32>
    %514 = tpu.matmul %506, %503, %cst_148 {dimension_numbers = #tpu.dot_dimension_numbers<[1], [0], [0], [1], [0, 0, 1, 1], [], []>} : vector<2x32xf32>, vector<32x128xf32>, vector<2x128xf32> -> vector<2x128xf32>
    %515 = arith.addf %513, %514 : vector<2x128xf32>
    %516 = vector.extract_strided_slice %515 {offsets = [0, 0], sizes = [2, 32], strides = [1, 1]} : vector<2x128xf32> to vector<2x32xf32>
    %517 = arith.negf %516 : vector<2x32xf32>
    %518 = math.exp %517 : vector<2x32xf32>
    %cst_149 = arith.constant 1.000000e+00 : f32
    %519 = vector.broadcast %cst_149 : f32 to vector<2x32xf32>
    %520 = arith.addf %519, %518 : vector<2x32xf32>
    %521 = arith.divf %519, %520 : vector<2x32xf32>
    %522 = vector.extract_strided_slice %515 {offsets = [0, 32], sizes = [2, 32], strides = [1, 1]} : vector<2x128xf32> to vector<2x32xf32>
    %523 = arith.negf %522 : vector<2x32xf32>
    %524 = math.exp %523 : vector<2x32xf32>
    %cst_150 = arith.constant 1.000000e+00 : f32
    %525 = vector.broadcast %cst_150 : f32 to vector<2x32xf32>
    %526 = arith.addf %525, %524 : vector<2x32xf32>
    %527 = arith.divf %525, %526 : vector<2x32xf32>
    %528 = vector.extract_strided_slice %515 {offsets = [0, 64], sizes = [2, 32], strides = [1, 1]} : vector<2x128xf32> to vector<2x32xf32>
    %529 = math.tanh %528 : vector<2x32xf32>
    %530 = vector.extract_strided_slice %515 {offsets = [0, 96], sizes = [2, 32], strides = [1, 1]} : vector<2x128xf32> to vector<2x32xf32>
    %531 = arith.negf %530 : vector<2x32xf32>
    %532 = math.exp %531 : vector<2x32xf32>
    %cst_151 = arith.constant 1.000000e+00 : f32
    %533 = vector.broadcast %cst_151 : f32 to vector<2x32xf32>
    %534 = arith.addf %533, %532 : vector<2x32xf32>
    %535 = arith.divf %533, %534 : vector<2x32xf32>
    %536 = arith.mulf %527, %508 : vector<2x32xf32>
    %537 = arith.mulf %521, %529 : vector<2x32xf32>
    %538 = arith.addf %536, %537 : vector<2x32xf32>
    %539 = math.tanh %538 : vector<2x32xf32>
    %540 = arith.mulf %535, %539 : vector<2x32xf32>
    %c0_152 = arith.constant 0 : index
    %c0_153 = arith.constant 0 : index
    %541 = vector.load %arg18[%c0_152, %c0_153] : memref<16x32xf32, #tpu.memory_space<vmem>>, vector<2x32xf32>
    tpu.vector_store %arg18[%c0_152, %c0_153], %540 {strides = array<i32>} : memref<16x32xf32, #tpu.memory_space<vmem>>, vector<2x32xf32>,
    %542 = vector.extract_strided_slice %502 {offsets = [14, 0], sizes = [2, 128], strides = [1, 1]} : vector<16x128xf32> to vector<2x128xf32>
    %cst_154 = arith.constant dense<0.000000e+00> : vector<2x128xf32>
    %543 = tpu.matmul %510, %504, %cst_154 {dimension_numbers = #tpu.dot_dimension_numbers<[1], [0], [0], [1], [0, 0, 1, 1], [], []>} : vector<2x32xf32>, vector<32x128xf32>, vector<2x128xf32> -> vector<2x128xf32>
    %544 = arith.addf %542, %543 : vector<2x128xf32>
    %545 = vector.extract_strided_slice %544 {offsets = [0, 0], sizes = [2, 32], strides = [1, 1]} : vector<2x128xf32> to vector<2x32xf32>
    %546 = arith.negf %545 : vector<2x32xf32>
    %547 = math.exp %546 : vector<2x32xf32>
    %cst_155 = arith.constant 1.000000e+00 : f32
    %548 = vector.broadcast %cst_155 : f32 to vector<2x32xf32>
    %549 = arith.addf %548, %547 : vector<2x32xf32>
    %550 = arith.divf %548, %549 : vector<2x32xf32>
    %551 = vector.extract_strided_slice %544 {offsets = [0, 32], sizes = [2, 32], strides = [1, 1]} : vector<2x128xf32> to vector<2x32xf32>
    %552 = arith.negf %551 : vector<2x32xf32>
    %553 = math.exp %552 : vector<2x32xf32>
    %cst_156 = arith.constant 1.000000e+00 : f32
    %554 = vector.broadcast %cst_156 : f32 to vector<2x32xf32>
    %555 = arith.addf %554, %553 : vector<2x32xf32>
    %556 = arith.divf %554, %555 : vector<2x32xf32>
    %557 = vector.extract_strided_slice %544 {offsets = [0, 64], sizes = [2, 32], strides = [1, 1]} : vector<2x128xf32> to vector<2x32xf32>
    %558 = math.tanh %557 : vector<2x32xf32>
    %559 = vector.extract_strided_slice %544 {offsets = [0, 96], sizes = [2, 32], strides = [1, 1]} : vector<2x128xf32> to vector<2x32xf32>
    %560 = arith.negf %559 : vector<2x32xf32>
    %561 = math.exp %560 : vector<2x32xf32>
    %cst_157 = arith.constant 1.000000e+00 : f32
    %562 = vector.broadcast %cst_157 : f32 to vector<2x32xf32>
    %563 = arith.addf %562, %561 : vector<2x32xf32>
    %564 = arith.divf %562, %563 : vector<2x32xf32>
    %565 = arith.mulf %556, %512 : vector<2x32xf32>
    %566 = arith.mulf %550, %558 : vector<2x32xf32>
    %567 = arith.addf %565, %566 : vector<2x32xf32>
    %568 = math.tanh %567 : vector<2x32xf32>
    %569 = arith.mulf %564, %568 : vector<2x32xf32>
    %c14_158 = arith.constant 14 : index
    %c0_159 = arith.constant 0 : index
    %570 = vector.load %arg19[%c14_158, %c0_159] : memref<16x32xf32, #tpu.memory_space<vmem>>, vector<2x32xf32>
    tpu.vector_store %arg19[%c14_158, %c0_159], %569 {strides = array<i32>} : memref<16x32xf32, #tpu.memory_space<vmem>>, vector<2x32xf32>,
    %571 = vector.extract_strided_slice %494 {offsets = [2, 0], sizes = [2, 128], strides = [1, 1]} : vector<16x128xf32> to vector<2x128xf32>
    %cst_160 = arith.constant dense<0.000000e+00> : vector<2x128xf32>
    %572 = tpu.matmul %540, %503, %cst_160 {dimension_numbers = #tpu.dot_dimension_numbers<[1], [0], [0], [1], [0, 0, 1, 1], [], []>} : vector<2x32xf32>, vector<32x128xf32>, vector<2x128xf32> -> vector<2x128xf32>
    %573 = arith.addf %571, %572 : vector<2x128xf32>
    %574 = vector.extract_strided_slice %573 {offsets = [0, 0], sizes = [2, 32], strides = [1, 1]} : vector<2x128xf32> to vector<2x32xf32>
    %575 = arith.negf %574 : vector<2x32xf32>
    %576 = math.exp %575 : vector<2x32xf32>
    %cst_161 = arith.constant 1.000000e+00 : f32
    %577 = vector.broadcast %cst_161 : f32 to vector<2x32xf32>
    %578 = arith.addf %577, %576 : vector<2x32xf32>
    %579 = arith.divf %577, %578 : vector<2x32xf32>
    %580 = vector.extract_strided_slice %573 {offsets = [0, 32], sizes = [2, 32], strides = [1, 1]} : vector<2x128xf32> to vector<2x32xf32>
    %581 = arith.negf %580 : vector<2x32xf32>
    %582 = math.exp %581 : vector<2x32xf32>
    %cst_162 = arith.constant 1.000000e+00 : f32
    %583 = vector.broadcast %cst_162 : f32 to vector<2x32xf32>
    %584 = arith.addf %583, %582 : vector<2x32xf32>
    %585 = arith.divf %583, %584 : vector<2x32xf32>
    %586 = vector.extract_strided_slice %573 {offsets = [0, 64], sizes = [2, 32], strides = [1, 1]} : vector<2x128xf32> to vector<2x32xf32>
    %587 = math.tanh %586 : vector<2x32xf32>
    %588 = vector.extract_strided_slice %573 {offsets = [0, 96], sizes = [2, 32], strides = [1, 1]} : vector<2x128xf32> to vector<2x32xf32>
    %589 = arith.negf %588 : vector<2x32xf32>
    %590 = math.exp %589 : vector<2x32xf32>
    %cst_163 = arith.constant 1.000000e+00 : f32
    %591 = vector.broadcast %cst_163 : f32 to vector<2x32xf32>
    %592 = arith.addf %591, %590 : vector<2x32xf32>
    %593 = arith.divf %591, %592 : vector<2x32xf32>
    %594 = arith.mulf %585, %538 : vector<2x32xf32>
    %595 = arith.mulf %579, %587 : vector<2x32xf32>
    %596 = arith.addf %594, %595 : vector<2x32xf32>
    %597 = math.tanh %596 : vector<2x32xf32>
    %598 = arith.mulf %593, %597 : vector<2x32xf32>
    %c2_164 = arith.constant 2 : index
    %c0_165 = arith.constant 0 : index
    %599 = vector.load %arg18[%c2_164, %c0_165] : memref<16x32xf32, #tpu.memory_space<vmem>>, vector<2x32xf32>
    tpu.vector_store %arg18[%c2_164, %c0_165], %598 {strides = array<i32>} : memref<16x32xf32, #tpu.memory_space<vmem>>, vector<2x32xf32>,
    %600 = vector.extract_strided_slice %502 {offsets = [12, 0], sizes = [2, 128], strides = [1, 1]} : vector<16x128xf32> to vector<2x128xf32>
    %cst_166 = arith.constant dense<0.000000e+00> : vector<2x128xf32>
    %601 = tpu.matmul %569, %504, %cst_166 {dimension_numbers = #tpu.dot_dimension_numbers<[1], [0], [0], [1], [0, 0, 1, 1], [], []>} : vector<2x32xf32>, vector<32x128xf32>, vector<2x128xf32> -> vector<2x128xf32>
    %602 = arith.addf %600, %601 : vector<2x128xf32>
    %603 = vector.extract_strided_slice %602 {offsets = [0, 0], sizes = [2, 32], strides = [1, 1]} : vector<2x128xf32> to vector<2x32xf32>
    %604 = arith.negf %603 : vector<2x32xf32>
    %605 = math.exp %604 : vector<2x32xf32>
    %cst_167 = arith.constant 1.000000e+00 : f32
    %606 = vector.broadcast %cst_167 : f32 to vector<2x32xf32>
    %607 = arith.addf %606, %605 : vector<2x32xf32>
    %608 = arith.divf %606, %607 : vector<2x32xf32>
    %609 = vector.extract_strided_slice %602 {offsets = [0, 32], sizes = [2, 32], strides = [1, 1]} : vector<2x128xf32> to vector<2x32xf32>
    %610 = arith.negf %609 : vector<2x32xf32>
    %611 = math.exp %610 : vector<2x32xf32>
    %cst_168 = arith.constant 1.000000e+00 : f32
    %612 = vector.broadcast %cst_168 : f32 to vector<2x32xf32>
    %613 = arith.addf %612, %611 : vector<2x32xf32>
    %614 = arith.divf %612, %613 : vector<2x32xf32>
    %615 = vector.extract_strided_slice %602 {offsets = [0, 64], sizes = [2, 32], strides = [1, 1]} : vector<2x128xf32> to vector<2x32xf32>
    %616 = math.tanh %615 : vector<2x32xf32>
    %617 = vector.extract_strided_slice %602 {offsets = [0, 96], sizes = [2, 32], strides = [1, 1]} : vector<2x128xf32> to vector<2x32xf32>
    %618 = arith.negf %617 : vector<2x32xf32>
    %619 = math.exp %618 : vector<2x32xf32>
    %cst_169 = arith.constant 1.000000e+00 : f32
    %620 = vector.broadcast %cst_169 : f32 to vector<2x32xf32>
    %621 = arith.addf %620, %619 : vector<2x32xf32>
    %622 = arith.divf %620, %621 : vector<2x32xf32>
    %623 = arith.mulf %614, %567 : vector<2x32xf32>
    %624 = arith.mulf %608, %616 : vector<2x32xf32>
    %625 = arith.addf %623, %624 : vector<2x32xf32>
    %626 = math.tanh %625 : vector<2x32xf32>
    %627 = arith.mulf %622, %626 : vector<2x32xf32>
    %c12_170 = arith.constant 12 : index
    %c0_171 = arith.constant 0 : index
    %628 = vector.load %arg19[%c12_170, %c0_171] : memref<16x32xf32, #tpu.memory_space<vmem>>, vector<2x32xf32>
    tpu.vector_store %arg19[%c12_170, %c0_171], %627 {strides = array<i32>} : memref<16x32xf32, #tpu.memory_space<vmem>>, vector<2x32xf32>,
    %629 = vector.extract_strided_slice %494 {offsets = [4, 0], sizes = [2, 128], strides = [1, 1]} : vector<16x128xf32> to vector<2x128xf32>
    %cst_172 = arith.constant dense<0.000000e+00> : vector<2x128xf32>
    %630 = tpu.matmul %598, %503, %cst_172 {dimension_numbers = #tpu.dot_dimension_numbers<[1], [0], [0], [1], [0, 0, 1, 1], [], []>} : vector<2x32xf32>, vector<32x128xf32>, vector<2x128xf32> -> vector<2x128xf32>
    %631 = arith.addf %629, %630 : vector<2x128xf32>
    %632 = vector.extract_strided_slice %631 {offsets = [0, 0], sizes = [2, 32], strides = [1, 1]} : vector<2x128xf32> to vector<2x32xf32>
    %633 = arith.negf %632 : vector<2x32xf32>
    %634 = math.exp %633 : vector<2x32xf32>
    %cst_173 = arith.constant 1.000000e+00 : f32
    %635 = vector.broadcast %cst_173 : f32 to vector<2x32xf32>
    %636 = arith.addf %635, %634 : vector<2x32xf32>
    %637 = arith.divf %635, %636 : vector<2x32xf32>
    %638 = vector.extract_strided_slice %631 {offsets = [0, 32], sizes = [2, 32], strides = [1, 1]} : vector<2x128xf32> to vector<2x32xf32>
    %639 = arith.negf %638 : vector<2x32xf32>
    %640 = math.exp %639 : vector<2x32xf32>
    %cst_174 = arith.constant 1.000000e+00 : f32
    %641 = vector.broadcast %cst_174 : f32 to vector<2x32xf32>
    %642 = arith.addf %641, %640 : vector<2x32xf32>
    %643 = arith.divf %641, %642 : vector<2x32xf32>
    %644 = vector.extract_strided_slice %631 {offsets = [0, 64], sizes = [2, 32], strides = [1, 1]} : vector<2x128xf32> to vector<2x32xf32>
    %645 = math.tanh %644 : vector<2x32xf32>
    %646 = vector.extract_strided_slice %631 {offsets = [0, 96], sizes = [2, 32], strides = [1, 1]} : vector<2x128xf32> to vector<2x32xf32>
    %647 = arith.negf %646 : vector<2x32xf32>
    %648 = math.exp %647 : vector<2x32xf32>
    %cst_175 = arith.constant 1.000000e+00 : f32
    %649 = vector.broadcast %cst_175 : f32 to vector<2x32xf32>
    %650 = arith.addf %649, %648 : vector<2x32xf32>
    %651 = arith.divf %649, %650 : vector<2x32xf32>
    %652 = arith.mulf %643, %596 : vector<2x32xf32>
    %653 = arith.mulf %637, %645 : vector<2x32xf32>
    %654 = arith.addf %652, %653 : vector<2x32xf32>
    %655 = math.tanh %654 : vector<2x32xf32>
    %656 = arith.mulf %651, %655 : vector<2x32xf32>
    %c4_176 = arith.constant 4 : index
    %c0_177 = arith.constant 0 : index
    %657 = vector.load %arg18[%c4_176, %c0_177] : memref<16x32xf32, #tpu.memory_space<vmem>>, vector<2x32xf32>
    tpu.vector_store %arg18[%c4_176, %c0_177], %656 {strides = array<i32>} : memref<16x32xf32, #tpu.memory_space<vmem>>, vector<2x32xf32>,
    %658 = vector.extract_strided_slice %502 {offsets = [10, 0], sizes = [2, 128], strides = [1, 1]} : vector<16x128xf32> to vector<2x128xf32>
    %cst_178 = arith.constant dense<0.000000e+00> : vector<2x128xf32>
    %659 = tpu.matmul %627, %504, %cst_178 {dimension_numbers = #tpu.dot_dimension_numbers<[1], [0], [0], [1], [0, 0, 1, 1], [], []>} : vector<2x32xf32>, vector<32x128xf32>, vector<2x128xf32> -> vector<2x128xf32>
    %660 = arith.addf %658, %659 : vector<2x128xf32>
    %661 = vector.extract_strided_slice %660 {offsets = [0, 0], sizes = [2, 32], strides = [1, 1]} : vector<2x128xf32> to vector<2x32xf32>
    %662 = arith.negf %661 : vector<2x32xf32>
    %663 = math.exp %662 : vector<2x32xf32>
    %cst_179 = arith.constant 1.000000e+00 : f32
    %664 = vector.broadcast %cst_179 : f32 to vector<2x32xf32>
    %665 = arith.addf %664, %663 : vector<2x32xf32>
    %666 = arith.divf %664, %665 : vector<2x32xf32>
    %667 = vector.extract_strided_slice %660 {offsets = [0, 32], sizes = [2, 32], strides = [1, 1]} : vector<2x128xf32> to vector<2x32xf32>
    %668 = arith.negf %667 : vector<2x32xf32>
    %669 = math.exp %668 : vector<2x32xf32>
    %cst_180 = arith.constant 1.000000e+00 : f32
    %670 = vector.broadcast %cst_180 : f32 to vector<2x32xf32>
    %671 = arith.addf %670, %669 : vector<2x32xf32>
    %672 = arith.divf %670, %671 : vector<2x32xf32>
    %673 = vector.extract_strided_slice %660 {offsets = [0, 64], sizes = [2, 32], strides = [1, 1]} : vector<2x128xf32> to vector<2x32xf32>
    %674 = math.tanh %673 : vector<2x32xf32>
    %675 = vector.extract_strided_slice %660 {offsets = [0, 96], sizes = [2, 32], strides = [1, 1]} : vector<2x128xf32> to vector<2x32xf32>
    %676 = arith.negf %675 : vector<2x32xf32>
    %677 = math.exp %676 : vector<2x32xf32>
    %cst_181 = arith.constant 1.000000e+00 : f32
    %678 = vector.broadcast %cst_181 : f32 to vector<2x32xf32>
    %679 = arith.addf %678, %677 : vector<2x32xf32>
    %680 = arith.divf %678, %679 : vector<2x32xf32>
    %681 = arith.mulf %672, %625 : vector<2x32xf32>
    %682 = arith.mulf %666, %674 : vector<2x32xf32>
    %683 = arith.addf %681, %682 : vector<2x32xf32>
    %684 = math.tanh %683 : vector<2x32xf32>
    %685 = arith.mulf %680, %684 : vector<2x32xf32>
    %c10_182 = arith.constant 10 : index
    %c0_183 = arith.constant 0 : index
    %686 = vector.load %arg19[%c10_182, %c0_183] : memref<16x32xf32, #tpu.memory_space<vmem>>, vector<2x32xf32>
    tpu.vector_store %arg19[%c10_182, %c0_183], %685 {strides = array<i32>} : memref<16x32xf32, #tpu.memory_space<vmem>>, vector<2x32xf32>,
    %687 = vector.extract_strided_slice %494 {offsets = [6, 0], sizes = [2, 128], strides = [1, 1]} : vector<16x128xf32> to vector<2x128xf32>
    %cst_184 = arith.constant dense<0.000000e+00> : vector<2x128xf32>
    %688 = tpu.matmul %656, %503, %cst_184 {dimension_numbers = #tpu.dot_dimension_numbers<[1], [0], [0], [1], [0, 0, 1, 1], [], []>} : vector<2x32xf32>, vector<32x128xf32>, vector<2x128xf32> -> vector<2x128xf32>
    %689 = arith.addf %687, %688 : vector<2x128xf32>
    %690 = vector.extract_strided_slice %689 {offsets = [0, 0], sizes = [2, 32], strides = [1, 1]} : vector<2x128xf32> to vector<2x32xf32>
    %691 = arith.negf %690 : vector<2x32xf32>
    %692 = math.exp %691 : vector<2x32xf32>
    %cst_185 = arith.constant 1.000000e+00 : f32
    %693 = vector.broadcast %cst_185 : f32 to vector<2x32xf32>
    %694 = arith.addf %693, %692 : vector<2x32xf32>
    %695 = arith.divf %693, %694 : vector<2x32xf32>
    %696 = vector.extract_strided_slice %689 {offsets = [0, 32], sizes = [2, 32], strides = [1, 1]} : vector<2x128xf32> to vector<2x32xf32>
    %697 = arith.negf %696 : vector<2x32xf32>
    %698 = math.exp %697 : vector<2x32xf32>
    %cst_186 = arith.constant 1.000000e+00 : f32
    %699 = vector.broadcast %cst_186 : f32 to vector<2x32xf32>
    %700 = arith.addf %699, %698 : vector<2x32xf32>
    %701 = arith.divf %699, %700 : vector<2x32xf32>
    %702 = vector.extract_strided_slice %689 {offsets = [0, 64], sizes = [2, 32], strides = [1, 1]} : vector<2x128xf32> to vector<2x32xf32>
    %703 = math.tanh %702 : vector<2x32xf32>
    %704 = vector.extract_strided_slice %689 {offsets = [0, 96], sizes = [2, 32], strides = [1, 1]} : vector<2x128xf32> to vector<2x32xf32>
    %705 = arith.negf %704 : vector<2x32xf32>
    %706 = math.exp %705 : vector<2x32xf32>
    %cst_187 = arith.constant 1.000000e+00 : f32
    %707 = vector.broadcast %cst_187 : f32 to vector<2x32xf32>
    %708 = arith.addf %707, %706 : vector<2x32xf32>
    %709 = arith.divf %707, %708 : vector<2x32xf32>
    %710 = arith.mulf %701, %654 : vector<2x32xf32>
    %711 = arith.mulf %695, %703 : vector<2x32xf32>
    %712 = arith.addf %710, %711 : vector<2x32xf32>
    %713 = math.tanh %712 : vector<2x32xf32>
    %714 = arith.mulf %709, %713 : vector<2x32xf32>
    %c6_188 = arith.constant 6 : index
    %c0_189 = arith.constant 0 : index
    %715 = vector.load %arg18[%c6_188, %c0_189] : memref<16x32xf32, #tpu.memory_space<vmem>>, vector<2x32xf32>
    tpu.vector_store %arg18[%c6_188, %c0_189], %714 {strides = array<i32>} : memref<16x32xf32, #tpu.memory_space<vmem>>, vector<2x32xf32>,
    %716 = vector.extract_strided_slice %502 {offsets = [8, 0], sizes = [2, 128], strides = [1, 1]} : vector<16x128xf32> to vector<2x128xf32>
    %cst_190 = arith.constant dense<0.000000e+00> : vector<2x128xf32>
    %717 = tpu.matmul %685, %504, %cst_190 {dimension_numbers = #tpu.dot_dimension_numbers<[1], [0], [0], [1], [0, 0, 1, 1], [], []>} : vector<2x32xf32>, vector<32x128xf32>, vector<2x128xf32> -> vector<2x128xf32>
    %718 = arith.addf %716, %717 : vector<2x128xf32>
    %719 = vector.extract_strided_slice %718 {offsets = [0, 0], sizes = [2, 32], strides = [1, 1]} : vector<2x128xf32> to vector<2x32xf32>
    %720 = arith.negf %719 : vector<2x32xf32>
    %721 = math.exp %720 : vector<2x32xf32>
    %cst_191 = arith.constant 1.000000e+00 : f32
    %722 = vector.broadcast %cst_191 : f32 to vector<2x32xf32>
    %723 = arith.addf %722, %721 : vector<2x32xf32>
    %724 = arith.divf %722, %723 : vector<2x32xf32>
    %725 = vector.extract_strided_slice %718 {offsets = [0, 32], sizes = [2, 32], strides = [1, 1]} : vector<2x128xf32> to vector<2x32xf32>
    %726 = arith.negf %725 : vector<2x32xf32>
    %727 = math.exp %726 : vector<2x32xf32>
    %cst_192 = arith.constant 1.000000e+00 : f32
    %728 = vector.broadcast %cst_192 : f32 to vector<2x32xf32>
    %729 = arith.addf %728, %727 : vector<2x32xf32>
    %730 = arith.divf %728, %729 : vector<2x32xf32>
    %731 = vector.extract_strided_slice %718 {offsets = [0, 64], sizes = [2, 32], strides = [1, 1]} : vector<2x128xf32> to vector<2x32xf32>
    %732 = math.tanh %731 : vector<2x32xf32>
    %733 = vector.extract_strided_slice %718 {offsets = [0, 96], sizes = [2, 32], strides = [1, 1]} : vector<2x128xf32> to vector<2x32xf32>
    %734 = arith.negf %733 : vector<2x32xf32>
    %735 = math.exp %734 : vector<2x32xf32>
    %cst_193 = arith.constant 1.000000e+00 : f32
    %736 = vector.broadcast %cst_193 : f32 to vector<2x32xf32>
    %737 = arith.addf %736, %735 : vector<2x32xf32>
    %738 = arith.divf %736, %737 : vector<2x32xf32>
    %739 = arith.mulf %730, %683 : vector<2x32xf32>
    %740 = arith.mulf %724, %732 : vector<2x32xf32>
    %741 = arith.addf %739, %740 : vector<2x32xf32>
    %742 = math.tanh %741 : vector<2x32xf32>
    %743 = arith.mulf %738, %742 : vector<2x32xf32>
    %c8_194 = arith.constant 8 : index
    %c0_195 = arith.constant 0 : index
    %744 = vector.load %arg19[%c8_194, %c0_195] : memref<16x32xf32, #tpu.memory_space<vmem>>, vector<2x32xf32>
    tpu.vector_store %arg19[%c8_194, %c0_195], %743 {strides = array<i32>} : memref<16x32xf32, #tpu.memory_space<vmem>>, vector<2x32xf32>,
    %745 = vector.extract_strided_slice %494 {offsets = [8, 0], sizes = [2, 128], strides = [1, 1]} : vector<16x128xf32> to vector<2x128xf32>
    %cst_196 = arith.constant dense<0.000000e+00> : vector<2x128xf32>
    %746 = tpu.matmul %714, %503, %cst_196 {dimension_numbers = #tpu.dot_dimension_numbers<[1], [0], [0], [1], [0, 0, 1, 1], [], []>} : vector<2x32xf32>, vector<32x128xf32>, vector<2x128xf32> -> vector<2x128xf32>
    %747 = arith.addf %745, %746 : vector<2x128xf32>
    %748 = vector.extract_strided_slice %747 {offsets = [0, 0], sizes = [2, 32], strides = [1, 1]} : vector<2x128xf32> to vector<2x32xf32>
    %749 = arith.negf %748 : vector<2x32xf32>
    %750 = math.exp %749 : vector<2x32xf32>
    %cst_197 = arith.constant 1.000000e+00 : f32
    %751 = vector.broadcast %cst_197 : f32 to vector<2x32xf32>
    %752 = arith.addf %751, %750 : vector<2x32xf32>
    %753 = arith.divf %751, %752 : vector<2x32xf32>
    %754 = vector.extract_strided_slice %747 {offsets = [0, 32], sizes = [2, 32], strides = [1, 1]} : vector<2x128xf32> to vector<2x32xf32>
    %755 = arith.negf %754 : vector<2x32xf32>
    %756 = math.exp %755 : vector<2x32xf32>
    %cst_198 = arith.constant 1.000000e+00 : f32
    %757 = vector.broadcast %cst_198 : f32 to vector<2x32xf32>
    %758 = arith.addf %757, %756 : vector<2x32xf32>
    %759 = arith.divf %757, %758 : vector<2x32xf32>
    %760 = vector.extract_strided_slice %747 {offsets = [0, 64], sizes = [2, 32], strides = [1, 1]} : vector<2x128xf32> to vector<2x32xf32>
    %761 = math.tanh %760 : vector<2x32xf32>
    %762 = vector.extract_strided_slice %747 {offsets = [0, 96], sizes = [2, 32], strides = [1, 1]} : vector<2x128xf32> to vector<2x32xf32>
    %763 = arith.negf %762 : vector<2x32xf32>
    %764 = math.exp %763 : vector<2x32xf32>
    %cst_199 = arith.constant 1.000000e+00 : f32
    %765 = vector.broadcast %cst_199 : f32 to vector<2x32xf32>
    %766 = arith.addf %765, %764 : vector<2x32xf32>
    %767 = arith.divf %765, %766 : vector<2x32xf32>
    %768 = arith.mulf %759, %712 : vector<2x32xf32>
    %769 = arith.mulf %753, %761 : vector<2x32xf32>
    %770 = arith.addf %768, %769 : vector<2x32xf32>
    %771 = math.tanh %770 : vector<2x32xf32>
    %772 = arith.mulf %767, %771 : vector<2x32xf32>
    %c8_200 = arith.constant 8 : index
    %c0_201 = arith.constant 0 : index
    %773 = vector.load %arg18[%c8_200, %c0_201] : memref<16x32xf32, #tpu.memory_space<vmem>>, vector<2x32xf32>
    tpu.vector_store %arg18[%c8_200, %c0_201], %772 {strides = array<i32>} : memref<16x32xf32, #tpu.memory_space<vmem>>, vector<2x32xf32>,
    %774 = vector.extract_strided_slice %502 {offsets = [6, 0], sizes = [2, 128], strides = [1, 1]} : vector<16x128xf32> to vector<2x128xf32>
    %cst_202 = arith.constant dense<0.000000e+00> : vector<2x128xf32>
    %775 = tpu.matmul %743, %504, %cst_202 {dimension_numbers = #tpu.dot_dimension_numbers<[1], [0], [0], [1], [0, 0, 1, 1], [], []>} : vector<2x32xf32>, vector<32x128xf32>, vector<2x128xf32> -> vector<2x128xf32>
    %776 = arith.addf %774, %775 : vector<2x128xf32>
    %777 = vector.extract_strided_slice %776 {offsets = [0, 0], sizes = [2, 32], strides = [1, 1]} : vector<2x128xf32> to vector<2x32xf32>
    %778 = arith.negf %777 : vector<2x32xf32>
    %779 = math.exp %778 : vector<2x32xf32>
    %cst_203 = arith.constant 1.000000e+00 : f32
    %780 = vector.broadcast %cst_203 : f32 to vector<2x32xf32>
    %781 = arith.addf %780, %779 : vector<2x32xf32>
    %782 = arith.divf %780, %781 : vector<2x32xf32>
    %783 = vector.extract_strided_slice %776 {offsets = [0, 32], sizes = [2, 32], strides = [1, 1]} : vector<2x128xf32> to vector<2x32xf32>
    %784 = arith.negf %783 : vector<2x32xf32>
    %785 = math.exp %784 : vector<2x32xf32>
    %cst_204 = arith.constant 1.000000e+00 : f32
    %786 = vector.broadcast %cst_204 : f32 to vector<2x32xf32>
    %787 = arith.addf %786, %785 : vector<2x32xf32>
    %788 = arith.divf %786, %787 : vector<2x32xf32>
    %789 = vector.extract_strided_slice %776 {offsets = [0, 64], sizes = [2, 32], strides = [1, 1]} : vector<2x128xf32> to vector<2x32xf32>
    %790 = math.tanh %789 : vector<2x32xf32>
    %791 = vector.extract_strided_slice %776 {offsets = [0, 96], sizes = [2, 32], strides = [1, 1]} : vector<2x128xf32> to vector<2x32xf32>
    %792 = arith.negf %791 : vector<2x32xf32>
    %793 = math.exp %792 : vector<2x32xf32>
    %cst_205 = arith.constant 1.000000e+00 : f32
    %794 = vector.broadcast %cst_205 : f32 to vector<2x32xf32>
    %795 = arith.addf %794, %793 : vector<2x32xf32>
    %796 = arith.divf %794, %795 : vector<2x32xf32>
    %797 = arith.mulf %788, %741 : vector<2x32xf32>
    %798 = arith.mulf %782, %790 : vector<2x32xf32>
    %799 = arith.addf %797, %798 : vector<2x32xf32>
    %800 = math.tanh %799 : vector<2x32xf32>
    %801 = arith.mulf %796, %800 : vector<2x32xf32>
    %c6_206 = arith.constant 6 : index
    %c0_207 = arith.constant 0 : index
    %802 = vector.load %arg19[%c6_206, %c0_207] : memref<16x32xf32, #tpu.memory_space<vmem>>, vector<2x32xf32>
    tpu.vector_store %arg19[%c6_206, %c0_207], %801 {strides = array<i32>} : memref<16x32xf32, #tpu.memory_space<vmem>>, vector<2x32xf32>,
    %803 = vector.extract_strided_slice %494 {offsets = [10, 0], sizes = [2, 128], strides = [1, 1]} : vector<16x128xf32> to vector<2x128xf32>
    %cst_208 = arith.constant dense<0.000000e+00> : vector<2x128xf32>
    %804 = tpu.matmul %772, %503, %cst_208 {dimension_numbers = #tpu.dot_dimension_numbers<[1], [0], [0], [1], [0, 0, 1, 1], [], []>} : vector<2x32xf32>, vector<32x128xf32>, vector<2x128xf32> -> vector<2x128xf32>
    %805 = arith.addf %803, %804 : vector<2x128xf32>
    %806 = vector.extract_strided_slice %805 {offsets = [0, 0], sizes = [2, 32], strides = [1, 1]} : vector<2x128xf32> to vector<2x32xf32>
    %807 = arith.negf %806 : vector<2x32xf32>
    %808 = math.exp %807 : vector<2x32xf32>
    %cst_209 = arith.constant 1.000000e+00 : f32
    %809 = vector.broadcast %cst_209 : f32 to vector<2x32xf32>
    %810 = arith.addf %809, %808 : vector<2x32xf32>
    %811 = arith.divf %809, %810 : vector<2x32xf32>
    %812 = vector.extract_strided_slice %805 {offsets = [0, 32], sizes = [2, 32], strides = [1, 1]} : vector<2x128xf32> to vector<2x32xf32>
    %813 = arith.negf %812 : vector<2x32xf32>
    %814 = math.exp %813 : vector<2x32xf32>
    %cst_210 = arith.constant 1.000000e+00 : f32
    %815 = vector.broadcast %cst_210 : f32 to vector<2x32xf32>
    %816 = arith.addf %815, %814 : vector<2x32xf32>
    %817 = arith.divf %815, %816 : vector<2x32xf32>
    %818 = vector.extract_strided_slice %805 {offsets = [0, 64], sizes = [2, 32], strides = [1, 1]} : vector<2x128xf32> to vector<2x32xf32>
    %819 = math.tanh %818 : vector<2x32xf32>
    %820 = vector.extract_strided_slice %805 {offsets = [0, 96], sizes = [2, 32], strides = [1, 1]} : vector<2x128xf32> to vector<2x32xf32>
    %821 = arith.negf %820 : vector<2x32xf32>
    %822 = math.exp %821 : vector<2x32xf32>
    %cst_211 = arith.constant 1.000000e+00 : f32
    %823 = vector.broadcast %cst_211 : f32 to vector<2x32xf32>
    %824 = arith.addf %823, %822 : vector<2x32xf32>
    %825 = arith.divf %823, %824 : vector<2x32xf32>
    %826 = arith.mulf %817, %770 : vector<2x32xf32>
    %827 = arith.mulf %811, %819 : vector<2x32xf32>
    %828 = arith.addf %826, %827 : vector<2x32xf32>
    %829 = math.tanh %828 : vector<2x32xf32>
    %830 = arith.mulf %825, %829 : vector<2x32xf32>
    %c10_212 = arith.constant 10 : index
    %c0_213 = arith.constant 0 : index
    %831 = vector.load %arg18[%c10_212, %c0_213] : memref<16x32xf32, #tpu.memory_space<vmem>>, vector<2x32xf32>
    tpu.vector_store %arg18[%c10_212, %c0_213], %830 {strides = array<i32>} : memref<16x32xf32, #tpu.memory_space<vmem>>, vector<2x32xf32>,
    %832 = vector.extract_strided_slice %502 {offsets = [4, 0], sizes = [2, 128], strides = [1, 1]} : vector<16x128xf32> to vector<2x128xf32>
    %cst_214 = arith.constant dense<0.000000e+00> : vector<2x128xf32>
    %833 = tpu.matmul %801, %504, %cst_214 {dimension_numbers = #tpu.dot_dimension_numbers<[1], [0], [0], [1], [0, 0, 1, 1], [], []>} : vector<2x32xf32>, vector<32x128xf32>, vector<2x128xf32> -> vector<2x128xf32>
    %834 = arith.addf %832, %833 : vector<2x128xf32>
    %835 = vector.extract_strided_slice %834 {offsets = [0, 0], sizes = [2, 32], strides = [1, 1]} : vector<2x128xf32> to vector<2x32xf32>
    %836 = arith.negf %835 : vector<2x32xf32>
    %837 = math.exp %836 : vector<2x32xf32>
    %cst_215 = arith.constant 1.000000e+00 : f32
    %838 = vector.broadcast %cst_215 : f32 to vector<2x32xf32>
    %839 = arith.addf %838, %837 : vector<2x32xf32>
    %840 = arith.divf %838, %839 : vector<2x32xf32>
    %841 = vector.extract_strided_slice %834 {offsets = [0, 32], sizes = [2, 32], strides = [1, 1]} : vector<2x128xf32> to vector<2x32xf32>
    %842 = arith.negf %841 : vector<2x32xf32>
    %843 = math.exp %842 : vector<2x32xf32>
    %cst_216 = arith.constant 1.000000e+00 : f32
    %844 = vector.broadcast %cst_216 : f32 to vector<2x32xf32>
    %845 = arith.addf %844, %843 : vector<2x32xf32>
    %846 = arith.divf %844, %845 : vector<2x32xf32>
    %847 = vector.extract_strided_slice %834 {offsets = [0, 64], sizes = [2, 32], strides = [1, 1]} : vector<2x128xf32> to vector<2x32xf32>
    %848 = math.tanh %847 : vector<2x32xf32>
    %849 = vector.extract_strided_slice %834 {offsets = [0, 96], sizes = [2, 32], strides = [1, 1]} : vector<2x128xf32> to vector<2x32xf32>
    %850 = arith.negf %849 : vector<2x32xf32>
    %851 = math.exp %850 : vector<2x32xf32>
    %cst_217 = arith.constant 1.000000e+00 : f32
    %852 = vector.broadcast %cst_217 : f32 to vector<2x32xf32>
    %853 = arith.addf %852, %851 : vector<2x32xf32>
    %854 = arith.divf %852, %853 : vector<2x32xf32>
    %855 = arith.mulf %846, %799 : vector<2x32xf32>
    %856 = arith.mulf %840, %848 : vector<2x32xf32>
    %857 = arith.addf %855, %856 : vector<2x32xf32>
    %858 = math.tanh %857 : vector<2x32xf32>
    %859 = arith.mulf %854, %858 : vector<2x32xf32>
    %c4_218 = arith.constant 4 : index
    %c0_219 = arith.constant 0 : index
    %860 = vector.load %arg19[%c4_218, %c0_219] : memref<16x32xf32, #tpu.memory_space<vmem>>, vector<2x32xf32>
    tpu.vector_store %arg19[%c4_218, %c0_219], %859 {strides = array<i32>} : memref<16x32xf32, #tpu.memory_space<vmem>>, vector<2x32xf32>,
    %861 = vector.extract_strided_slice %494 {offsets = [12, 0], sizes = [2, 128], strides = [1, 1]} : vector<16x128xf32> to vector<2x128xf32>
    %cst_220 = arith.constant dense<0.000000e+00> : vector<2x128xf32>
    %862 = tpu.matmul %830, %503, %cst_220 {dimension_numbers = #tpu.dot_dimension_numbers<[1], [0], [0], [1], [0, 0, 1, 1], [], []>} : vector<2x32xf32>, vector<32x128xf32>, vector<2x128xf32> -> vector<2x128xf32>
    %863 = arith.addf %861, %862 : vector<2x128xf32>
    %864 = vector.extract_strided_slice %863 {offsets = [0, 0], sizes = [2, 32], strides = [1, 1]} : vector<2x128xf32> to vector<2x32xf32>
    %865 = arith.negf %864 : vector<2x32xf32>
    %866 = math.exp %865 : vector<2x32xf32>
    %cst_221 = arith.constant 1.000000e+00 : f32
    %867 = vector.broadcast %cst_221 : f32 to vector<2x32xf32>
    %868 = arith.addf %867, %866 : vector<2x32xf32>
    %869 = arith.divf %867, %868 : vector<2x32xf32>
    %870 = vector.extract_strided_slice %863 {offsets = [0, 32], sizes = [2, 32], strides = [1, 1]} : vector<2x128xf32> to vector<2x32xf32>
    %871 = arith.negf %870 : vector<2x32xf32>
    %872 = math.exp %871 : vector<2x32xf32>
    %cst_222 = arith.constant 1.000000e+00 : f32
    %873 = vector.broadcast %cst_222 : f32 to vector<2x32xf32>
    %874 = arith.addf %873, %872 : vector<2x32xf32>
    %875 = arith.divf %873, %874 : vector<2x32xf32>
    %876 = vector.extract_strided_slice %863 {offsets = [0, 64], sizes = [2, 32], strides = [1, 1]} : vector<2x128xf32> to vector<2x32xf32>
    %877 = math.tanh %876 : vector<2x32xf32>
    %878 = vector.extract_strided_slice %863 {offsets = [0, 96], sizes = [2, 32], strides = [1, 1]} : vector<2x128xf32> to vector<2x32xf32>
    %879 = arith.negf %878 : vector<2x32xf32>
    %880 = math.exp %879 : vector<2x32xf32>
    %cst_223 = arith.constant 1.000000e+00 : f32
    %881 = vector.broadcast %cst_223 : f32 to vector<2x32xf32>
    %882 = arith.addf %881, %880 : vector<2x32xf32>
    %883 = arith.divf %881, %882 : vector<2x32xf32>
    %884 = arith.mulf %875, %828 : vector<2x32xf32>
    %885 = arith.mulf %869, %877 : vector<2x32xf32>
    %886 = arith.addf %884, %885 : vector<2x32xf32>
    %887 = math.tanh %886 : vector<2x32xf32>
    %888 = arith.mulf %883, %887 : vector<2x32xf32>
    %c12_224 = arith.constant 12 : index
    %c0_225 = arith.constant 0 : index
    %889 = vector.load %arg18[%c12_224, %c0_225] : memref<16x32xf32, #tpu.memory_space<vmem>>, vector<2x32xf32>
    tpu.vector_store %arg18[%c12_224, %c0_225], %888 {strides = array<i32>} : memref<16x32xf32, #tpu.memory_space<vmem>>, vector<2x32xf32>,
    %890 = vector.extract_strided_slice %502 {offsets = [2, 0], sizes = [2, 128], strides = [1, 1]} : vector<16x128xf32> to vector<2x128xf32>
    %cst_226 = arith.constant dense<0.000000e+00> : vector<2x128xf32>
    %891 = tpu.matmul %859, %504, %cst_226 {dimension_numbers = #tpu.dot_dimension_numbers<[1], [0], [0], [1], [0, 0, 1, 1], [], []>} : vector<2x32xf32>, vector<32x128xf32>, vector<2x128xf32> -> vector<2x128xf32>
    %892 = arith.addf %890, %891 : vector<2x128xf32>
    %893 = vector.extract_strided_slice %892 {offsets = [0, 0], sizes = [2, 32], strides = [1, 1]} : vector<2x128xf32> to vector<2x32xf32>
    %894 = arith.negf %893 : vector<2x32xf32>
    %895 = math.exp %894 : vector<2x32xf32>
    %cst_227 = arith.constant 1.000000e+00 : f32
    %896 = vector.broadcast %cst_227 : f32 to vector<2x32xf32>
    %897 = arith.addf %896, %895 : vector<2x32xf32>
    %898 = arith.divf %896, %897 : vector<2x32xf32>
    %899 = vector.extract_strided_slice %892 {offsets = [0, 32], sizes = [2, 32], strides = [1, 1]} : vector<2x128xf32> to vector<2x32xf32>
    %900 = arith.negf %899 : vector<2x32xf32>
    %901 = math.exp %900 : vector<2x32xf32>
    %cst_228 = arith.constant 1.000000e+00 : f32
    %902 = vector.broadcast %cst_228 : f32 to vector<2x32xf32>
    %903 = arith.addf %902, %901 : vector<2x32xf32>
    %904 = arith.divf %902, %903 : vector<2x32xf32>
    %905 = vector.extract_strided_slice %892 {offsets = [0, 64], sizes = [2, 32], strides = [1, 1]} : vector<2x128xf32> to vector<2x32xf32>
    %906 = math.tanh %905 : vector<2x32xf32>
    %907 = vector.extract_strided_slice %892 {offsets = [0, 96], sizes = [2, 32], strides = [1, 1]} : vector<2x128xf32> to vector<2x32xf32>
    %908 = arith.negf %907 : vector<2x32xf32>
    %909 = math.exp %908 : vector<2x32xf32>
    %cst_229 = arith.constant 1.000000e+00 : f32
    %910 = vector.broadcast %cst_229 : f32 to vector<2x32xf32>
    %911 = arith.addf %910, %909 : vector<2x32xf32>
    %912 = arith.divf %910, %911 : vector<2x32xf32>
    %913 = arith.mulf %904, %857 : vector<2x32xf32>
    %914 = arith.mulf %898, %906 : vector<2x32xf32>
    %915 = arith.addf %913, %914 : vector<2x32xf32>
    %916 = math.tanh %915 : vector<2x32xf32>
    %917 = arith.mulf %912, %916 : vector<2x32xf32>
    %c2_230 = arith.constant 2 : index
    %c0_231 = arith.constant 0 : index
    %918 = vector.load %arg19[%c2_230, %c0_231] : memref<16x32xf32, #tpu.memory_space<vmem>>, vector<2x32xf32>
    tpu.vector_store %arg19[%c2_230, %c0_231], %917 {strides = array<i32>} : memref<16x32xf32, #tpu.memory_space<vmem>>, vector<2x32xf32>,
    %919 = vector.extract_strided_slice %494 {offsets = [14, 0], sizes = [2, 128], strides = [1, 1]} : vector<16x128xf32> to vector<2x128xf32>
    %cst_232 = arith.constant dense<0.000000e+00> : vector<2x128xf32>
    %920 = tpu.matmul %888, %503, %cst_232 {dimension_numbers = #tpu.dot_dimension_numbers<[1], [0], [0], [1], [0, 0, 1, 1], [], []>} : vector<2x32xf32>, vector<32x128xf32>, vector<2x128xf32> -> vector<2x128xf32>
    %921 = arith.addf %919, %920 : vector<2x128xf32>
    %922 = vector.extract_strided_slice %921 {offsets = [0, 0], sizes = [2, 32], strides = [1, 1]} : vector<2x128xf32> to vector<2x32xf32>
    %923 = arith.negf %922 : vector<2x32xf32>
    %924 = math.exp %923 : vector<2x32xf32>
    %cst_233 = arith.constant 1.000000e+00 : f32
    %925 = vector.broadcast %cst_233 : f32 to vector<2x32xf32>
    %926 = arith.addf %925, %924 : vector<2x32xf32>
    %927 = arith.divf %925, %926 : vector<2x32xf32>
    %928 = vector.extract_strided_slice %921 {offsets = [0, 32], sizes = [2, 32], strides = [1, 1]} : vector<2x128xf32> to vector<2x32xf32>
    %929 = arith.negf %928 : vector<2x32xf32>
    %930 = math.exp %929 : vector<2x32xf32>
    %cst_234 = arith.constant 1.000000e+00 : f32
    %931 = vector.broadcast %cst_234 : f32 to vector<2x32xf32>
    %932 = arith.addf %931, %930 : vector<2x32xf32>
    %933 = arith.divf %931, %932 : vector<2x32xf32>
    %934 = vector.extract_strided_slice %921 {offsets = [0, 64], sizes = [2, 32], strides = [1, 1]} : vector<2x128xf32> to vector<2x32xf32>
    %935 = math.tanh %934 : vector<2x32xf32>
    %936 = vector.extract_strided_slice %921 {offsets = [0, 96], sizes = [2, 32], strides = [1, 1]} : vector<2x128xf32> to vector<2x32xf32>
    %937 = arith.negf %936 : vector<2x32xf32>
    %938 = math.exp %937 : vector<2x32xf32>
    %cst_235 = arith.constant 1.000000e+00 : f32
    %939 = vector.broadcast %cst_235 : f32 to vector<2x32xf32>
    %940 = arith.addf %939, %938 : vector<2x32xf32>
    %941 = arith.divf %939, %940 : vector<2x32xf32>
    %942 = arith.mulf %933, %886 : vector<2x32xf32>
    %943 = arith.mulf %927, %935 : vector<2x32xf32>
    %944 = arith.addf %942, %943 : vector<2x32xf32>
    %945 = math.tanh %944 : vector<2x32xf32>
    %946 = arith.mulf %941, %945 : vector<2x32xf32>
    %c14_236 = arith.constant 14 : index
    %c0_237 = arith.constant 0 : index
    %947 = vector.load %arg18[%c14_236, %c0_237] : memref<16x32xf32, #tpu.memory_space<vmem>>, vector<2x32xf32>
    tpu.vector_store %arg18[%c14_236, %c0_237], %946 {strides = array<i32>} : memref<16x32xf32, #tpu.memory_space<vmem>>, vector<2x32xf32>,
    %948 = vector.extract_strided_slice %502 {offsets = [0, 0], sizes = [2, 128], strides = [1, 1]} : vector<16x128xf32> to vector<2x128xf32>
    %cst_238 = arith.constant dense<0.000000e+00> : vector<2x128xf32>
    %949 = tpu.matmul %917, %504, %cst_238 {dimension_numbers = #tpu.dot_dimension_numbers<[1], [0], [0], [1], [0, 0, 1, 1], [], []>} : vector<2x32xf32>, vector<32x128xf32>, vector<2x128xf32> -> vector<2x128xf32>
    %950 = arith.addf %948, %949 : vector<2x128xf32>
    %951 = vector.extract_strided_slice %950 {offsets = [0, 0], sizes = [2, 32], strides = [1, 1]} : vector<2x128xf32> to vector<2x32xf32>
    %952 = arith.negf %951 : vector<2x32xf32>
    %953 = math.exp %952 : vector<2x32xf32>
    %cst_239 = arith.constant 1.000000e+00 : f32
    %954 = vector.broadcast %cst_239 : f32 to vector<2x32xf32>
    %955 = arith.addf %954, %953 : vector<2x32xf32>
    %956 = arith.divf %954, %955 : vector<2x32xf32>
    %957 = vector.extract_strided_slice %950 {offsets = [0, 32], sizes = [2, 32], strides = [1, 1]} : vector<2x128xf32> to vector<2x32xf32>
    %958 = arith.negf %957 : vector<2x32xf32>
    %959 = math.exp %958 : vector<2x32xf32>
    %cst_240 = arith.constant 1.000000e+00 : f32
    %960 = vector.broadcast %cst_240 : f32 to vector<2x32xf32>
    %961 = arith.addf %960, %959 : vector<2x32xf32>
    %962 = arith.divf %960, %961 : vector<2x32xf32>
    %963 = vector.extract_strided_slice %950 {offsets = [0, 64], sizes = [2, 32], strides = [1, 1]} : vector<2x128xf32> to vector<2x32xf32>
    %964 = math.tanh %963 : vector<2x32xf32>
    %965 = vector.extract_strided_slice %950 {offsets = [0, 96], sizes = [2, 32], strides = [1, 1]} : vector<2x128xf32> to vector<2x32xf32>
    %966 = arith.negf %965 : vector<2x32xf32>
    %967 = math.exp %966 : vector<2x32xf32>
    %cst_241 = arith.constant 1.000000e+00 : f32
    %968 = vector.broadcast %cst_241 : f32 to vector<2x32xf32>
    %969 = arith.addf %968, %967 : vector<2x32xf32>
    %970 = arith.divf %968, %969 : vector<2x32xf32>
    %971 = arith.mulf %962, %915 : vector<2x32xf32>
    %972 = arith.mulf %956, %964 : vector<2x32xf32>
    %973 = arith.addf %971, %972 : vector<2x32xf32>
    %974 = math.tanh %973 : vector<2x32xf32>
    %975 = arith.mulf %970, %974 : vector<2x32xf32>
    %c0_242 = arith.constant 0 : index
    %c0_243 = arith.constant 0 : index
    %976 = vector.load %arg19[%c0_242, %c0_243] : memref<16x32xf32, #tpu.memory_space<vmem>>, vector<2x32xf32>
    tpu.vector_store %arg19[%c0_242, %c0_243], %975 {strides = array<i32>} : memref<16x32xf32, #tpu.memory_space<vmem>>, vector<2x32xf32>,
    %c0_244 = arith.constant 0 : index
    %c0_245 = arith.constant 0 : index
    %977 = vector.load %arg18[%c0_244, %c0_245] : memref<16x32xf32, #tpu.memory_space<vmem>>, vector<16x32xf32>
    %c0_246 = arith.constant 0 : index
    %c0_247 = arith.constant 0 : index
    %978 = vector.load %arg19[%c0_246, %c0_247] : memref<16x32xf32, #tpu.memory_space<vmem>>, vector<16x32xf32>
    %c0_248 = arith.constant 0 : index
    %c0_249 = arith.constant 0 : index
    %979 = vector.load %arg15[%c0_248, %c0_249] : memref<64x1xf32, #tpu.memory_space<vmem>>, vector<32x1xf32>
    %cst_250 = arith.constant dense<0.000000e+00> : vector<16x1xf32>
    %980 = tpu.matmul %977, %979, %cst_250 {dimension_numbers = #tpu.dot_dimension_numbers<[1], [0], [0], [1], [0, 0, 1, 1], [], []>} : vector<16x32xf32>, vector<32x1xf32>, vector<16x1xf32> -> vector<16x1xf32>
    %c32_251 = arith.constant 32 : index
    %c0_252 = arith.constant 0 : index
    %981 = vector.load %arg15[%c32_251, %c0_252] : memref<64x1xf32, #tpu.memory_space<vmem>>, vector<32x1xf32>
    %cst_253 = arith.constant dense<0.000000e+00> : vector<16x1xf32>
    %982 = tpu.matmul %978, %981, %cst_253 {dimension_numbers = #tpu.dot_dimension_numbers<[1], [0], [0], [1], [0, 0, 1, 1], [], []>} : vector<16x32xf32>, vector<32x1xf32>, vector<16x1xf32> -> vector<16x1xf32>
    %983 = arith.addf %980, %982 : vector<16x1xf32>
    %c0_254 = arith.constant 0 : index
    %c0_255 = arith.constant 0 : index
    %984 = vector.load %arg16[%c0_254, %c0_255] : memref<1x1xf32, #tpu.memory_space<vmem>>, vector<1x1xf32>
    %985 = vector.broadcast %984 : vector<1x1xf32> to vector<16x1xf32>
    %986 = arith.addf %983, %985 : vector<16x1xf32>
    %c0_256 = arith.constant 0 : index
    %c0_257 = arith.constant 0 : index
    %987 = vector.load %arg17[%c0_256, %c0_257] : memref<16x1xf32, #tpu.memory_space<vmem>>, vector<16x1xf32>
    tpu.vector_store %arg17[%c0_256, %c0_257], %986 {strides = array<i32>} : memref<16x1xf32, #tpu.memory_space<vmem>>, vector<16x1xf32>,
    return
  }
}

</mosaic_0001>

<llo_original>
// kernel: seq2seq_lstm_forward.1
$region0: #{seq2seq_lstm_forward.1}
  #allocation0 [shape = 'u32[]', space=smem, size = 0x4, offset = 0x4, fixed_abs, tag = 'smem constant byte address 0x4 - core index']
  #allocation1 [shape = 'u32[144,128]{1,0:T(1,128)}', space=vmem, size = 0x12000, scoped, tag = 'internal scratch']
  #allocation2 [shape = 'f32[16,32]{1,0:T(8,128)}', space=vmem, size = 0x2000, scoped, tag = 'scratch operand']
  #allocation3 [shape = 'f32[16,32]{1,0:T(8,128)}', space=vmem, size = 0x2000, scoped, tag = 'scratch operand']
  #allocation4 [shape = 'f32[1,1]{1,0:T(1,128)S(1)}', space=vmem, size = 0x200, scoped, tag = 'scoped memory for seq2seq_lstm_forward.1']
  %s0 = inlined_call_operand.vmem [shape: f32[16,4], index: 0, kind: input, shape index: {}]
  %s1 = inlined_call_operand.hbm [shape: f32[4,2,32], index: 1, kind: input, shape index: {}]
  %s2 = inlined_call_operand.hbm [shape: f32[4,2,32], index: 2, kind: input, shape index: {}]
  %s3 = inlined_call_operand.hbm [shape: f32[4,128], index: 3, kind: input, shape index: {}]
  %s4 = inlined_call_operand.hbm [shape: f32[32,128], index: 4, kind: input, shape index: {}]
  %s5 = inlined_call_operand.vmem [shape: f32[1,128], index: 5, kind: input, shape index: {}]
  %s6 = inlined_call_operand.hbm [shape: f32[4,128], index: 6, kind: input, shape index: {}]
  %s7 = inlined_call_operand.hbm [shape: f32[32,128], index: 7, kind: input, shape index: {}]
  %s8 = inlined_call_operand.vmem [shape: f32[1,128], index: 8, kind: input, shape index: {}]
  %s9 = inlined_call_operand.vmem [shape: f32[64,128], index: 9, kind: input, shape index: {}]
  %s10 = inlined_call_operand.hbm [shape: f32[32,128], index: 10, kind: input, shape index: {}]
  %s11 = inlined_call_operand.vmem [shape: f32[1,128], index: 11, kind: input, shape index: {}]
  %s12 = inlined_call_operand.vmem [shape: f32[64,128], index: 12, kind: input, shape index: {}]
  %s13 = inlined_call_operand.hbm [shape: f32[32,128], index: 13, kind: input, shape index: {}]
  %s14 = inlined_call_operand.vmem [shape: f32[1,128], index: 14, kind: input, shape index: {}]
  %s15 = inlined_call_operand.vmem [shape: f32[64,1], index: 15, kind: input, shape index: {}]
  %s16 = inlined_call_operand.<no memory space> [shape: f32[1,1], index: 16, kind: input, shape index: {}]
  %s17 = inlined_call_operand.vmem [shape: f32[16,1], index: 17, kind: output, shape index: {}]
  %s18 = sld [smem:[#allocation0]]
  $region110: #{seq2seq_lstm_forward.1} parent=0
    _
  %s20 = ssub.s32 1, %s18
  %s21 = scalar_select 0, %s20, %s18
  %v22 = vstv %s16
  %23 = vst [vmem:[#allocation4] sm:$0x1] %v22
  $region1: #{seq2seq_lstm_forward.1} parent=0
    #allocation5 [shape = 'u8[4096]{0}', space=vmem, size = 0x1000, scoped, tag = 'input window, operand 1, single buffered']
    #allocation6 [shape = 's32[1]{0}', space=sflag, size = 0x4, scoped, tag = 'scoped memory for seq2seq_lstm_forward.1']
    #allocation7 [shape = 'u8[4096]{0}', space=vmem, size = 0x1000, scoped, tag = 'input window, operand 2, single buffered']
    #allocation8 [shape = 's32[1]{0}', space=sflag, size = 0x4, scoped, tag = 'scoped memory for seq2seq_lstm_forward.1']
    #allocation9 [shape = 'u8[2048]{0}', space=vmem, size = 0x800, scoped, tag = 'input window, operand 3, single buffered']
    #allocation10 [shape = 'u8[16384]{0}', space=vmem, size = 0x4000, scoped, tag = 'input window, operand 4, single buffered']
    #allocation11 [shape = 's32[1]{0}', space=sflag, size = 0x4, scoped, tag = 'scoped memory for seq2seq_lstm_forward.1']
    #allocation12 [shape = 'u8[2048]{0}', space=vmem, size = 0x800, scoped, tag = 'input window, operand 6, single buffered']
    #allocation13 [shape = 'u8[16384]{0}', space=vmem, size = 0x4000, scoped, tag = 'input window, operand 7, single buffered']
    #allocation14 [shape = 's32[1]{0}', space=sflag, size = 0x4, scoped, tag = 'scoped memory for seq2seq_lstm_forward.1']
    #allocation15 [shape = 'u8[16384]{0}', space=vmem, size = 0x4000, scoped, tag = 'input window, operand 10, single buffered']
    #allocation16 [shape = 'u8[16384]{0}', space=vmem, size = 0x4000, scoped, tag = 'input window, operand 13, single buffered']
    #allocation17 [shape = 's32[1]{0}', space=sflag, size = 0x4, scoped, tag = 'scoped memory for seq2seq_lstm_forward.1']
    %24 = vsyncpa [#allocation6], 0
    %25 = vsyncpa [#allocation8], 0
    %26 = vsyncpa [#allocation11], 0
    %27 = vsyncpa [#allocation14], 0
    %28 = vsyncpa [#allocation17], 0
    // Predicated region
    $region2: #{seq2seq_lstm_forward.1} parent=1 // pred_check
      _
    $region3: #{seq2seq_lstm_forward.1} parent=1 // pred_check_branch
      %30 = sbr.rel (0) target = $region5
    $region4: #{seq2seq_lstm_forward.1} parent=1 // pred_region
      _
    $region5: #{seq2seq_lstm_forward.1} parent=1 // pred_fallthru
      _
    // Predicated region
    $region6: #{seq2seq_lstm_forward.1} parent=1 // pred_check
      _
    $region7: #{seq2seq_lstm_forward.1} parent=1 // pred_check_branch
      %32 = sbr.rel (0) target = $region9
    $region8: #{seq2seq_lstm_forward.1} parent=1 // pred_region
      %s34 = ssub.s32 128, 128
      %35 = vsyncadd [#allocation6], %s34
      %s36 = sshll.u32 [#allocation5], 4
      %s37 = int_to_ptr.vmem [resolvable:$true] %s36
      %42 = dma.hbm_to_vmem [thread:$0]  %s1, 128, %s37, [#allocation6], 32, 32, 2
    $region9: #{seq2seq_lstm_forward.1} parent=1 // pred_fallthru
      _
    // Predicated region
    $region10: #{seq2seq_lstm_forward.1} parent=1 // pred_check
      _
    $region11: #{seq2seq_lstm_forward.1} parent=1 // pred_check_branch
      %44 = sbr.rel (0) target = $region13
    $region12: #{seq2seq_lstm_forward.1} parent=1 // pred_region
      %s46 = ssub.s32 128, 128
      %47 = vsyncadd [#allocation8], %s46
      %s48 = sshll.u32 [#allocation7], 4
      %s49 = int_to_ptr.vmem [resolvable:$true] %s48
      %54 = dma.hbm_to_vmem [thread:$0]  %s2, 128, %s49, [#allocation8], 32, 32, 2
    $region13: #{seq2seq_lstm_forward.1} parent=1 // pred_fallthru
      _
    // Predicated region
    $region14: #{seq2seq_lstm_forward.1} parent=1 // pred_check
      _
    $region15: #{seq2seq_lstm_forward.1} parent=1 // pred_check_branch
      %56 = sbr.rel (0) target = $region17
    $region16: #{seq2seq_lstm_forward.1} parent=1 // pred_region
      %s58 = ssub.s32 64, 64
      %59 = vsyncadd [#allocation8], %s58
      %s61 = sshll.u32 [#allocation9], 4
      %s62 = int_to_ptr.vmem [resolvable:$true] %s61
      %64 = dma.hbm_to_vmem [thread:$0]  %s3, 64, %s62, [#allocation8]
    $region17: #{seq2seq_lstm_forward.1} parent=1 // pred_fallthru
      _
    // Predicated region
    $region18: #{seq2seq_lstm_forward.1} parent=1 // pred_check
      _
    $region19: #{seq2seq_lstm_forward.1} parent=1 // pred_check_branch
      %66 = sbr.rel (0) target = $region21
    $region20: #{seq2seq_lstm_forward.1} parent=1 // pred_region
      %s68 = ssub.s32 512, 512
      %69 = vsyncadd [#allocation11], %s68
      %s70 = sshll.u32 [#allocation10], 4
      %s71 = int_to_ptr.vmem [resolvable:$true] %s70
      %76 = dma.hbm_to_vmem [thread:$0]  %s4, 512, %s71, [#allocation11], 128, 128, 8
    $region21: #{seq2seq_lstm_forward.1} parent=1 // pred_fallthru
      _
    // Predicated region
    $region22: #{seq2seq_lstm_forward.1} parent=1 // pred_check
      _
    $region23: #{seq2seq_lstm_forward.1} parent=1 // pred_check_branch
      %78 = sbr.rel (0) target = $region25
    $region24: #{seq2seq_lstm_forward.1} parent=1 // pred_region
      _
    $region25: #{seq2seq_lstm_forward.1} parent=1 // pred_fallthru
      _
    // Predicated region
    $region26: #{seq2seq_lstm_forward.1} parent=1 // pred_check
      _
    $region27: #{seq2seq_lstm_forward.1} parent=1 // pred_check_branch
      %80 = sbr.rel (0) target = $region29
    $region28: #{seq2seq_lstm_forward.1} parent=1 // pred_region
      %s82 = ssub.s32 64, 64
      %83 = vsyncadd [#allocation11], %s82
      %s85 = sshll.u32 [#allocation12], 4
      %s86 = int_to_ptr.vmem [resolvable:$true] %s85
      %88 = dma.hbm_to_vmem [thread:$0]  %s6, 64, %s86, [#allocation11]
    $region29: #{seq2seq_lstm_forward.1} parent=1 // pred_fallthru
      _
    // Predicated region
    $region30: #{seq2seq_lstm_forward.1} parent=1 // pred_check
      _
    $region31: #{seq2seq_lstm_forward.1} parent=1 // pred_check_branch
      %90 = sbr.rel (0) target = $region33
    $region32: #{seq2seq_lstm_forward.1} parent=1 // pred_region
      %s92 = ssub.s32 512, 512
      %93 = vsyncadd [#allocation14], %s92
      %s94 = sshll.u32 [#allocation13], 4
      %s95 = int_to_ptr.vmem [resolvable:$true] %s94
      %100 = dma.hbm_to_vmem [thread:$0]  %s7, 512, %s95, [#allocation14], 128, 128, 8
    $region33: #{seq2seq_lstm_forward.1} parent=1 // pred_fallthru
      _
    // Predicated region
    $region34: #{seq2seq_lstm_forward.1} parent=1 // pred_check
      _
    $region35: #{seq2seq_lstm_forward.1} parent=1 // pred_check_branch
      %102 = sbr.rel (0) target = $region37
    $region36: #{seq2seq_lstm_forward.1} parent=1 // pred_region
      _
    $region37: #{seq2seq_lstm_forward.1} parent=1 // pred_fallthru
      _
    // Predicated region
    $region38: #{seq2seq_lstm_forward.1} parent=1 // pred_check
      _
    $region39: #{seq2seq_lstm_forward.1} parent=1 // pred_check_branch
      %104 = sbr.rel (0) target = $region41
    $region40: #{seq2seq_lstm_forward.1} parent=1 // pred_region
      _
    $region41: #{seq2seq_lstm_forward.1} parent=1 // pred_fallthru
      _
    // Predicated region
    $region42: #{seq2seq_lstm_forward.1} parent=1 // pred_check
      _
    $region43: #{seq2seq_lstm_forward.1} parent=1 // pred_check_branch
      %106 = sbr.rel (0) target = $region45
    $region44: #{seq2seq_lstm_forward.1} parent=1 // pred_region
      %s108 = ssub.s32 512, 512
      %109 = vsyncadd [#allocation14], %s108
      %s110 = sshll.u32 [#allocation15], 4
      %s111 = int_to_ptr.vmem [resolvable:$true] %s110
      %116 = dma.hbm_to_vmem [thread:$0]  %s10, 512, %s111, [#allocation14], 128, 128, 8
    $region45: #{seq2seq_lstm_forward.1} parent=1 // pred_fallthru
      _
    // Predicated region
    $region46: #{seq2seq_lstm_forward.1} parent=1 // pred_check
      _
    $region47: #{seq2seq_lstm_forward.1} parent=1 // pred_check_branch
      %118 = sbr.rel (0) target = $region49
    $region48: #{seq2seq_lstm_forward.1} parent=1 // pred_region
      _
    $region49: #{seq2seq_lstm_forward.1} parent=1 // pred_fallthru
      _
    // Predicated region
    $region50: #{seq2seq_lstm_forward.1} parent=1 // pred_check
      _
    $region51: #{seq2seq_lstm_forward.1} parent=1 // pred_check_branch
      %120 = sbr.rel (0) target = $region53
    $region52: #{seq2seq_lstm_forward.1} parent=1 // pred_region
      _
    $region53: #{seq2seq_lstm_forward.1} parent=1 // pred_fallthru
      _
    // Predicated region
    $region54: #{seq2seq_lstm_forward.1} parent=1 // pred_check
      _
    $region55: #{seq2seq_lstm_forward.1} parent=1 // pred_check_branch
      %122 = sbr.rel (0) target = $region57
    $region56: #{seq2seq_lstm_forward.1} parent=1 // pred_region
      %s124 = ssub.s32 512, 512
      %125 = vsyncadd [#allocation17], %s124
      %s126 = sshll.u32 [#allocation16], 4
      %s127 = int_to_ptr.vmem [resolvable:$true] %s126
      %132 = dma.hbm_to_vmem [thread:$0]  %s13, 512, %s127, [#allocation17], 128, 128, 8
    $region57: #{seq2seq_lstm_forward.1} parent=1 // pred_fallthru
      _
    // Predicated region
    $region58: #{seq2seq_lstm_forward.1} parent=1 // pred_check
      _
    $region59: #{seq2seq_lstm_forward.1} parent=1 // pred_check_branch
      %134 = sbr.rel (0) target = $region61
    $region60: #{seq2seq_lstm_forward.1} parent=1 // pred_region
      _
    $region61: #{seq2seq_lstm_forward.1} parent=1 // pred_fallthru
      _
    // Predicated region
    $region62: #{seq2seq_lstm_forward.1} parent=1 // pred_check
      _
    $region63: #{seq2seq_lstm_forward.1} parent=1 // pred_check_branch
      %136 = sbr.rel (0) target = $region65
    $region64: #{seq2seq_lstm_forward.1} parent=1 // pred_region
      _
    $region65: #{seq2seq_lstm_forward.1} parent=1 // pred_fallthru
      _
    // Predicated region
    $region66: #{seq2seq_lstm_forward.1} parent=1 // pred_check
      _
    $region67: #{seq2seq_lstm_forward.1} parent=1 // pred_check_branch
      %138 = sbr.rel (0) target = $region69
    $region68: #{seq2seq_lstm_forward.1} parent=1 // pred_region
      _
    $region69: #{seq2seq_lstm_forward.1} parent=1 // pred_fallthru
      _
    // Predicated region
    $region70: #{seq2seq_lstm_forward.1} parent=1 // pred_check
      _
    $region71: #{seq2seq_lstm_forward.1} parent=1 // pred_check_branch
      %140 = sbr.rel (0) target = $region73
    $region72: #{seq2seq_lstm_forward.1} parent=1 // pred_region
      %141 = dma.done [#allocation6], 128
    $region73: #{seq2seq_lstm_forward.1} parent=1 // pred_fallthru
      _
    // Predicated region
    $region74: #{seq2seq_lstm_forward.1} parent=1 // pred_check
      _
    $region75: #{seq2seq_lstm_forward.1} parent=1 // pred_check_branch
      %143 = sbr.rel (0) target = $region77
    $region76: #{seq2seq_lstm_forward.1} parent=1 // pred_region
      %144 = dma.done [#allocation8], 128
    $region77: #{seq2seq_lstm_forward.1} parent=1 // pred_fallthru
      _
    // Predicated region
    $region78: #{seq2seq_lstm_forward.1} parent=1 // pred_check
      _
    $region79: #{seq2seq_lstm_forward.1} parent=1 // pred_check_branch
      %146 = sbr.rel (0) target = $region81
    $region80: #{seq2seq_lstm_forward.1} parent=1 // pred_region
      %147 = dma.done [#allocation8], 64
    $region81: #{seq2seq_lstm_forward.1} parent=1 // pred_fallthru
      _
    // Predicated region
    $region82: #{seq2seq_lstm_forward.1} parent=1 // pred_check
      _
    $region83: #{seq2seq_lstm_forward.1} parent=1 // pred_check_branch
      %149 = sbr.rel (0) target = $region85
    $region84: #{seq2seq_lstm_forward.1} parent=1 // pred_region
      %150 = dma.done [#allocation11], 512
    $region85: #{seq2seq_lstm_forward.1} parent=1 // pred_fallthru
      _
    // Predicated region
    $region86: #{seq2seq_lstm_forward.1} parent=1 // pred_check
      _
    $region87: #{seq2seq_lstm_forward.1} parent=1 // pred_check_branch
      %152 = sbr.rel (0) target = $region89
    $region88: #{seq2seq_lstm_forward.1} parent=1 // pred_region
      %153 = dma.done [#allocation11], 64
    $region89: #{seq2seq_lstm_forward.1} parent=1 // pred_fallthru
      _
    // Predicated region
    $region90: #{seq2seq_lstm_forward.1} parent=1 // pred_check
      _
    $region91: #{seq2seq_lstm_forward.1} parent=1 // pred_check_branch
      %155 = sbr.rel (0) target = $region93
    $region92: #{seq2seq_lstm_forward.1} parent=1 // pred_region
      %156 = dma.done [#allocation14], 512
    $region93: #{seq2seq_lstm_forward.1} parent=1 // pred_fallthru
      _
    // Predicated region
    $region94: #{seq2seq_lstm_forward.1} parent=1 // pred_check
      _
    $region95: #{seq2seq_lstm_forward.1} parent=1 // pred_check_branch
      %158 = sbr.rel (0) target = $region97
    $region96: #{seq2seq_lstm_forward.1} parent=1 // pred_region
      %159 = dma.done [#allocation14], 512
    $region97: #{seq2seq_lstm_forward.1} parent=1 // pred_fallthru
      _
    // Predicated region
    $region98: #{seq2seq_lstm_forward.1} parent=1 // pred_check
      _
    $region99: #{seq2seq_lstm_forward.1} parent=1 // pred_check_branch
      %161 = sbr.rel (0) target = $region101
    $region100: #{seq2seq_lstm_forward.1} parent=1 // pred_region
      %162 = dma.done [#allocation17], 512
    $region101: #{seq2seq_lstm_forward.1} parent=1 // pred_fallthru
      _
    %v163 = vld [vmem:[%s0] sm:$0xff]
    %v164 = vld [vmem:[%s0 + $0x8] sm:$0xff]
    %v165 = vld [vmem:[#allocation9] sm:$0xf]
    %v166 = vld [vmem:[%s5] sm:$0x1]
    %v168 = vlaneseq
    %v169 = vshrl.u32 %v168, 7
    %v170 = vsub.s32 0, %v169
    %v171 = vrot.slane %v166, %v170
    %vm173 = vcmask 31744
    %v175 = vsel %vm173, %v163, 0
    %v178 = vsel %vm173, %v164, 0
    %vm180 = vcmask 1043456
    %v182 = vsel %vm180, %v165, 0
    %184 = vmatprep.subr.mxu0 0.0
    %185 = vmatpush1.msra.mxu0 %v182
    %186 = vmatprep.subr.mxu0 0.0
    %187 = vmatpush1.msra.mxu0 0.0
    %188 = vmatprep.subr.mxu0 0.0
    %189 = vmatpush1.msra.mxu0 0.0
    %190 = vmatprep.subr.mxu0 0.0
    %191 = vmatpush1.msra.mxu0 0.0
    %192 = vmatprep.subr.mxu0 0.0
    %193 = vmatpush1.msra.mxu0 0.0
    %194 = vmatprep.subr.mxu0 0.0
    %195 = vmatpush1.msra.mxu0 0.0
    %196 = vmatprep.subr.mxu0 0.0
    %197 = vmatpush1.msra.mxu0 0.0
    %198 = vmatprep.subr.mxu0 0.0
    %199 = vmatpush1.msra.mxu0 0.0
    %200 = vmatprep.subr.mxu0 0.0
    %201 = vmatpush1.msra.mxu0 0.0
    %202 = vmatprep.subr.mxu0 0.0
    %203 = vmatpush1.msra.mxu0 0.0
    %204 = vmatprep.subr.mxu0 0.0
    %205 = vmatpush1.msra.mxu0 0.0
    %206 = vmatprep.subr.mxu0 0.0
    %207 = vmatpush1.msra.mxu0 0.0
    %208 = vmatprep.subr.mxu0 0.0
    %209 = vmatpush1.msra.mxu0 0.0
    %210 = vmatprep.subr.mxu0 0.0
    %211 = vmatpush1.msra.mxu0 0.0
    %212 = vmatprep.subr.mxu0 0.0
    %213 = vmatpush1.msra.mxu0 0.0
    %214 = vmatprep.subr.mxu0 0.0
    %215 = vmatpush1.msra.mxu0 0.0
    %216 = vmatprep.subr.mxu0 0.0
    %217 = vmatpush1.msra.mxu0 0.0
    %218 = vmatprep.subr.mxu0 0.0
    %219 = vmatpush1.msra.mxu0 0.0
    %220 = vmatprep.subr.mxu0 0.0
    %221 = vmatpush1.msra.mxu0 0.0
    %222 = vmatprep.subr.mxu0 0.0
    %223 = vmatpush1.msra.mxu0 0.0
    %224 = vmatprep.subr.mxu0 0.0
    %225 = vmatpush1.msra.mxu0 0.0
    %226 = vmatprep.subr.mxu0 0.0
    %227 = vmatpush1.msra.mxu0 0.0
    %228 = vmatprep.subr.mxu0 0.0
    %229 = vmatpush1.msra.mxu0 0.0
    %230 = vmatprep.subr.mxu0 0.0
    %231 = vmatpush1.msra.mxu0 0.0
    %232 = vmatprep.subr.mxu0 0.0
    %233 = vmatpush1.msra.mxu0 0.0
    %234 = vmatprep.subr.mxu0 0.0
    %235 = vmatpush1.msra.mxu0 0.0
    %236 = vmatprep.subr.mxu0 0.0
    %237 = vmatpush1.msra.mxu0 0.0
    %238 = vmatprep.subr.mxu0 0.0
    %239 = vmatpush1.msra.mxu0 0.0
    %240 = vmatprep.subr.mxu0 0.0
    %241 = vmatpush1.msra.mxu0 0.0
    %242 = vmatprep.subr.mxu0 0.0
    %243 = vmatpush1.msra.mxu0 0.0
    %244 = vmatprep.subr.mxu0 0.0
    %245 = vmatpush1.msra.mxu0 0.0
    %246 = vmatprep.subr.mxu0 0.0
    %247 = vmatpush1.msra.mxu0 0.0
    %248 = vmatprep.mubr.f32.mxu0 0.0
    %249 = vmatmul.mubr.f32.gmra.mrb[0].mxu0 %v175
    %v250 = vpop.f32.mrb[0].mxu0
    %v251 = vadd.f32 %v171, %v250
    %v252 = vpop.f32.mrb[0].mxu0
    %253 = vmatprep.mubr.f32.mxu0 0.0
    %254 = vmatmul.mubr.f32.gmra.mrb[0].mxu0 %v178
    %v255 = vpop.f32.mrb[0].mxu0
    %v256 = vadd.f32 %v171, %v255
    %v257 = vpop.f32.mrb[0].mxu0
    %258 = vdwg.mxu0
    %v259 = vld [vmem:[#allocation12] sm:$0xf]
    %v260 = vld [vmem:[%s8] sm:$0x1]
    %v262 = vlaneseq
    %v263 = vshrl.u32 %v262, 7
    %v264 = vsub.s32 0, %v263
    %v265 = vrot.slane %v260, %v264
    %v268 = vsel %vm180, %v259, 0
    %270 = vmatprep.subr.mxu0 0.0
    %271 = vmatpush1.msra.mxu0 %v268
    %272 = vmatprep.subr.mxu0 0.0
    %273 = vmatpush1.msra.mxu0 0.0
    %274 = vmatprep.subr.mxu0 0.0
    %275 = vmatpush1.msra.mxu0 0.0
    %276 = vmatprep.subr.mxu0 0.0
    %277 = vmatpush1.msra.mxu0 0.0
    %278 = vmatprep.subr.mxu0 0.0
    %279 = vmatpush1.msra.mxu0 0.0
    %280 = vmatprep.subr.mxu0 0.0
    %281 = vmatpush1.msra.mxu0 0.0
    %282 = vmatprep.subr.mxu0 0.0
    %283 = vmatpush1.msra.mxu0 0.0
    %284 = vmatprep.subr.mxu0 0.0
    %285 = vmatpush1.msra.mxu0 0.0
    %286 = vmatprep.subr.mxu0 0.0
    %287 = vmatpush1.msra.mxu0 0.0
    %288 = vmatprep.subr.mxu0 0.0
    %289 = vmatpush1.msra.mxu0 0.0
    %290 = vmatprep.subr.mxu0 0.0
    %291 = vmatpush1.msra.mxu0 0.0
    %292 = vmatprep.subr.mxu0 0.0
    %293 = vmatpush1.msra.mxu0 0.0
    %294 = vmatprep.subr.mxu0 0.0
    %295 = vmatpush1.msra.mxu0 0.0
    %296 = vmatprep.subr.mxu0 0.0
    %297 = vmatpush1.msra.mxu0 0.0
    %298 = vmatprep.subr.mxu0 0.0
    %299 = vmatpush1.msra.mxu0 0.0
    %300 = vmatprep.subr.mxu0 0.0
    %301 = vmatpush1.msra.mxu0 0.0
    %302 = vmatprep.subr.mxu0 0.0
    %303 = vmatpush1.msra.mxu0 0.0
    %304 = vmatprep.subr.mxu0 0.0
    %305 = vmatpush1.msra.mxu0 0.0
    %306 = vmatprep.subr.mxu0 0.0
    %307 = vmatpush1.msra.mxu0 0.0
    %308 = vmatprep.subr.mxu0 0.0
    %309 = vmatpush1.msra.mxu0 0.0
    %310 = vmatprep.subr.mxu0 0.0
    %311 = vmatpush1.msra.mxu0 0.0
    %312 = vmatprep.subr.mxu0 0.0
    %313 = vmatpush1.msra.mxu0 0.0
    %314 = vmatprep.subr.mxu0 0.0
    %315 = vmatpush1.msra.mxu0 0.0
    %316 = vmatprep.subr.mxu0 0.0
    %317 = vmatpush1.msra.mxu0 0.0
    %318 = vmatprep.subr.mxu0 0.0
    %319 = vmatpush1.msra.mxu0 0.0
    %320 = vmatprep.subr.mxu0 0.0
    %321 = vmatpush1.msra.mxu0 0.0
    %322 = vmatprep.subr.mxu0 0.0
    %323 = vmatpush1.msra.mxu0 0.0
    %324 = vmatprep.subr.mxu0 0.0
    %325 = vmatpush1.msra.mxu0 0.0
    %326 = vmatprep.subr.mxu0 0.0
    %327 = vmatpush1.msra.mxu0 0.0
    %328 = vmatprep.subr.mxu0 0.0
    %329 = vmatpush1.msra.mxu0 0.0
    %330 = vmatprep.subr.mxu0 0.0
    %331 = vmatpush1.msra.mxu0 0.0
    %332 = vmatprep.subr.mxu0 0.0
    %333 = vmatpush1.msra.mxu0 0.0
    %334 = vmatprep.mubr.f32.mxu0 0.0
    %335 = vmatmul.mubr.f32.gmra.mrb[0].mxu0 %v175
    %v336 = vpop.f32.mrb[0].mxu0
    %v337 = vadd.f32 %v265, %v336
    %v338 = vpop.f32.mrb[0].mxu0
    %339 = vmatprep.mubr.f32.mxu0 0.0
    %340 = vmatmul.mubr.f32.gmra.mrb[0].mxu0 %v178
    %v341 = vpop.f32.mrb[0].mxu0
    %v342 = vadd.f32 %v265, %v341
    %v343 = vpop.f32.mrb[0].mxu0
    %344 = vdwg.mxu0
    %v345 = vld [vmem:[#allocation10] sm:$0xff]
    %v346 = vld [vmem:[#allocation10 + $0x8] sm:$0xff]
    %v347 = vld [vmem:[#allocation10 + $0x10] sm:$0xff]
    %v348 = vld [vmem:[#allocation10 + $0x18] sm:$0xff]
    %v349 = vld [vmem:[#allocation13] sm:$0xff]
    %v350 = vld [vmem:[#allocation13 + $0x8] sm:$0xff]
    %v351 = vld [vmem:[#allocation13 + $0x10] sm:$0xff]
    %v352 = vld [vmem:[#allocation13 + $0x18] sm:$0xff]
    %v353 = vld [vmem:[#allocation5] sm:$0x3]
    %v354 = vld [vmem:[#allocation7] sm:$0x3]
    %s355 = scalar_lea.vmem [#allocation5], 2
    %v356 = vld [vmem:[%s355] sm:$0x3]
    %s357 = scalar_lea.vmem [#allocation7], 2
    %v358 = vld [vmem:[%s357] sm:$0x3]
    %vm359 = vcmask 261120
    %v361 = vsel %vm359, %v353, 0
    %363 = vmatprep.subr.mxu0 0.0
    %364 = vmatpush1.msra.mxu0 %v345
    %365 = vmatprep.subr.mxu0 0.0
    %366 = vmatpush1.msra.mxu0 %v346
    %367 = vmatprep.subr.mxu0 0.0
    %368 = vmatpush1.msra.mxu0 %v347
    %369 = vmatprep.subr.mxu0 0.0
    %370 = vmatpush1.msra.mxu0 %v348
    %371 = vmatprep.subr.mxu0 0.0
    %372 = vmatpush1.msra.mxu0 0.0
    %373 = vmatprep.subr.mxu0 0.0
    %374 = vmatpush1.msra.mxu0 0.0
    %375 = vmatprep.subr.mxu0 0.0
    %376 = vmatpush1.msra.mxu0 0.0
    %377 = vmatprep.subr.mxu0 0.0
    %378 = vmatpush1.msra.mxu0 0.0
    %379 = vmatprep.subr.mxu0 0.0
    %380 = vmatpush1.msra.mxu0 0.0
    %381 = vmatprep.subr.mxu0 0.0
    %382 = vmatpush1.msra.mxu0 0.0
    %383 = vmatprep.subr.mxu0 0.0
    %384 = vmatpush1.msra.mxu0 0.0
    %385 = vmatprep.subr.mxu0 0.0
    %386 = vmatpush1.msra.mxu0 0.0
    %387 = vmatprep.subr.mxu0 0.0
    %388 = vmatpush1.msra.mxu0 0.0
    %389 = vmatprep.subr.mxu0 0.0
    %390 = vmatpush1.msra.mxu0 0.0
    %391 = vmatprep.subr.mxu0 0.0
    %392 = vmatpush1.msra.mxu0 0.0
    %393 = vmatprep.subr.mxu0 0.0
    %394 = vmatpush1.msra.mxu0 0.0
    %395 = vmatprep.subr.mxu0 0.0
    %396 = vmatpush1.msra.mxu0 0.0
    %397 = vmatprep.subr.mxu0 0.0
    %398 = vmatpush1.msra.mxu0 0.0
    %399 = vmatprep.subr.mxu0 0.0
    %400 = vmatpush1.msra.mxu0 0.0
    %401 = vmatprep.subr.mxu0 0.0
    %402 = vmatpush1.msra.mxu0 0.0
    %403 = vmatprep.subr.mxu0 0.0
    %404 = vmatpush1.msra.mxu0 0.0
    %405 = vmatprep.subr.mxu0 0.0
    %406 = vmatpush1.msra.mxu0 0.0
    %407 = vmatprep.subr.mxu0 0.0
    %408 = vmatpush1.msra.mxu0 0.0
    %409 = vmatprep.subr.mxu0 0.0
    %410 = vmatpush1.msra.mxu0 0.0
    %411 = vmatprep.subr.mxu0 0.0
    %412 = vmatpush1.msra.mxu0 0.0
    %413 = vmatprep.subr.mxu0 0.0
    %414 = vmatpush1.msra.mxu0 0.0
    %415 = vmatprep.subr.mxu0 0.0
    %416 = vmatpush1.msra.mxu0 0.0
    %417 = vmatprep.subr.mxu0 0.0
    %418 = vmatpush1.msra.mxu0 0.0
    %419 = vmatprep.subr.mxu0 0.0
    %420 = vmatpush1.msra.mxu0 0.0
    %421 = vmatprep.subr.mxu0 0.0
    %422 = vmatpush1.msra.mxu0 0.0
    %423 = vmatprep.subr.mxu0 0.0
    %424 = vmatpush1.msra.mxu0 0.0
    %425 = vmatprep.subr.mxu0 0.0
    %426 = vmatpush1.msra.mxu0 0.0
    %427 = vmatprep.mubr.f32.mxu0 0.0
    %428 = vmatmul.mubr.f32.gmra.mrb[0].mxu0 %v361
    %v429 = vpop.f32.mrb[0].mxu0
    %v430 = vadd.f32 0.0, %v429
    %v431 = vpop.f32.mrb[0].mxu0
    %432 = vdwg.mxu0
    %v433 = vadd.f32 %v251, %v430
    %v434 = vxor.u32 %v433, 2147483648
    %v435 = vmul.f32 %v434, 1.442695
    %v436 = vpow.pop %v435
    %v437 = vadd.f32 %v436, 1.0
    %v438 = vrcp.pop %v437
    %v439 = vmul.f32 1.0, %v438
    %v440 = vtanh.pop %v433
    %442 = vrot.lane.b32.xlu0 %v354, 32
    %v443 = vpop.permute.xlu0 %442
    %v445 = vmul.f32 %v439, %v443
    %447 = vrot.lane.b32.xlu0 %v440, 64
    %v448 = vpop.permute.xlu0 %447
    %v450 = vmul.f32 %v439, %v448
    %452 = vrot.lane.b32.xlu0 %v450, 32
    %v453 = vpop.permute.xlu0 %452
    %v455 = vadd.f32 %v445, %v453
    %v456 = vtanh.pop %v455
    %458 = vrot.lane.b32.xlu0 %v456, 64
    %v459 = vpop.permute.xlu0 %458
    %v461 = vmul.f32 %v439, %v459
    %463 = vrot.lane.b32.xlu0 %v461, 32
    %v464 = vpop.permute.xlu0 %463
    %vm466 = vcmask 254976
    %467 = vst.msk [vmem:[#allocation2] sm:$0x3] %vm466, %v464
    %v469 = vsel %vm359, %v356, 0
    %471 = vmatprep.subr.mxu0 0.0
    %472 = vmatpush1.msra.mxu0 %v349
    %473 = vmatprep.subr.mxu0 0.0
    %474 = vmatpush1.msra.mxu0 %v350
    %475 = vmatprep.subr.mxu0 0.0
    %476 = vmatpush1.msra.mxu0 %v351
    %477 = vmatprep.subr.mxu0 0.0
    %478 = vmatpush1.msra.mxu0 %v352
    %479 = vmatprep.subr.mxu0 0.0
    %480 = vmatpush1.msra.mxu0 0.0
    %481 = vmatprep.subr.mxu0 0.0
    %482 = vmatpush1.msra.mxu0 0.0
    %483 = vmatprep.subr.mxu0 0.0
    %484 = vmatpush1.msra.mxu0 0.0
    %485 = vmatprep.subr.mxu0 0.0
    %486 = vmatpush1.msra.mxu0 0.0
    %487 = vmatprep.subr.mxu0 0.0
    %488 = vmatpush1.msra.mxu0 0.0
    %489 = vmatprep.subr.mxu0 0.0
    %490 = vmatpush1.msra.mxu0 0.0
    %491 = vmatprep.subr.mxu0 0.0
    %492 = vmatpush1.msra.mxu0 0.0
    %493 = vmatprep.subr.mxu0 0.0
    %494 = vmatpush1.msra.mxu0 0.0
    %495 = vmatprep.subr.mxu0 0.0
    %496 = vmatpush1.msra.mxu0 0.0
    %497 = vmatprep.subr.mxu0 0.0
    %498 = vmatpush1.msra.mxu0 0.0
    %499 = vmatprep.subr.mxu0 0.0
    %500 = vmatpush1.msra.mxu0 0.0
    %501 = vmatprep.subr.mxu0 0.0
    %502 = vmatpush1.msra.mxu0 0.0
    %503 = vmatprep.subr.mxu0 0.0
    %504 = vmatpush1.msra.mxu0 0.0
    %505 = vmatprep.subr.mxu0 0.0
    %506 = vmatpush1.msra.mxu0 0.0
    %507 = vmatprep.subr.mxu0 0.0
    %508 = vmatpush1.msra.mxu0 0.0
    %509 = vmatprep.subr.mxu0 0.0
    %510 = vmatpush1.msra.mxu0 0.0
    %511 = vmatprep.subr.mxu0 0.0
    %512 = vmatpush1.msra.mxu0 0.0
    %513 = vmatprep.subr.mxu0 0.0
    %514 = vmatpush1.msra.mxu0 0.0
    %515 = vmatprep.subr.mxu0 0.0
    %516 = vmatpush1.msra.mxu0 0.0
    %517 = vmatprep.subr.mxu0 0.0
    %518 = vmatpush1.msra.mxu0 0.0
    %519 = vmatprep.subr.mxu0 0.0
    %520 = vmatpush1.msra.mxu0 0.0
    %521 = vmatprep.subr.mxu0 0.0
    %522 = vmatpush1.msra.mxu0 0.0
    %523 = vmatprep.subr.mxu0 0.0
    %524 = vmatpush1.msra.mxu0 0.0
    %525 = vmatprep.subr.mxu0 0.0
    %526 = vmatpush1.msra.mxu0 0.0
    %527 = vmatprep.subr.mxu0 0.0
    %528 = vmatpush1.msra.mxu0 0.0
    %529 = vmatprep.subr.mxu0 0.0
    %530 = vmatpush1.msra.mxu0 0.0
    %531 = vmatprep.subr.mxu0 0.0
    %532 = vmatpush1.msra.mxu0 0.0
    %533 = vmatprep.subr.mxu0 0.0
    %534 = vmatpush1.msra.mxu0 0.0
    %535 = vmatprep.mubr.f32.mxu0 0.0
    %536 = vmatmul.mubr.f32.gmra.mrb[0].mxu0 %v469
    %v537 = vpop.f32.mrb[0].mxu0
    %v538 = vadd.f32 0.0, %v537
    %v539 = vpop.f32.mrb[0].mxu0
    %540 = vdwg.mxu0
    %v542 = vrot.slane %v538, 2
    %v544 = vadd.f32 %v342, %v542
    %v545 = vxor.u32 %v544, 2147483648
    %v546 = vmul.f32 %v545, 1.442695
    %v547 = vpow.pop %v546
    %v548 = vadd.f32 %v547, 1.0
    %v549 = vrcp.pop %v548
    %v550 = vmul.f32 1.0, %v549
    %v551 = vtanh.pop %v544
    %v553 = vrot.slane %v358, 2
    %554 = vrot.lane.b32.xlu0 %v553, 32
    %v555 = vpop.permute.xlu0 %554
    %v557 = vmul.f32 %v550, %v555
    %559 = vrot.lane.b32.xlu0 %v551, 64
    %v560 = vpop.permute.xlu0 %559
    %v562 = vmul.f32 %v550, %v560
    %564 = vrot.lane.b32.xlu0 %v562, 32
    %v565 = vpop.permute.xlu0 %564
    %v567 = vadd.f32 %v557, %v565
    %v568 = vtanh.pop %v567
    %570 = vrot.lane.b32.xlu0 %v568, 64
    %v571 = vpop.permute.xlu0 %570
    %v573 = vmul.f32 %v550, %v571
    %575 = vrot.lane.b32.xlu0 %v573, 32
    %v576 = vpop.permute.xlu0 %575
    %vm578 = vcmask 261126
    %579 = vst.msk [vmem:[#allocation3 + $0x8] sm:$0xc0] %vm578, %v576
    %v580 = vsel %vm359, %v464, 0
    %582 = vmatprep.subr.mxu0 0.0
    %583 = vmatpush1.msra.mxu0 %v345
    %584 = vmatprep.subr.mxu0 0.0
    %585 = vmatpush1.msra.mxu0 %v346
    %586 = vmatprep.subr.mxu0 0.0
    %587 = vmatpush1.msra.mxu0 %v347
    %588 = vmatprep.subr.mxu0 0.0
    %589 = vmatpush1.msra.mxu0 %v348
    %590 = vmatprep.subr.mxu0 0.0
    %591 = vmatpush1.msra.mxu0 0.0
    %592 = vmatprep.subr.mxu0 0.0
    %593 = vmatpush1.msra.mxu0 0.0
    %594 = vmatprep.subr.mxu0 0.0
    %595 = vmatpush1.msra.mxu0 0.0
    %596 = vmatprep.subr.mxu0 0.0
    %597 = vmatpush1.msra.mxu0 0.0
    %598 = vmatprep.subr.mxu0 0.0
    %599 = vmatpush1.msra.mxu0 0.0
    %600 = vmatprep.subr.mxu0 0.0
    %601 = vmatpush1.msra.mxu0 0.0
    %602 = vmatprep.subr.mxu0 0.0
    %603 = vmatpush1.msra.mxu0 0.0
    %604 = vmatprep.subr.mxu0 0.0
    %605 = vmatpush1.msra.mxu0 0.0
    %606 = vmatprep.subr.mxu0 0.0
    %607 = vmatpush1.msra.mxu0 0.0
    %608 = vmatprep.subr.mxu0 0.0
    %609 = vmatpush1.msra.mxu0 0.0
    %610 = vmatprep.subr.mxu0 0.0
    %611 = vmatpush1.msra.mxu0 0.0
    %612 = vmatprep.subr.mxu0 0.0
    %613 = vmatpush1.msra.mxu0 0.0
    %614 = vmatprep.subr.mxu0 0.0
    %615 = vmatpush1.msra.mxu0 0.0
    %616 = vmatprep.subr.mxu0 0.0
    %617 = vmatpush1.msra.mxu0 0.0
    %618 = vmatprep.subr.mxu0 0.0
    %619 = vmatpush1.msra.mxu0 0.0
    %620 = vmatprep.subr.mxu0 0.0
    %621 = vmatpush1.msra.mxu0 0.0
    %622 = vmatprep.subr.mxu0 0.0
    %623 = vmatpush1.msra.mxu0 0.0
    %624 = vmatprep.subr.mxu0 0.0
    %625 = vmatpush1.msra.mxu0 0.0
    %626 = vmatprep.subr.mxu0 0.0
    %627 = vmatpush1.msra.mxu0 0.0
    %628 = vmatprep.subr.mxu0 0.0
    %629 = vmatpush1.msra.mxu0 0.0
    %630 = vmatprep.subr.mxu0 0.0
    %631 = vmatpush1.msra.mxu0 0.0
    %632 = vmatprep.subr.mxu0 0.0
    %633 = vmatpush1.msra.mxu0 0.0
    %634 = vmatprep.subr.mxu0 0.0
    %635 = vmatpush1.msra.mxu0 0.0
    %636 = vmatprep.subr.mxu0 0.0
    %637 = vmatpush1.msra.mxu0 0.0
    %638 = vmatprep.subr.mxu0 0.0
    %639 = vmatpush1.msra.mxu0 0.0
    %640 = vmatprep.subr.mxu0 0.0
    %641 = vmatpush1.msra.mxu0 0.0
    %642 = vmatprep.subr.mxu0 0.0
    %643 = vmatpush1.msra.mxu0 0.0
    %644 = vmatprep.subr.mxu0 0.0
    %645 = vmatpush1.msra.mxu0 0.0
    %646 = vmatprep.mubr.f32.mxu0 0.0
    %647 = vmatmul.mubr.f32.gmra.mrb[0].mxu0 %v580
    %v648 = vpop.f32.mrb[0].mxu0
    %v649 = vadd.f32 0.0, %v648
    %v650 = vpop.f32.mrb[0].mxu0
    %651 = vdwg.mxu0
    %v653 = vrot.slane %v649, 6
    %v655 = vadd.f32 %v251, %v653
    %v656 = vxor.u32 %v655, 2147483648
    %v657 = vmul.f32 %v656, 1.442695
    %v658 = vpow.pop %v657
    %v659 = vadd.f32 %v658, 1.0
    %v660 = vrcp.pop %v659
    %v661 = vmul.f32 1.0, %v660
    %v662 = vtanh.pop %v655
    %v664 = vrot.slane %v455, 6
    %v666 = vmul.f32 %v661, %v664
    %668 = vrot.lane.b32.xlu0 %v662, 64
    %v669 = vpop.permute.xlu0 %668
    %v671 = vmul.f32 %v661, %v669
    %673 = vrot.lane.b32.xlu0 %v671, 32
    %v674 = vpop.permute.xlu0 %673
    %v676 = vadd.f32 %v666, %v674
    %v677 = vtanh.pop %v676
    %679 = vrot.lane.b32.xlu0 %v677, 64
    %v680 = vpop.permute.xlu0 %679
    %v682 = vmul.f32 %v661, %v680
    %684 = vrot.lane.b32.xlu0 %v682, 32
    %v685 = vpop.permute.xlu0 %684
    %vm687 = vcmask 257026
    %688 = vst.msk [vmem:[#allocation2] sm:$0xc] %vm687, %v685
    %v689 = vrot.slane %v573, 6
    %690 = vrot.lane.b32.xlu0 %v689, 32
    %v691 = vpop.permute.xlu0 %690
    %v692 = vsel %vm359, %v691, 0
    %694 = vmatprep.subr.mxu0 0.0
    %695 = vmatpush1.msra.mxu0 %v349
    %696 = vmatprep.subr.mxu0 0.0
    %697 = vmatpush1.msra.mxu0 %v350
    %698 = vmatprep.subr.mxu0 0.0
    %699 = vmatpush1.msra.mxu0 %v351
    %700 = vmatprep.subr.mxu0 0.0
    %701 = vmatpush1.msra.mxu0 %v352
    %702 = vmatprep.subr.mxu0 0.0
    %703 = vmatpush1.msra.mxu0 0.0
    %704 = vmatprep.subr.mxu0 0.0
    %705 = vmatpush1.msra.mxu0 0.0
    %706 = vmatprep.subr.mxu0 0.0
    %707 = vmatpush1.msra.mxu0 0.0
    %708 = vmatprep.subr.mxu0 0.0
    %709 = vmatpush1.msra.mxu0 0.0
    %710 = vmatprep.subr.mxu0 0.0
    %711 = vmatpush1.msra.mxu0 0.0
    %712 = vmatprep.subr.mxu0 0.0
    %713 = vmatpush1.msra.mxu0 0.0
    %714 = vmatprep.subr.mxu0 0.0
    %715 = vmatpush1.msra.mxu0 0.0
    %716 = vmatprep.subr.mxu0 0.0
    %717 = vmatpush1.msra.mxu0 0.0
    %718 = vmatprep.subr.mxu0 0.0
    %719 = vmatpush1.msra.mxu0 0.0
    %720 = vmatprep.subr.mxu0 0.0
    %721 = vmatpush1.msra.mxu0 0.0
    %722 = vmatprep.subr.mxu0 0.0
    %723 = vmatpush1.msra.mxu0 0.0
    %724 = vmatprep.subr.mxu0 0.0
    %725 = vmatpush1.msra.mxu0 0.0
    %726 = vmatprep.subr.mxu0 0.0
    %727 = vmatpush1.msra.mxu0 0.0
    %728 = vmatprep.subr.mxu0 0.0
    %729 = vmatpush1.msra.mxu0 0.0
    %730 = vmatprep.subr.mxu0 0.0
    %731 = vmatpush1.msra.mxu0 0.0
    %732 = vmatprep.subr.mxu0 0.0
    %733 = vmatpush1.msra.mxu0 0.0
    %734 = vmatprep.subr.mxu0 0.0
    %735 = vmatpush1.msra.mxu0 0.0
    %736 = vmatprep.subr.mxu0 0.0
    %737 = vmatpush1.msra.mxu0 0.0
    %738 = vmatprep.subr.mxu0 0.0
    %739 = vmatpush1.msra.mxu0 0.0
    %740 = vmatprep.subr.mxu0 0.0
    %741 = vmatpush1.msra.mxu0 0.0
    %742 = vmatprep.subr.mxu0 0.0
    %743 = vmatpush1.msra.mxu0 0.0
    %744 = vmatprep.subr.mxu0 0.0
    %745 = vmatpush1.msra.mxu0 0.0
    %746 = vmatprep.subr.mxu0 0.0
    %747 = vmatpush1.msra.mxu0 0.0
    %748 = vmatprep.subr.mxu0 0.0
    %749 = vmatpush1.msra.mxu0 0.0
    %750 = vmatprep.subr.mxu0 0.0
    %751 = vmatpush1.msra.mxu0 0.0
    %752 = vmatprep.subr.mxu0 0.0
    %753 = vmatpush1.msra.mxu0 0.0
    %754 = vmatprep.subr.mxu0 0.0
    %755 = vmatpush1.msra.mxu0 0.0
    %756 = vmatprep.subr.mxu0 0.0
    %757 = vmatpush1.msra.mxu0 0.0
    %758 = vmatprep.mubr.f32.mxu0 0.0
    %759 = vmatmul.mubr.f32.gmra.mrb[0].mxu0 %v692
    %v760 = vpop.f32.mrb[0].mxu0
    %v761 = vadd.f32 0.0, %v760
    %v762 = vpop.f32.mrb[0].mxu0
    %763 = vdwg.mxu0
    %v765 = vrot.slane %v761, 4
    %v767 = vadd.f32 %v342, %v765
    %v768 = vxor.u32 %v767, 2147483648
    %v769 = vmul.f32 %v768, 1.442695
    %v770 = vpow.pop %v769
    %v771 = vadd.f32 %v770, 1.0
    %v772 = vrcp.pop %v771
    %v773 = vmul.f32 1.0, %v772
    %v774 = vtanh.pop %v767
    %v776 = vrot.slane %v567, 2
    %v778 = vmul.f32 %v773, %v776
    %780 = vrot.lane.b32.xlu0 %v774, 64
    %v781 = vpop.permute.xlu0 %780
    %v783 = vmul.f32 %v773, %v781
    %785 = vrot.lane.b32.xlu0 %v783, 32
    %v786 = vpop.permute.xlu0 %785
    %v788 = vadd.f32 %v778, %v786
    %v789 = vtanh.pop %v788
    %791 = vrot.lane.b32.xlu0 %v789, 64
    %v792 = vpop.permute.xlu0 %791
    %v794 = vmul.f32 %v773, %v792
    %796 = vrot.lane.b32.xlu0 %v794, 32
    %v797 = vpop.permute.xlu0 %796
    %vm799 = vcmask 259076
    %800 = vst.msk [vmem:[#allocation3 + $0x8] sm:$0x30] %vm799, %v797
    %v801 = vrot.slane %v682, 2
    %802 = vrot.lane.b32.xlu0 %v801, 32
    %v803 = vpop.permute.xlu0 %802
    %v804 = vsel %vm359, %v803, 0
    %806 = vmatprep.subr.mxu0 0.0
    %807 = vmatpush1.msra.mxu0 %v345
    %808 = vmatprep.subr.mxu0 0.0
    %809 = vmatpush1.msra.mxu0 %v346
    %810 = vmatprep.subr.mxu0 0.0
    %811 = vmatpush1.msra.mxu0 %v347
    %812 = vmatprep.subr.mxu0 0.0
    %813 = vmatpush1.msra.mxu0 %v348
    %814 = vmatprep.subr.mxu0 0.0
    %815 = vmatpush1.msra.mxu0 0.0
    %816 = vmatprep.subr.mxu0 0.0
    %817 = vmatpush1.msra.mxu0 0.0
    %818 = vmatprep.subr.mxu0 0.0
    %819 = vmatpush1.msra.mxu0 0.0
    %820 = vmatprep.subr.mxu0 0.0
    %821 = vmatpush1.msra.mxu0 0.0
    %822 = vmatprep.subr.mxu0 0.0
    %823 = vmatpush1.msra.mxu0 0.0
    %824 = vmatprep.subr.mxu0 0.0
    %825 = vmatpush1.msra.mxu0 0.0
    %826 = vmatprep.subr.mxu0 0.0
    %827 = vmatpush1.msra.mxu0 0.0
    %828 = vmatprep.subr.mxu0 0.0
    %829 = vmatpush1.msra.mxu0 0.0
    %830 = vmatprep.subr.mxu0 0.0
    %831 = vmatpush1.msra.mxu0 0.0
    %832 = vmatprep.subr.mxu0 0.0
    %833 = vmatpush1.msra.mxu0 0.0
    %834 = vmatprep.subr.mxu0 0.0
    %835 = vmatpush1.msra.mxu0 0.0
    %836 = vmatprep.subr.mxu0 0.0
    %837 = vmatpush1.msra.mxu0 0.0
    %838 = vmatprep.subr.mxu0 0.0
    %839 = vmatpush1.msra.mxu0 0.0
    %840 = vmatprep.subr.mxu0 0.0
    %841 = vmatpush1.msra.mxu0 0.0
    %842 = vmatprep.subr.mxu0 0.0
    %843 = vmatpush1.msra.mxu0 0.0
    %844 = vmatprep.subr.mxu0 0.0
    %845 = vmatpush1.msra.mxu0 0.0
    %846 = vmatprep.subr.mxu0 0.0
    %847 = vmatpush1.msra.mxu0 0.0
    %848 = vmatprep.subr.mxu0 0.0
    %849 = vmatpush1.msra.mxu0 0.0
    %850 = vmatprep.subr.mxu0 0.0
    %851 = vmatpush1.msra.mxu0 0.0
    %852 = vmatprep.subr.mxu0 0.0
    %853 = vmatpush1.msra.mxu0 0.0
    %854 = vmatprep.subr.mxu0 0.0
    %855 = vmatpush1.msra.mxu0 0.0
    %856 = vmatprep.subr.mxu0 0.0
    %857 = vmatpush1.msra.mxu0 0.0
    %858 = vmatprep.subr.mxu0 0.0
    %859 = vmatpush1.msra.mxu0 0.0
    %860 = vmatprep.subr.mxu0 0.0
    %861 = vmatpush1.msra.mxu0 0.0
    %862 = vmatprep.subr.mxu0 0.0
    %863 = vmatpush1.msra.mxu0 0.0
    %864 = vmatprep.subr.mxu0 0.0
    %865 = vmatpush1.msra.mxu0 0.0
    %866 = vmatprep.subr.mxu0 0.0
    %867 = vmatpush1.msra.mxu0 0.0
    %868 = vmatprep.subr.mxu0 0.0
    %869 = vmatpush1.msra.mxu0 0.0
    %870 = vmatprep.mubr.f32.mxu0 0.0
    %871 = vmatmul.mubr.f32.gmra.mrb[0].mxu0 %v804
    %v872 = vpop.f32.mrb[0].mxu0
    %v873 = vadd.f32 0.0, %v872
    %v874 = vpop.f32.mrb[0].mxu0
    %875 = vdwg.mxu0
    %v877 = vrot.slane %v873, 4
    %v879 = vadd.f32 %v251, %v877
    %v880 = vxor.u32 %v879, 2147483648
    %v881 = vmul.f32 %v880, 1.442695
    %v882 = vpow.pop %v881
    %v883 = vadd.f32 %v882, 1.0
    %v884 = vrcp.pop %v883
    %v885 = vmul.f32 1.0, %v884
    %v886 = vtanh.pop %v879
    %v888 = vrot.slane %v676, 6
    %v890 = vmul.f32 %v885, %v888
    %892 = vrot.lane.b32.xlu0 %v886, 64
    %v893 = vpop.permute.xlu0 %892
    %v895 = vmul.f32 %v885, %v893
    %897 = vrot.lane.b32.xlu0 %v895, 32
    %v898 = vpop.permute.xlu0 %897
    %v900 = vadd.f32 %v890, %v898
    %v901 = vtanh.pop %v900
    %903 = vrot.lane.b32.xlu0 %v901, 64
    %v904 = vpop.permute.xlu0 %903
    %v906 = vmul.f32 %v885, %v904
    %908 = vrot.lane.b32.xlu0 %v906, 32
    %v909 = vpop.permute.xlu0 %908
    %911 = vst.msk [vmem:[#allocation2] sm:$0x30] %vm799, %v909
    %v912 = vrot.slane %v794, 4
    %913 = vrot.lane.b32.xlu0 %v912, 32
    %v914 = vpop.permute.xlu0 %913
    %v915 = vsel %vm359, %v914, 0
    %917 = vmatprep.subr.mxu0 0.0
    %918 = vmatpush1.msra.mxu0 %v349
    %919 = vmatprep.subr.mxu0 0.0
    %920 = vmatpush1.msra.mxu0 %v350
    %921 = vmatprep.subr.mxu0 0.0
    %922 = vmatpush1.msra.mxu0 %v351
    %923 = vmatprep.subr.mxu0 0.0
    %924 = vmatpush1.msra.mxu0 %v352
    %925 = vmatprep.subr.mxu0 0.0
    %926 = vmatpush1.msra.mxu0 0.0
    %927 = vmatprep.subr.mxu0 0.0
    %928 = vmatpush1.msra.mxu0 0.0
    %929 = vmatprep.subr.mxu0 0.0
    %930 = vmatpush1.msra.mxu0 0.0
    %931 = vmatprep.subr.mxu0 0.0
    %932 = vmatpush1.msra.mxu0 0.0
    %933 = vmatprep.subr.mxu0 0.0
    %934 = vmatpush1.msra.mxu0 0.0
    %935 = vmatprep.subr.mxu0 0.0
    %936 = vmatpush1.msra.mxu0 0.0
    %937 = vmatprep.subr.mxu0 0.0
    %938 = vmatpush1.msra.mxu0 0.0
    %939 = vmatprep.subr.mxu0 0.0
    %940 = vmatpush1.msra.mxu0 0.0
    %941 = vmatprep.subr.mxu0 0.0
    %942 = vmatpush1.msra.mxu0 0.0
    %943 = vmatprep.subr.mxu0 0.0
    %944 = vmatpush1.msra.mxu0 0.0
    %945 = vmatprep.subr.mxu0 0.0
    %946 = vmatpush1.msra.mxu0 0.0
    %947 = vmatprep.subr.mxu0 0.0
    %948 = vmatpush1.msra.mxu0 0.0
    %949 = vmatprep.subr.mxu0 0.0
    %950 = vmatpush1.msra.mxu0 0.0
    %951 = vmatprep.subr.mxu0 0.0
    %952 = vmatpush1.msra.mxu0 0.0
    %953 = vmatprep.subr.mxu0 0.0
    %954 = vmatpush1.msra.mxu0 0.0
    %955 = vmatprep.subr.mxu0 0.0
    %956 = vmatpush1.msra.mxu0 0.0
    %957 = vmatprep.subr.mxu0 0.0
    %958 = vmatpush1.msra.mxu0 0.0
    %959 = vmatprep.subr.mxu0 0.0
    %960 = vmatpush1.msra.mxu0 0.0
    %961 = vmatprep.subr.mxu0 0.0
    %962 = vmatpush1.msra.mxu0 0.0
    %963 = vmatprep.subr.mxu0 0.0
    %964 = vmatpush1.msra.mxu0 0.0
    %965 = vmatprep.subr.mxu0 0.0
    %966 = vmatpush1.msra.mxu0 0.0
    %967 = vmatprep.subr.mxu0 0.0
    %968 = vmatpush1.msra.mxu0 0.0
    %969 = vmatprep.subr.mxu0 0.0
    %970 = vmatpush1.msra.mxu0 0.0
    %971 = vmatprep.subr.mxu0 0.0
    %972 = vmatpush1.msra.mxu0 0.0
    %973 = vmatprep.subr.mxu0 0.0
    %974 = vmatpush1.msra.mxu0 0.0
    %975 = vmatprep.subr.mxu0 0.0
    %976 = vmatpush1.msra.mxu0 0.0
    %977 = vmatprep.subr.mxu0 0.0
    %978 = vmatpush1.msra.mxu0 0.0
    %979 = vmatprep.subr.mxu0 0.0
    %980 = vmatpush1.msra.mxu0 0.0
    %981 = vmatprep.mubr.f32.mxu0 0.0
    %982 = vmatmul.mubr.f32.gmra.mrb[0].mxu0 %v915
    %v983 = vpop.f32.mrb[0].mxu0
    %v984 = vadd.f32 0.0, %v983
    %v985 = vpop.f32.mrb[0].mxu0
    %986 = vdwg.mxu0
    %v988 = vrot.slane %v984, 6
    %v990 = vadd.f32 %v342, %v988
    %v991 = vxor.u32 %v990, 2147483648
    %v992 = vmul.f32 %v991, 1.442695
    %v993 = vpow.pop %v992
    %v994 = vadd.f32 %v993, 1.0
    %v995 = vrcp.pop %v994
    %v996 = vmul.f32 1.0, %v995
    %v997 = vtanh.pop %v990
    %v999 = vrot.slane %v788, 2
    %v1001 = vmul.f32 %v996, %v999
    %1003 = vrot.lane.b32.xlu0 %v997, 64
    %v1004 = vpop.permute.xlu0 %1003
    %v1006 = vmul.f32 %v996, %v1004
    %1008 = vrot.lane.b32.xlu0 %v1006, 32
    %v1009 = vpop.permute.xlu0 %1008
    %v1011 = vadd.f32 %v1001, %v1009
    %v1012 = vtanh.pop %v1011
    %1014 = vrot.lane.b32.xlu0 %v1012, 64
    %v1015 = vpop.permute.xlu0 %1014
    %v1017 = vmul.f32 %v996, %v1015
    %1019 = vrot.lane.b32.xlu0 %v1017, 32
    %v1020 = vpop.permute.xlu0 %1019
    %1022 = vst.msk [vmem:[#allocation3 + $0x8] sm:$0xc] %vm687, %v1020
    %v1023 = vrot.slane %v906, 4
    %1024 = vrot.lane.b32.xlu0 %v1023, 32
    %v1025 = vpop.permute.xlu0 %1024
    %v1026 = vsel %vm359, %v1025, 0
    %1028 = vmatprep.subr.mxu0 0.0
    %1029 = vmatpush1.msra.mxu0 %v345
    %1030 = vmatprep.subr.mxu0 0.0
    %1031 = vmatpush1.msra.mxu0 %v346
    %1032 = vmatprep.subr.mxu0 0.0
    %1033 = vmatpush1.msra.mxu0 %v347
    %1034 = vmatprep.subr.mxu0 0.0
    %1035 = vmatpush1.msra.mxu0 %v348
    %1036 = vmatprep.subr.mxu0 0.0
    %1037 = vmatpush1.msra.mxu0 0.0
    %1038 = vmatprep.subr.mxu0 0.0
    %1039 = vmatpush1.msra.mxu0 0.0
    %1040 = vmatprep.subr.mxu0 0.0
    %1041 = vmatpush1.msra.mxu0 0.0
    %1042 = vmatprep.subr.mxu0 0.0
    %1043 = vmatpush1.msra.mxu0 0.0
    %1044 = vmatprep.subr.mxu0 0.0
    %1045 = vmatpush1.msra.mxu0 0.0
    %1046 = vmatprep.subr.mxu0 0.0
    %1047 = vmatpush1.msra.mxu0 0.0
    %1048 = vmatprep.subr.mxu0 0.0
    %1049 = vmatpush1.msra.mxu0 0.0
    %1050 = vmatprep.subr.mxu0 0.0
    %1051 = vmatpush1.msra.mxu0 0.0
    %1052 = vmatprep.subr.mxu0 0.0
    %1053 = vmatpush1.msra.mxu0 0.0
    %1054 = vmatprep.subr.mxu0 0.0
    %1055 = vmatpush1.msra.mxu0 0.0
    %1056 = vmatprep.subr.mxu0 0.0
    %1057 = vmatpush1.msra.mxu0 0.0
    %1058 = vmatprep.subr.mxu0 0.0
    %1059 = vmatpush1.msra.mxu0 0.0
    %1060 = vmatprep.subr.mxu0 0.0
    %1061 = vmatpush1.msra.mxu0 0.0
    %1062 = vmatprep.subr.mxu0 0.0
    %1063 = vmatpush1.msra.mxu0 0.0
    %1064 = vmatprep.subr.mxu0 0.0
    %1065 = vmatpush1.msra.mxu0 0.0
    %1066 = vmatprep.subr.mxu0 0.0
    %1067 = vmatpush1.msra.mxu0 0.0
    %1068 = vmatprep.subr.mxu0 0.0
    %1069 = vmatpush1.msra.mxu0 0.0
    %1070 = vmatprep.subr.mxu0 0.0
    %1071 = vmatpush1.msra.mxu0 0.0
    %1072 = vmatprep.subr.mxu0 0.0
    %1073 = vmatpush1.msra.mxu0 0.0
    %1074 = vmatprep.subr.mxu0 0.0
    %1075 = vmatpush1.msra.mxu0 0.0
    %1076 = vmatprep.subr.mxu0 0.0
    %1077 = vmatpush1.msra.mxu0 0.0
    %1078 = vmatprep.subr.mxu0 0.0
    %1079 = vmatpush1.msra.mxu0 0.0
    %1080 = vmatprep.subr.mxu0 0.0
    %1081 = vmatpush1.msra.mxu0 0.0
    %1082 = vmatprep.subr.mxu0 0.0
    %1083 = vmatpush1.msra.mxu0 0.0
    %1084 = vmatprep.subr.mxu0 0.0
    %1085 = vmatpush1.msra.mxu0 0.0
    %1086 = vmatprep.subr.mxu0 0.0
    %1087 = vmatpush1.msra.mxu0 0.0
    %1088 = vmatprep.subr.mxu0 0.0
    %1089 = vmatpush1.msra.mxu0 0.0
    %1090 = vmatprep.subr.mxu0 0.0
    %1091 = vmatpush1.msra.mxu0 0.0
    %1092 = vmatprep.mubr.f32.mxu0 0.0
    %1093 = vmatmul.mubr.f32.gmra.mrb[0].mxu0 %v1026
    %v1094 = vpop.f32.mrb[0].mxu0
    %v1095 = vadd.f32 0.0, %v1094
    %v1096 = vpop.f32.mrb[0].mxu0
    %1097 = vdwg.mxu0
    %v1099 = vrot.slane %v1095, 2
    %v1101 = vadd.f32 %v251, %v1099
    %v1102 = vxor.u32 %v1101, 2147483648
    %v1103 = vmul.f32 %v1102, 1.442695
    %v1104 = vpow.pop %v1103
    %v1105 = vadd.f32 %v1104, 1.0
    %v1106 = vrcp.pop %v1105
    %v1107 = vmul.f32 1.0, %v1106
    %v1108 = vtanh.pop %v1101
    %v1110 = vrot.slane %v900, 6
    %v1112 = vmul.f32 %v1107, %v1110
    %1114 = vrot.lane.b32.xlu0 %v1108, 64
    %v1115 = vpop.permute.xlu0 %1114
    %v1117 = vmul.f32 %v1107, %v1115
    %1119 = vrot.lane.b32.xlu0 %v1117, 32
    %v1120 = vpop.permute.xlu0 %1119
    %v1122 = vadd.f32 %v1112, %v1120
    %v1123 = vtanh.pop %v1122
    %1125 = vrot.lane.b32.xlu0 %v1123, 64
    %v1126 = vpop.permute.xlu0 %1125
    %v1128 = vmul.f32 %v1107, %v1126
    %1130 = vrot.lane.b32.xlu0 %v1128, 32
    %v1131 = vpop.permute.xlu0 %1130
    %1133 = vst.msk [vmem:[#allocation2] sm:$0xc0] %vm578, %v1131
    %v1134 = vrot.slane %v1017, 2
    %1135 = vrot.lane.b32.xlu0 %v1134, 32
    %v1136 = vpop.permute.xlu0 %1135
    %v1137 = vsel %vm359, %v1136, 0
    %1139 = vmatprep.subr.mxu0 0.0
    %1140 = vmatpush1.msra.mxu0 %v349
    %1141 = vmatprep.subr.mxu0 0.0
    %1142 = vmatpush1.msra.mxu0 %v350
    %1143 = vmatprep.subr.mxu0 0.0
    %1144 = vmatpush1.msra.mxu0 %v351
    %1145 = vmatprep.subr.mxu0 0.0
    %1146 = vmatpush1.msra.mxu0 %v352
    %1147 = vmatprep.subr.mxu0 0.0
    %1148 = vmatpush1.msra.mxu0 0.0
    %1149 = vmatprep.subr.mxu0 0.0
    %1150 = vmatpush1.msra.mxu0 0.0
    %1151 = vmatprep.subr.mxu0 0.0
    %1152 = vmatpush1.msra.mxu0 0.0
    %1153 = vmatprep.subr.mxu0 0.0
    %1154 = vmatpush1.msra.mxu0 0.0
    %1155 = vmatprep.subr.mxu0 0.0
    %1156 = vmatpush1.msra.mxu0 0.0
    %1157 = vmatprep.subr.mxu0 0.0
    %1158 = vmatpush1.msra.mxu0 0.0
    %1159 = vmatprep.subr.mxu0 0.0
    %1160 = vmatpush1.msra.mxu0 0.0
    %1161 = vmatprep.subr.mxu0 0.0
    %1162 = vmatpush1.msra.mxu0 0.0
    %1163 = vmatprep.subr.mxu0 0.0
    %1164 = vmatpush1.msra.mxu0 0.0
    %1165 = vmatprep.subr.mxu0 0.0
    %1166 = vmatpush1.msra.mxu0 0.0
    %1167 = vmatprep.subr.mxu0 0.0
    %1168 = vmatpush1.msra.mxu0 0.0
    %1169 = vmatprep.subr.mxu0 0.0
    %1170 = vmatpush1.msra.mxu0 0.0
    %1171 = vmatprep.subr.mxu0 0.0
    %1172 = vmatpush1.msra.mxu0 0.0
    %1173 = vmatprep.subr.mxu0 0.0
    %1174 = vmatpush1.msra.mxu0 0.0
    %1175 = vmatprep.subr.mxu0 0.0
    %1176 = vmatpush1.msra.mxu0 0.0
    %1177 = vmatprep.subr.mxu0 0.0
    %1178 = vmatpush1.msra.mxu0 0.0
    %1179 = vmatprep.subr.mxu0 0.0
    %1180 = vmatpush1.msra.mxu0 0.0
    %1181 = vmatprep.subr.mxu0 0.0
    %1182 = vmatpush1.msra.mxu0 0.0
    %1183 = vmatprep.subr.mxu0 0.0
    %1184 = vmatpush1.msra.mxu0 0.0
    %1185 = vmatprep.subr.mxu0 0.0
    %1186 = vmatpush1.msra.mxu0 0.0
    %1187 = vmatprep.subr.mxu0 0.0
    %1188 = vmatpush1.msra.mxu0 0.0
    %1189 = vmatprep.subr.mxu0 0.0
    %1190 = vmatpush1.msra.mxu0 0.0
    %1191 = vmatprep.subr.mxu0 0.0
    %1192 = vmatpush1.msra.mxu0 0.0
    %1193 = vmatprep.subr.mxu0 0.0
    %1194 = vmatpush1.msra.mxu0 0.0
    %1195 = vmatprep.subr.mxu0 0.0
    %1196 = vmatpush1.msra.mxu0 0.0
    %1197 = vmatprep.subr.mxu0 0.0
    %1198 = vmatpush1.msra.mxu0 0.0
    %1199 = vmatprep.subr.mxu0 0.0
    %1200 = vmatpush1.msra.mxu0 0.0
    %1201 = vmatprep.subr.mxu0 0.0
    %1202 = vmatpush1.msra.mxu0 0.0
    %1203 = vmatprep.mubr.f32.mxu0 0.0
    %1204 = vmatmul.mubr.f32.gmra.mrb[0].mxu0 %v1137
    %v1205 = vpop.f32.mrb[0].mxu0
    %v1206 = vadd.f32 0.0, %v1205
    %v1207 = vpop.f32.mrb[0].mxu0
    %1208 = vdwg.mxu0
    %v1209 = vadd.f32 %v342, %v1206
    %v1210 = vxor.u32 %v1209, 2147483648
    %v1211 = vmul.f32 %v1210, 1.442695
    %v1212 = vpow.pop %v1211
    %v1213 = vadd.f32 %v1212, 1.0
    %v1214 = vrcp.pop %v1213
    %v1215 = vmul.f32 1.0, %v1214
    %v1216 = vtanh.pop %v1209
    %v1218 = vrot.slane %v1011, 2
    %v1220 = vmul.f32 %v1215, %v1218
    %1222 = vrot.lane.b32.xlu0 %v1216, 64
    %v1223 = vpop.permute.xlu0 %1222
    %v1225 = vmul.f32 %v1215, %v1223
    %1227 = vrot.lane.b32.xlu0 %v1225, 32
    %v1228 = vpop.permute.xlu0 %1227
    %v1230 = vadd.f32 %v1220, %v1228
    %v1231 = vtanh.pop %v1230
    %1233 = vrot.lane.b32.xlu0 %v1231, 64
    %v1234 = vpop.permute.xlu0 %1233
    %v1236 = vmul.f32 %v1215, %v1234
    %1238 = vrot.lane.b32.xlu0 %v1236, 32
    %v1239 = vpop.permute.xlu0 %1238
    %1241 = vst.msk [vmem:[#allocation3 + $0x8] sm:$0x3] %vm466, %v1239
    %v1242 = vrot.slane %v1128, 6
    %1243 = vrot.lane.b32.xlu0 %v1242, 32
    %v1244 = vpop.permute.xlu0 %1243
    %v1245 = vsel %vm359, %v1244, 0
    %1247 = vmatprep.subr.mxu0 0.0
    %1248 = vmatpush1.msra.mxu0 %v345
    %1249 = vmatprep.subr.mxu0 0.0
    %1250 = vmatpush1.msra.mxu0 %v346
    %1251 = vmatprep.subr.mxu0 0.0
    %1252 = vmatpush1.msra.mxu0 %v347
    %1253 = vmatprep.subr.mxu0 0.0
    %1254 = vmatpush1.msra.mxu0 %v348
    %1255 = vmatprep.subr.mxu0 0.0
    %1256 = vmatpush1.msra.mxu0 0.0
    %1257 = vmatprep.subr.mxu0 0.0
    %1258 = vmatpush1.msra.mxu0 0.0
    %1259 = vmatprep.subr.mxu0 0.0
    %1260 = vmatpush1.msra.mxu0 0.0
    %1261 = vmatprep.subr.mxu0 0.0
    %1262 = vmatpush1.msra.mxu0 0.0
    %1263 = vmatprep.subr.mxu0 0.0
    %1264 = vmatpush1.msra.mxu0 0.0
    %1265 = vmatprep.subr.mxu0 0.0
    %1266 = vmatpush1.msra.mxu0 0.0
    %1267 = vmatprep.subr.mxu0 0.0
    %1268 = vmatpush1.msra.mxu0 0.0
    %1269 = vmatprep.subr.mxu0 0.0
    %1270 = vmatpush1.msra.mxu0 0.0
    %1271 = vmatprep.subr.mxu0 0.0
    %1272 = vmatpush1.msra.mxu0 0.0
    %1273 = vmatprep.subr.mxu0 0.0
    %1274 = vmatpush1.msra.mxu0 0.0
    %1275 = vmatprep.subr.mxu0 0.0
    %1276 = vmatpush1.msra.mxu0 0.0
    %1277 = vmatprep.subr.mxu0 0.0
    %1278 = vmatpush1.msra.mxu0 0.0
    %1279 = vmatprep.subr.mxu0 0.0
    %1280 = vmatpush1.msra.mxu0 0.0
    %1281 = vmatprep.subr.mxu0 0.0
    %1282 = vmatpush1.msra.mxu0 0.0
    %1283 = vmatprep.subr.mxu0 0.0
    %1284 = vmatpush1.msra.mxu0 0.0
    %1285 = vmatprep.subr.mxu0 0.0
    %1286 = vmatpush1.msra.mxu0 0.0
    %1287 = vmatprep.subr.mxu0 0.0
    %1288 = vmatpush1.msra.mxu0 0.0
    %1289 = vmatprep.subr.mxu0 0.0
    %1290 = vmatpush1.msra.mxu0 0.0
    %1291 = vmatprep.subr.mxu0 0.0
    %1292 = vmatpush1.msra.mxu0 0.0
    %1293 = vmatprep.subr.mxu0 0.0
    %1294 = vmatpush1.msra.mxu0 0.0
    %1295 = vmatprep.subr.mxu0 0.0
    %1296 = vmatpush1.msra.mxu0 0.0
    %1297 = vmatprep.subr.mxu0 0.0
    %1298 = vmatpush1.msra.mxu0 0.0
    %1299 = vmatprep.subr.mxu0 0.0
    %1300 = vmatpush1.msra.mxu0 0.0
    %1301 = vmatprep.subr.mxu0 0.0
    %1302 = vmatpush1.msra.mxu0 0.0
    %1303 = vmatprep.subr.mxu0 0.0
    %1304 = vmatpush1.msra.mxu0 0.0
    %1305 = vmatprep.subr.mxu0 0.0
    %1306 = vmatpush1.msra.mxu0 0.0
    %1307 = vmatprep.subr.mxu0 0.0
    %1308 = vmatpush1.msra.mxu0 0.0
    %1309 = vmatprep.subr.mxu0 0.0
    %1310 = vmatpush1.msra.mxu0 0.0
    %1311 = vmatprep.mubr.f32.mxu0 0.0
    %1312 = vmatmul.mubr.f32.gmra.mrb[0].mxu0 %v1245
    %v1313 = vpop.f32.mrb[0].mxu0
    %v1314 = vadd.f32 0.0, %v1313
    %v1315 = vpop.f32.mrb[0].mxu0
    %1316 = vdwg.mxu0
    %v1317 = vadd.f32 %v256, %v1314
    %v1318 = vxor.u32 %v1317, 2147483648
    %v1319 = vmul.f32 %v1318, 1.442695
    %v1320 = vpow.pop %v1319
    %v1321 = vadd.f32 %v1320, 1.0
    %v1322 = vrcp.pop %v1321
    %v1323 = vmul.f32 1.0, %v1322
    %v1324 = vtanh.pop %v1317
    %v1326 = vrot.slane %v1122, 6
    %v1328 = vmul.f32 %v1323, %v1326
    %1330 = vrot.lane.b32.xlu0 %v1324, 64
    %v1331 = vpop.permute.xlu0 %1330
    %v1333 = vmul.f32 %v1323, %v1331
    %1335 = vrot.lane.b32.xlu0 %v1333, 32
    %v1336 = vpop.permute.xlu0 %1335
    %v1338 = vadd.f32 %v1328, %v1336
    %v1339 = vtanh.pop %v1338
    %1341 = vrot.lane.b32.xlu0 %v1339, 64
    %v1342 = vpop.permute.xlu0 %1341
    %v1344 = vmul.f32 %v1323, %v1342
    %1346 = vrot.lane.b32.xlu0 %v1344, 32
    %v1347 = vpop.permute.xlu0 %1346
    %1349 = vst.msk [vmem:[#allocation2 + $0x8] sm:$0x3] %vm466, %v1347
    %v1350 = vsel %vm359, %v1239, 0
    %1352 = vmatprep.subr.mxu0 0.0
    %1353 = vmatpush1.msra.mxu0 %v349
    %1354 = vmatprep.subr.mxu0 0.0
    %1355 = vmatpush1.msra.mxu0 %v350
    %1356 = vmatprep.subr.mxu0 0.0
    %1357 = vmatpush1.msra.mxu0 %v351
    %1358 = vmatprep.subr.mxu0 0.0
    %1359 = vmatpush1.msra.mxu0 %v352
    %1360 = vmatprep.subr.mxu0 0.0
    %1361 = vmatpush1.msra.mxu0 0.0
    %1362 = vmatprep.subr.mxu0 0.0
    %1363 = vmatpush1.msra.mxu0 0.0
    %1364 = vmatprep.subr.mxu0 0.0
    %1365 = vmatpush1.msra.mxu0 0.0
    %1366 = vmatprep.subr.mxu0 0.0
    %1367 = vmatpush1.msra.mxu0 0.0
    %1368 = vmatprep.subr.mxu0 0.0
    %1369 = vmatpush1.msra.mxu0 0.0
    %1370 = vmatprep.subr.mxu0 0.0
    %1371 = vmatpush1.msra.mxu0 0.0
    %1372 = vmatprep.subr.mxu0 0.0
    %1373 = vmatpush1.msra.mxu0 0.0
    %1374 = vmatprep.subr.mxu0 0.0
    %1375 = vmatpush1.msra.mxu0 0.0
    %1376 = vmatprep.subr.mxu0 0.0
    %1377 = vmatpush1.msra.mxu0 0.0
    %1378 = vmatprep.subr.mxu0 0.0
    %1379 = vmatpush1.msra.mxu0 0.0
    %1380 = vmatprep.subr.mxu0 0.0
    %1381 = vmatpush1.msra.mxu0 0.0
    %1382 = vmatprep.subr.mxu0 0.0
    %1383 = vmatpush1.msra.mxu0 0.0
    %1384 = vmatprep.subr.mxu0 0.0
    %1385 = vmatpush1.msra.mxu0 0.0
    %1386 = vmatprep.subr.mxu0 0.0
    %1387 = vmatpush1.msra.mxu0 0.0
    %1388 = vmatprep.subr.mxu0 0.0
    %1389 = vmatpush1.msra.mxu0 0.0
    %1390 = vmatprep.subr.mxu0 0.0
    %1391 = vmatpush1.msra.mxu0 0.0
    %1392 = vmatprep.subr.mxu0 0.0
    %1393 = vmatpush1.msra.mxu0 0.0
    %1394 = vmatprep.subr.mxu0 0.0
    %1395 = vmatpush1.msra.mxu0 0.0
    %1396 = vmatprep.subr.mxu0 0.0
    %1397 = vmatpush1.msra.mxu0 0.0
    %1398 = vmatprep.subr.mxu0 0.0
    %1399 = vmatpush1.msra.mxu0 0.0
    %1400 = vmatprep.subr.mxu0 0.0
    %1401 = vmatpush1.msra.mxu0 0.0
    %1402 = vmatprep.subr.mxu0 0.0
    %1403 = vmatpush1.msra.mxu0 0.0
    %1404 = vmatprep.subr.mxu0 0.0
    %1405 = vmatpush1.msra.mxu0 0.0
    %1406 = vmatprep.subr.mxu0 0.0
    %1407 = vmatpush1.msra.mxu0 0.0
    %1408 = vmatprep.subr.mxu0 0.0
    %1409 = vmatpush1.msra.mxu0 0.0
    %1410 = vmatprep.subr.mxu0 0.0
    %1411 = vmatpush1.msra.mxu0 0.0
    %1412 = vmatprep.subr.mxu0 0.0
    %1413 = vmatpush1.msra.mxu0 0.0
    %1414 = vmatprep.subr.mxu0 0.0
    %1415 = vmatpush1.msra.mxu0 0.0
    %1416 = vmatprep.mubr.f32.mxu0 0.0
    %1417 = vmatmul.mubr.f32.gmra.mrb[0].mxu0 %v1350
    %v1418 = vpop.f32.mrb[0].mxu0
    %v1419 = vadd.f32 0.0, %v1418
    %v1420 = vpop.f32.mrb[0].mxu0
    %1421 = vdwg.mxu0
    %v1423 = vrot.slane %v1419, 2
    %v1425 = vadd.f32 %v337, %v1423
    %v1426 = vxor.u32 %v1425, 2147483648
    %v1427 = vmul.f32 %v1426, 1.442695
    %v1428 = vpow.pop %v1427
    %v1429 = vadd.f32 %v1428, 1.0
    %v1430 = vrcp.pop %v1429
    %v1431 = vmul.f32 1.0, %v1430
    %v1432 = vtanh.pop %v1425
    %v1434 = vrot.slane %v1230, 2
    %v1436 = vmul.f32 %v1431, %v1434
    %1438 = vrot.lane.b32.xlu0 %v1432, 64
    %v1439 = vpop.permute.xlu0 %1438
    %v1441 = vmul.f32 %v1431, %v1439
    %1443 = vrot.lane.b32.xlu0 %v1441, 32
    %v1444 = vpop.permute.xlu0 %1443
    %v1446 = vadd.f32 %v1436, %v1444
    %v1447 = vtanh.pop %v1446
    %1449 = vrot.lane.b32.xlu0 %v1447, 64
    %v1450 = vpop.permute.xlu0 %1449
    %v1452 = vmul.f32 %v1431, %v1450
    %1454 = vrot.lane.b32.xlu0 %v1452, 32
    %v1455 = vpop.permute.xlu0 %1454
    %1457 = vst.msk [vmem:[#allocation3] sm:$0xc0] %vm578, %v1455
    %v1458 = vsel %vm359, %v1347, 0
    %1460 = vmatprep.subr.mxu0 0.0
    %1461 = vmatpush1.msra.mxu0 %v345
    %1462 = vmatprep.subr.mxu0 0.0
    %1463 = vmatpush1.msra.mxu0 %v346
    %1464 = vmatprep.subr.mxu0 0.0
    %1465 = vmatpush1.msra.mxu0 %v347
    %1466 = vmatprep.subr.mxu0 0.0
    %1467 = vmatpush1.msra.mxu0 %v348
    %1468 = vmatprep.subr.mxu0 0.0
    %1469 = vmatpush1.msra.mxu0 0.0
    %1470 = vmatprep.subr.mxu0 0.0
    %1471 = vmatpush1.msra.mxu0 0.0
    %1472 = vmatprep.subr.mxu0 0.0
    %1473 = vmatpush1.msra.mxu0 0.0
    %1474 = vmatprep.subr.mxu0 0.0
    %1475 = vmatpush1.msra.mxu0 0.0
    %1476 = vmatprep.subr.mxu0 0.0
    %1477 = vmatpush1.msra.mxu0 0.0
    %1478 = vmatprep.subr.mxu0 0.0
    %1479 = vmatpush1.msra.mxu0 0.0
    %1480 = vmatprep.subr.mxu0 0.0
    %1481 = vmatpush1.msra.mxu0 0.0
    %1482 = vmatprep.subr.mxu0 0.0
    %1483 = vmatpush1.msra.mxu0 0.0
    %1484 = vmatprep.subr.mxu0 0.0
    %1485 = vmatpush1.msra.mxu0 0.0
    %1486 = vmatprep.subr.mxu0 0.0
    %1487 = vmatpush1.msra.mxu0 0.0
    %1488 = vmatprep.subr.mxu0 0.0
    %1489 = vmatpush1.msra.mxu0 0.0
    %1490 = vmatprep.subr.mxu0 0.0
    %1491 = vmatpush1.msra.mxu0 0.0
    %1492 = vmatprep.subr.mxu0 0.0
    %1493 = vmatpush1.msra.mxu0 0.0
    %1494 = vmatprep.subr.mxu0 0.0
    %1495 = vmatpush1.msra.mxu0 0.0
    %1496 = vmatprep.subr.mxu0 0.0
    %1497 = vmatpush1.msra.mxu0 0.0
    %1498 = vmatprep.subr.mxu0 0.0
    %1499 = vmatpush1.msra.mxu0 0.0
    %1500 = vmatprep.subr.mxu0 0.0
    %1501 = vmatpush1.msra.mxu0 0.0
    %1502 = vmatprep.subr.mxu0 0.0
    %1503 = vmatpush1.msra.mxu0 0.0
    %1504 = vmatprep.subr.mxu0 0.0
    %1505 = vmatpush1.msra.mxu0 0.0
    %1506 = vmatprep.subr.mxu0 0.0
    %1507 = vmatpush1.msra.mxu0 0.0
    %1508 = vmatprep.subr.mxu0 0.0
    %1509 = vmatpush1.msra.mxu0 0.0
    %1510 = vmatprep.subr.mxu0 0.0
    %1511 = vmatpush1.msra.mxu0 0.0
    %1512 = vmatprep.subr.mxu0 0.0
    %1513 = vmatpush1.msra.mxu0 0.0
    %1514 = vmatprep.subr.mxu0 0.0
    %1515 = vmatpush1.msra.mxu0 0.0
    %1516 = vmatprep.subr.mxu0 0.0
    %1517 = vmatpush1.msra.mxu0 0.0
    %1518 = vmatprep.subr.mxu0 0.0
    %1519 = vmatpush1.msra.mxu0 0.0
    %1520 = vmatprep.subr.mxu0 0.0
    %1521 = vmatpush1.msra.mxu0 0.0
    %1522 = vmatprep.subr.mxu0 0.0
    %1523 = vmatpush1.msra.mxu0 0.0
    %1524 = vmatprep.mubr.f32.mxu0 0.0
    %1525 = vmatmul.mubr.f32.gmra.mrb[0].mxu0 %v1458
    %v1526 = vpop.f32.mrb[0].mxu0
    %v1527 = vadd.f32 0.0, %v1526
    %v1528 = vpop.f32.mrb[0].mxu0
    %1529 = vdwg.mxu0
    %v1531 = vrot.slane %v1527, 6
    %v1533 = vadd.f32 %v256, %v1531
    %v1534 = vxor.u32 %v1533, 2147483648
    %v1535 = vmul.f32 %v1534, 1.442695
    %v1536 = vpow.pop %v1535
    %v1537 = vadd.f32 %v1536, 1.0
    %v1538 = vrcp.pop %v1537
    %v1539 = vmul.f32 1.0, %v1538
    %v1540 = vtanh.pop %v1533
    %v1542 = vrot.slane %v1338, 6
    %v1544 = vmul.f32 %v1539, %v1542
    %1546 = vrot.lane.b32.xlu0 %v1540, 64
    %v1547 = vpop.permute.xlu0 %1546
    %v1549 = vmul.f32 %v1539, %v1547
    %1551 = vrot.lane.b32.xlu0 %v1549, 32
    %v1552 = vpop.permute.xlu0 %1551
    %v1554 = vadd.f32 %v1544, %v1552
    %v1555 = vtanh.pop %v1554
    %1557 = vrot.lane.b32.xlu0 %v1555, 64
    %v1558 = vpop.permute.xlu0 %1557
    %v1560 = vmul.f32 %v1539, %v1558
    %1562 = vrot.lane.b32.xlu0 %v1560, 32
    %v1563 = vpop.permute.xlu0 %1562
    %1565 = vst.msk [vmem:[#allocation2 + $0x8] sm:$0xc] %vm687, %v1563
    %v1566 = vrot.slane %v1452, 6
    %1567 = vrot.lane.b32.xlu0 %v1566, 32
    %v1568 = vpop.permute.xlu0 %1567
    %v1569 = vsel %vm359, %v1568, 0
    %1571 = vmatprep.subr.mxu0 0.0
    %1572 = vmatpush1.msra.mxu0 %v349
    %1573 = vmatprep.subr.mxu0 0.0
    %1574 = vmatpush1.msra.mxu0 %v350
    %1575 = vmatprep.subr.mxu0 0.0
    %1576 = vmatpush1.msra.mxu0 %v351
    %1577 = vmatprep.subr.mxu0 0.0
    %1578 = vmatpush1.msra.mxu0 %v352
    %1579 = vmatprep.subr.mxu0 0.0
    %1580 = vmatpush1.msra.mxu0 0.0
    %1581 = vmatprep.subr.mxu0 0.0
    %1582 = vmatpush1.msra.mxu0 0.0
    %1583 = vmatprep.subr.mxu0 0.0
    %1584 = vmatpush1.msra.mxu0 0.0
    %1585 = vmatprep.subr.mxu0 0.0
    %1586 = vmatpush1.msra.mxu0 0.0
    %1587 = vmatprep.subr.mxu0 0.0
    %1588 = vmatpush1.msra.mxu0 0.0
    %1589 = vmatprep.subr.mxu0 0.0
    %1590 = vmatpush1.msra.mxu0 0.0
    %1591 = vmatprep.subr.mxu0 0.0
    %1592 = vmatpush1.msra.mxu0 0.0
    %1593 = vmatprep.subr.mxu0 0.0
    %1594 = vmatpush1.msra.mxu0 0.0
    %1595 = vmatprep.subr.mxu0 0.0
    %1596 = vmatpush1.msra.mxu0 0.0
    %1597 = vmatprep.subr.mxu0 0.0
    %1598 = vmatpush1.msra.mxu0 0.0
    %1599 = vmatprep.subr.mxu0 0.0
    %1600 = vmatpush1.msra.mxu0 0.0
    %1601 = vmatprep.subr.mxu0 0.0
    %1602 = vmatpush1.msra.mxu0 0.0
    %1603 = vmatprep.subr.mxu0 0.0
    %1604 = vmatpush1.msra.mxu0 0.0
    %1605 = vmatprep.subr.mxu0 0.0
    %1606 = vmatpush1.msra.mxu0 0.0
    %1607 = vmatprep.subr.mxu0 0.0
    %1608 = vmatpush1.msra.mxu0 0.0
    %1609 = vmatprep.subr.mxu0 0.0
    %1610 = vmatpush1.msra.mxu0 0.0
    %1611 = vmatprep.subr.mxu0 0.0
    %1612 = vmatpush1.msra.mxu0 0.0
    %1613 = vmatprep.subr.mxu0 0.0
    %1614 = vmatpush1.msra.mxu0 0.0
    %1615 = vmatprep.subr.mxu0 0.0
    %1616 = vmatpush1.msra.mxu0 0.0
    %1617 = vmatprep.subr.mxu0 0.0
    %1618 = vmatpush1.msra.mxu0 0.0
    %1619 = vmatprep.subr.mxu0 0.0
    %1620 = vmatpush1.msra.mxu0 0.0
    %1621 = vmatprep.subr.mxu0 0.0
    %1622 = vmatpush1.msra.mxu0 0.0
    %1623 = vmatprep.subr.mxu0 0.0
    %1624 = vmatpush1.msra.mxu0 0.0
    %1625 = vmatprep.subr.mxu0 0.0
    %1626 = vmatpush1.msra.mxu0 0.0
    %1627 = vmatprep.subr.mxu0 0.0
    %1628 = vmatpush1.msra.mxu0 0.0
    %1629 = vmatprep.subr.mxu0 0.0
    %1630 = vmatpush1.msra.mxu0 0.0
    %1631 = vmatprep.subr.mxu0 0.0
    %1632 = vmatpush1.msra.mxu0 0.0
    %1633 = vmatprep.subr.mxu0 0.0
    %1634 = vmatpush1.msra.mxu0 0.0
    %1635 = vmatprep.mubr.f32.mxu0 0.0
    %1636 = vmatmul.mubr.f32.gmra.mrb[0].mxu0 %v1569
    %v1637 = vpop.f32.mrb[0].mxu0
    %v1638 = vadd.f32 0.0, %v1637
    %v1639 = vpop.f32.mrb[0].mxu0
    %1640 = vdwg.mxu0
    %v1642 = vrot.slane %v1638, 4
    %v1644 = vadd.f32 %v337, %v1642
    %v1645 = vxor.u32 %v1644, 2147483648
    %v1646 = vmul.f32 %v1645, 1.442695
    %v1647 = vpow.pop %v1646
    %v1648 = vadd.f32 %v1647, 1.0
    %v1649 = vrcp.pop %v1648
    %v1650 = vmul.f32 1.0, %v1649
    %v1651 = vtanh.pop %v1644
    %v1653 = vrot.slane %v1446, 2
    %v1655 = vmul.f32 %v1650, %v1653
    %1657 = vrot.lane.b32.xlu0 %v1651, 64
    %v1658 = vpop.permute.xlu0 %1657
    %v1660 = vmul.f32 %v1650, %v1658
    %1662 = vrot.lane.b32.xlu0 %v1660, 32
    %v1663 = vpop.permute.xlu0 %1662
    %v1665 = vadd.f32 %v1655, %v1663
    %v1666 = vtanh.pop %v1665
    %1668 = vrot.lane.b32.xlu0 %v1666, 64
    %v1669 = vpop.permute.xlu0 %1668
    %v1671 = vmul.f32 %v1650, %v1669
    %1673 = vrot.lane.b32.xlu0 %v1671, 32
    %v1674 = vpop.permute.xlu0 %1673
    %1676 = vst.msk [vmem:[#allocation3] sm:$0x30] %vm799, %v1674
    %v1677 = vrot.slane %v1560, 2
    %1678 = vrot.lane.b32.xlu0 %v1677, 32
    %v1679 = vpop.permute.xlu0 %1678
    %v1680 = vsel %vm359, %v1679, 0
    %1682 = vmatprep.subr.mxu0 0.0
    %1683 = vmatpush1.msra.mxu0 %v345
    %1684 = vmatprep.subr.mxu0 0.0
    %1685 = vmatpush1.msra.mxu0 %v346
    %1686 = vmatprep.subr.mxu0 0.0
    %1687 = vmatpush1.msra.mxu0 %v347
    %1688 = vmatprep.subr.mxu0 0.0
    %1689 = vmatpush1.msra.mxu0 %v348
    %1690 = vmatprep.subr.mxu0 0.0
    %1691 = vmatpush1.msra.mxu0 0.0
    %1692 = vmatprep.subr.mxu0 0.0
    %1693 = vmatpush1.msra.mxu0 0.0
    %1694 = vmatprep.subr.mxu0 0.0
    %1695 = vmatpush1.msra.mxu0 0.0
    %1696 = vmatprep.subr.mxu0 0.0
    %1697 = vmatpush1.msra.mxu0 0.0
    %1698 = vmatprep.subr.mxu0 0.0
    %1699 = vmatpush1.msra.mxu0 0.0
    %1700 = vmatprep.subr.mxu0 0.0
    %1701 = vmatpush1.msra.mxu0 0.0
    %1702 = vmatprep.subr.mxu0 0.0
    %1703 = vmatpush1.msra.mxu0 0.0
    %1704 = vmatprep.subr.mxu0 0.0
    %1705 = vmatpush1.msra.mxu0 0.0
    %1706 = vmatprep.subr.mxu0 0.0
    %1707 = vmatpush1.msra.mxu0 0.0
    %1708 = vmatprep.subr.mxu0 0.0
    %1709 = vmatpush1.msra.mxu0 0.0
    %1710 = vmatprep.subr.mxu0 0.0
    %1711 = vmatpush1.msra.mxu0 0.0
    %1712 = vmatprep.subr.mxu0 0.0
    %1713 = vmatpush1.msra.mxu0 0.0
    %1714 = vmatprep.subr.mxu0 0.0
    %1715 = vmatpush1.msra.mxu0 0.0
    %1716 = vmatprep.subr.mxu0 0.0
    %1717 = vmatpush1.msra.mxu0 0.0
    %1718 = vmatprep.subr.mxu0 0.0
    %1719 = vmatpush1.msra.mxu0 0.0
    %1720 = vmatprep.subr.mxu0 0.0
    %1721 = vmatpush1.msra.mxu0 0.0
    %1722 = vmatprep.subr.mxu0 0.0
    %1723 = vmatpush1.msra.mxu0 0.0
    %1724 = vmatprep.subr.mxu0 0.0
    %1725 = vmatpush1.msra.mxu0 0.0
    %1726 = vmatprep.subr.mxu0 0.0
    %1727 = vmatpush1.msra.mxu0 0.0
    %1728 = vmatprep.subr.mxu0 0.0
    %1729 = vmatpush1.msra.mxu0 0.0
    %1730 = vmatprep.subr.mxu0 0.0
    %1731 = vmatpush1.msra.mxu0 0.0
    %1732 = vmatprep.subr.mxu0 0.0
    %1733 = vmatpush1.msra.mxu0 0.0
    %1734 = vmatprep.subr.mxu0 0.0
    %1735 = vmatpush1.msra.mxu0 0.0
    %1736 = vmatprep.subr.mxu0 0.0
    %1737 = vmatpush1.msra.mxu0 0.0
    %1738 = vmatprep.subr.mxu0 0.0
    %1739 = vmatpush1.msra.mxu0 0.0
    %1740 = vmatprep.subr.mxu0 0.0
    %1741 = vmatpush1.msra.mxu0 0.0
    %1742 = vmatprep.subr.mxu0 0.0
    %1743 = vmatpush1.msra.mxu0 0.0
    %1744 = vmatprep.subr.mxu0 0.0
    %1745 = vmatpush1.msra.mxu0 0.0
    %1746 = vmatprep.mubr.f32.mxu0 0.0
    %1747 = vmatmul.mubr.f32.gmra.mrb[0].mxu0 %v1680
    %v1748 = vpop.f32.mrb[0].mxu0
    %v1749 = vadd.f32 0.0, %v1748
    %v1750 = vpop.f32.mrb[0].mxu0
    %1751 = vdwg.mxu0
    %v1753 = vrot.slane %v1749, 4
    %v1755 = vadd.f32 %v256, %v1753
    %v1756 = vxor.u32 %v1755, 2147483648
    %v1757 = vmul.f32 %v1756, 1.442695
    %v1758 = vpow.pop %v1757
    %v1759 = vadd.f32 %v1758, 1.0
    %v1760 = vrcp.pop %v1759
    %v1761 = vmul.f32 1.0, %v1760
    %v1762 = vtanh.pop %v1755
    %v1764 = vrot.slane %v1554, 6
    %v1766 = vmul.f32 %v1761, %v1764
    %1768 = vrot.lane.b32.xlu0 %v1762, 64
    %v1769 = vpop.permute.xlu0 %1768
    %v1771 = vmul.f32 %v1761, %v1769
    %1773 = vrot.lane.b32.xlu0 %v1771, 32
    %v1774 = vpop.permute.xlu0 %1773
    %v1776 = vadd.f32 %v1766, %v1774
    %v1777 = vtanh.pop %v1776
    %1779 = vrot.lane.b32.xlu0 %v1777, 64
    %v1780 = vpop.permute.xlu0 %1779
    %v1782 = vmul.f32 %v1761, %v1780
    %1784 = vrot.lane.b32.xlu0 %v1782, 32
    %v1785 = vpop.permute.xlu0 %1784
    %1787 = vst.msk [vmem:[#allocation2 + $0x8] sm:$0x30] %vm799, %v1785
    %v1788 = vrot.slane %v1671, 4
    %1789 = vrot.lane.b32.xlu0 %v1788, 32
    %v1790 = vpop.permute.xlu0 %1789
    %v1791 = vsel %vm359, %v1790, 0
    %1793 = vmatprep.subr.mxu0 0.0
    %1794 = vmatpush1.msra.mxu0 %v349
    %1795 = vmatprep.subr.mxu0 0.0
    %1796 = vmatpush1.msra.mxu0 %v350
    %1797 = vmatprep.subr.mxu0 0.0
    %1798 = vmatpush1.msra.mxu0 %v351
    %1799 = vmatprep.subr.mxu0 0.0
    %1800 = vmatpush1.msra.mxu0 %v352
    %1801 = vmatprep.subr.mxu0 0.0
    %1802 = vmatpush1.msra.mxu0 0.0
    %1803 = vmatprep.subr.mxu0 0.0
    %1804 = vmatpush1.msra.mxu0 0.0
    %1805 = vmatprep.subr.mxu0 0.0
    %1806 = vmatpush1.msra.mxu0 0.0
    %1807 = vmatprep.subr.mxu0 0.0
    %1808 = vmatpush1.msra.mxu0 0.0
    %1809 = vmatprep.subr.mxu0 0.0
    %1810 = vmatpush1.msra.mxu0 0.0
    %1811 = vmatprep.subr.mxu0 0.0
    %1812 = vmatpush1.msra.mxu0 0.0
    %1813 = vmatprep.subr.mxu0 0.0
    %1814 = vmatpush1.msra.mxu0 0.0
    %1815 = vmatprep.subr.mxu0 0.0
    %1816 = vmatpush1.msra.mxu0 0.0
    %1817 = vmatprep.subr.mxu0 0.0
    %1818 = vmatpush1.msra.mxu0 0.0
    %1819 = vmatprep.subr.mxu0 0.0
    %1820 = vmatpush1.msra.mxu0 0.0
    %1821 = vmatprep.subr.mxu0 0.0
    %1822 = vmatpush1.msra.mxu0 0.0
    %1823 = vmatprep.subr.mxu0 0.0
    %1824 = vmatpush1.msra.mxu0 0.0
    %1825 = vmatprep.subr.mxu0 0.0
    %1826 = vmatpush1.msra.mxu0 0.0
    %1827 = vmatprep.subr.mxu0 0.0
    %1828 = vmatpush1.msra.mxu0 0.0
    %1829 = vmatprep.subr.mxu0 0.0
    %1830 = vmatpush1.msra.mxu0 0.0
    %1831 = vmatprep.subr.mxu0 0.0
    %1832 = vmatpush1.msra.mxu0 0.0
    %1833 = vmatprep.subr.mxu0 0.0
    %1834 = vmatpush1.msra.mxu0 0.0
    %1835 = vmatprep.subr.mxu0 0.0
    %1836 = vmatpush1.msra.mxu0 0.0
    %1837 = vmatprep.subr.mxu0 0.0
    %1838 = vmatpush1.msra.mxu0 0.0
    %1839 = vmatprep.subr.mxu0 0.0
    %1840 = vmatpush1.msra.mxu0 0.0
    %1841 = vmatprep.subr.mxu0 0.0
    %1842 = vmatpush1.msra.mxu0 0.0
    %1843 = vmatprep.subr.mxu0 0.0
    %1844 = vmatpush1.msra.mxu0 0.0
    %1845 = vmatprep.subr.mxu0 0.0
    %1846 = vmatpush1.msra.mxu0 0.0
    %1847 = vmatprep.subr.mxu0 0.0
    %1848 = vmatpush1.msra.mxu0 0.0
    %1849 = vmatprep.subr.mxu0 0.0
    %1850 = vmatpush1.msra.mxu0 0.0
    %1851 = vmatprep.subr.mxu0 0.0
    %1852 = vmatpush1.msra.mxu0 0.0
    %1853 = vmatprep.subr.mxu0 0.0
    %1854 = vmatpush1.msra.mxu0 0.0
    %1855 = vmatprep.subr.mxu0 0.0
    %1856 = vmatpush1.msra.mxu0 0.0
    %1857 = vmatprep.mubr.f32.mxu0 0.0
    %1858 = vmatmul.mubr.f32.gmra.mrb[0].mxu0 %v1791
    %v1859 = vpop.f32.mrb[0].mxu0
    %v1860 = vadd.f32 0.0, %v1859
    %v1861 = vpop.f32.mrb[0].mxu0
    %1862 = vdwg.mxu0
    %v1864 = vrot.slane %v1860, 6
    %v1866 = vadd.f32 %v337, %v1864
    %v1867 = vxor.u32 %v1866, 2147483648
    %v1868 = vmul.f32 %v1867, 1.442695
    %v1869 = vpow.pop %v1868
    %v1870 = vadd.f32 %v1869, 1.0
    %v1871 = vrcp.pop %v1870
    %v1872 = vmul.f32 1.0, %v1871
    %v1873 = vtanh.pop %v1866
    %v1875 = vrot.slane %v1665, 2
    %v1877 = vmul.f32 %v1872, %v1875
    %1879 = vrot.lane.b32.xlu0 %v1873, 64
    %v1880 = vpop.permute.xlu0 %1879
    %v1882 = vmul.f32 %v1872, %v1880
    %1884 = vrot.lane.b32.xlu0 %v1882, 32
    %v1885 = vpop.permute.xlu0 %1884
    %v1887 = vadd.f32 %v1877, %v1885
    %v1888 = vtanh.pop %v1887
    %1890 = vrot.lane.b32.xlu0 %v1888, 64
    %v1891 = vpop.permute.xlu0 %1890
    %v1893 = vmul.f32 %v1872, %v1891
    %1895 = vrot.lane.b32.xlu0 %v1893, 32
    %v1896 = vpop.permute.xlu0 %1895
    %1898 = vst.msk [vmem:[#allocation3] sm:$0xc] %vm687, %v1896
    %v1899 = vrot.slane %v1782, 4
    %1900 = vrot.lane.b32.xlu0 %v1899, 32
    %v1901 = vpop.permute.xlu0 %1900
    %v1902 = vsel %vm359, %v1901, 0
    %1904 = vmatprep.subr.mxu0 0.0
    %1905 = vmatpush1.msra.mxu0 %v345
    %1906 = vmatprep.subr.mxu0 0.0
    %1907 = vmatpush1.msra.mxu0 %v346
    %1908 = vmatprep.subr.mxu0 0.0
    %1909 = vmatpush1.msra.mxu0 %v347
    %1910 = vmatprep.subr.mxu0 0.0
    %1911 = vmatpush1.msra.mxu0 %v348
    %1912 = vmatprep.subr.mxu0 0.0
    %1913 = vmatpush1.msra.mxu0 0.0
    %1914 = vmatprep.subr.mxu0 0.0
    %1915 = vmatpush1.msra.mxu0 0.0
    %1916 = vmatprep.subr.mxu0 0.0
    %1917 = vmatpush1.msra.mxu0 0.0
    %1918 = vmatprep.subr.mxu0 0.0
    %1919 = vmatpush1.msra.mxu0 0.0
    %1920 = vmatprep.subr.mxu0 0.0
    %1921 = vmatpush1.msra.mxu0 0.0
    %1922 = vmatprep.subr.mxu0 0.0
    %1923 = vmatpush1.msra.mxu0 0.0
    %1924 = vmatprep.subr.mxu0 0.0
    %1925 = vmatpush1.msra.mxu0 0.0
    %1926 = vmatprep.subr.mxu0 0.0
    %1927 = vmatpush1.msra.mxu0 0.0
    %1928 = vmatprep.subr.mxu0 0.0
    %1929 = vmatpush1.msra.mxu0 0.0
    %1930 = vmatprep.subr.mxu0 0.0
    %1931 = vmatpush1.msra.mxu0 0.0
    %1932 = vmatprep.subr.mxu0 0.0
    %1933 = vmatpush1.msra.mxu0 0.0
    %1934 = vmatprep.subr.mxu0 0.0
    %1935 = vmatpush1.msra.mxu0 0.0
    %1936 = vmatprep.subr.mxu0 0.0
    %1937 = vmatpush1.msra.mxu0 0.0
    %1938 = vmatprep.subr.mxu0 0.0
    %1939 = vmatpush1.msra.mxu0 0.0
    %1940 = vmatprep.subr.mxu0 0.0
    %1941 = vmatpush1.msra.mxu0 0.0
    %1942 = vmatprep.subr.mxu0 0.0
    %1943 = vmatpush1.msra.mxu0 0.0
    %1944 = vmatprep.subr.mxu0 0.0
    %1945 = vmatpush1.msra.mxu0 0.0
    %1946 = vmatprep.subr.mxu0 0.0
    %1947 = vmatpush1.msra.mxu0 0.0
    %1948 = vmatprep.subr.mxu0 0.0
    %1949 = vmatpush1.msra.mxu0 0.0
    %1950 = vmatprep.subr.mxu0 0.0
    %1951 = vmatpush1.msra.mxu0 0.0
    %1952 = vmatprep.subr.mxu0 0.0
    %1953 = vmatpush1.msra.mxu0 0.0
    %1954 = vmatprep.subr.mxu0 0.0
    %1955 = vmatpush1.msra.mxu0 0.0
    %1956 = vmatprep.subr.mxu0 0.0
    %1957 = vmatpush1.msra.mxu0 0.0
    %1958 = vmatprep.subr.mxu0 0.0
    %1959 = vmatpush1.msra.mxu0 0.0
    %1960 = vmatprep.subr.mxu0 0.0
    %1961 = vmatpush1.msra.mxu0 0.0
    %1962 = vmatprep.subr.mxu0 0.0
    %1963 = vmatpush1.msra.mxu0 0.0
    %1964 = vmatprep.subr.mxu0 0.0
    %1965 = vmatpush1.msra.mxu0 0.0
    %1966 = vmatprep.subr.mxu0 0.0
    %1967 = vmatpush1.msra.mxu0 0.0
    %1968 = vmatprep.mubr.f32.mxu0 0.0
    %1969 = vmatmul.mubr.f32.gmra.mrb[0].mxu0 %v1902
    %v1970 = vpop.f32.mrb[0].mxu0
    %v1971 = vadd.f32 0.0, %v1970
    %v1972 = vpop.f32.mrb[0].mxu0
    %1973 = vdwg.mxu0
    %v1975 = vrot.slane %v1971, 2
    %v1977 = vadd.f32 %v256, %v1975
    %v1978 = vxor.u32 %v1977, 2147483648
    %v1979 = vmul.f32 %v1978, 1.442695
    %v1980 = vpow.pop %v1979
    %v1981 = vadd.f32 %v1980, 1.0
    %v1982 = vrcp.pop %v1981
    %v1983 = vmul.f32 1.0, %v1982
    %v1984 = vtanh.pop %v1977
    %v1986 = vrot.slane %v1776, 6
    %v1988 = vmul.f32 %v1983, %v1986
    %1990 = vrot.lane.b32.xlu0 %v1984, 64
    %v1991 = vpop.permute.xlu0 %1990
    %v1993 = vmul.f32 %v1983, %v1991
    %1995 = vrot.lane.b32.xlu0 %v1993, 32
    %v1996 = vpop.permute.xlu0 %1995
    %v1998 = vadd.f32 %v1988, %v1996
    %v1999 = vtanh.pop %v1998
    %2001 = vrot.lane.b32.xlu0 %v1999, 64
    %v2002 = vpop.permute.xlu0 %2001
    %v2004 = vmul.f32 %v1983, %v2002
    %2006 = vrot.lane.b32.xlu0 %v2004, 32
    %v2007 = vpop.permute.xlu0 %2006
    %2009 = vst.msk [vmem:[#allocation2 + $0x8] sm:$0xc0] %vm578, %v2007
    %v2010 = vrot.slane %v1893, 2
    %2011 = vrot.lane.b32.xlu0 %v2010, 32
    %v2012 = vpop.permute.xlu0 %2011
    %v2013 = vsel %vm359, %v2012, 0
    %2015 = vmatprep.subr.mxu0 0.0
    %2016 = vmatpush1.msra.mxu0 %v349
    %2017 = vmatprep.subr.mxu0 0.0
    %2018 = vmatpush1.msra.mxu0 %v350
    %2019 = vmatprep.subr.mxu0 0.0
    %2020 = vmatpush1.msra.mxu0 %v351
    %2021 = vmatprep.subr.mxu0 0.0
    %2022 = vmatpush1.msra.mxu0 %v352
    %2023 = vmatprep.subr.mxu0 0.0
    %2024 = vmatpush1.msra.mxu0 0.0
    %2025 = vmatprep.subr.mxu0 0.0
    %2026 = vmatpush1.msra.mxu0 0.0
    %2027 = vmatprep.subr.mxu0 0.0
    %2028 = vmatpush1.msra.mxu0 0.0
    %2029 = vmatprep.subr.mxu0 0.0
    %2030 = vmatpush1.msra.mxu0 0.0
    %2031 = vmatprep.subr.mxu0 0.0
    %2032 = vmatpush1.msra.mxu0 0.0
    %2033 = vmatprep.subr.mxu0 0.0
    %2034 = vmatpush1.msra.mxu0 0.0
    %2035 = vmatprep.subr.mxu0 0.0
    %2036 = vmatpush1.msra.mxu0 0.0
    %2037 = vmatprep.subr.mxu0 0.0
    %2038 = vmatpush1.msra.mxu0 0.0
    %2039 = vmatprep.subr.mxu0 0.0
    %2040 = vmatpush1.msra.mxu0 0.0
    %2041 = vmatprep.subr.mxu0 0.0
    %2042 = vmatpush1.msra.mxu0 0.0
    %2043 = vmatprep.subr.mxu0 0.0
    %2044 = vmatpush1.msra.mxu0 0.0
    %2045 = vmatprep.subr.mxu0 0.0
    %2046 = vmatpush1.msra.mxu0 0.0
    %2047 = vmatprep.subr.mxu0 0.0
    %2048 = vmatpush1.msra.mxu0 0.0
    %2049 = vmatprep.subr.mxu0 0.0
    %2050 = vmatpush1.msra.mxu0 0.0
    %2051 = vmatprep.subr.mxu0 0.0
    %2052 = vmatpush1.msra.mxu0 0.0
    %2053 = vmatprep.subr.mxu0 0.0
    %2054 = vmatpush1.msra.mxu0 0.0
    %2055 = vmatprep.subr.mxu0 0.0
    %2056 = vmatpush1.msra.mxu0 0.0
    %2057 = vmatprep.subr.mxu0 0.0
    %2058 = vmatpush1.msra.mxu0 0.0
    %2059 = vmatprep.subr.mxu0 0.0
    %2060 = vmatpush1.msra.mxu0 0.0
    %2061 = vmatprep.subr.mxu0 0.0
    %2062 = vmatpush1.msra.mxu0 0.0
    %2063 = vmatprep.subr.mxu0 0.0
    %2064 = vmatpush1.msra.mxu0 0.0
    %2065 = vmatprep.subr.mxu0 0.0
    %2066 = vmatpush1.msra.mxu0 0.0
    %2067 = vmatprep.subr.mxu0 0.0
    %2068 = vmatpush1.msra.mxu0 0.0
    %2069 = vmatprep.subr.mxu0 0.0
    %2070 = vmatpush1.msra.mxu0 0.0
    %2071 = vmatprep.subr.mxu0 0.0
    %2072 = vmatpush1.msra.mxu0 0.0
    %2073 = vmatprep.subr.mxu0 0.0
    %2074 = vmatpush1.msra.mxu0 0.0
    %2075 = vmatprep.subr.mxu0 0.0
    %2076 = vmatpush1.msra.mxu0 0.0
    %2077 = vmatprep.subr.mxu0 0.0
    %2078 = vmatpush1.msra.mxu0 0.0
    %2079 = vmatprep.mubr.f32.mxu0 0.0
    %2080 = vmatmul.mubr.f32.gmra.mrb[0].mxu0 %v2013
    %v2081 = vpop.f32.mrb[0].mxu0
    %v2082 = vadd.f32 0.0, %v2081
    %v2083 = vpop.f32.mrb[0].mxu0
    %2084 = vdwg.mxu0
    %v2085 = vadd.f32 %v337, %v2082
    %v2086 = vxor.u32 %v2085, 2147483648
    %v2087 = vmul.f32 %v2086, 1.442695
    %v2088 = vpow.pop %v2087
    %v2089 = vadd.f32 %v2088, 1.0
    %v2090 = vrcp.pop %v2089
    %v2091 = vmul.f32 1.0, %v2090
    %v2092 = vtanh.pop %v2085
    %v2094 = vrot.slane %v1887, 2
    %v2096 = vmul.f32 %v2091, %v2094
    %2098 = vrot.lane.b32.xlu0 %v2092, 64
    %v2099 = vpop.permute.xlu0 %2098
    %v2101 = vmul.f32 %v2091, %v2099
    %2103 = vrot.lane.b32.xlu0 %v2101, 32
    %v2104 = vpop.permute.xlu0 %2103
    %v2106 = vadd.f32 %v2096, %v2104
    %v2107 = vtanh.pop %v2106
    %2109 = vrot.lane.b32.xlu0 %v2107, 64
    %v2110 = vpop.permute.xlu0 %2109
    %v2112 = vmul.f32 %v2091, %v2110
    %2114 = vrot.lane.b32.xlu0 %v2112, 32
    %v2115 = vpop.permute.xlu0 %2114
    %2117 = vst.msk [vmem:[#allocation3] sm:$0x3] %vm466, %v2115
    %v2118 = vld [vmem:[#allocation2] sm:$0xff]
    %v2119 = vld [vmem:[#allocation2 + $0x8] sm:$0xff]
    %v2120 = vld [vmem:[#allocation3] sm:$0xff]
    %v2121 = vld [vmem:[#allocation3 + $0x8] sm:$0xff]
    %v2122 = vld [vmem:[%s9] sm:$0xff]
    %v2123 = vld [vmem:[%s9 + $0x8] sm:$0xff]
    %v2124 = vld [vmem:[%s9 + $0x10] sm:$0xff]
    %v2125 = vld [vmem:[%s9 + $0x18] sm:$0xff]
    %v2126 = vld [vmem:[%s9 + $0x20] sm:$0xff]
    %v2127 = vld [vmem:[%s9 + $0x28] sm:$0xff]
    %v2128 = vld [vmem:[%s9 + $0x30] sm:$0xff]
    %v2129 = vld [vmem:[%s9 + $0x38] sm:$0xff]
    %v2131 = vsel %vm359, %v2120, 0
    %v2134 = vsel %vm359, %v2121, 0
    %2136 = vmatprep.subr.mxu0 0.0
    %2137 = vmatpush1.msra.mxu0 %v2126
    %2138 = vmatprep.subr.mxu0 0.0
    %2139 = vmatpush1.msra.mxu0 %v2127
    %2140 = vmatprep.subr.mxu0 0.0
    %2141 = vmatpush1.msra.mxu0 %v2128
    %2142 = vmatprep.subr.mxu0 0.0
    %2143 = vmatpush1.msra.mxu0 %v2129
    %2144 = vmatprep.subr.mxu0 0.0
    %2145 = vmatpush1.msra.mxu0 0.0
    %2146 = vmatprep.subr.mxu0 0.0
    %2147 = vmatpush1.msra.mxu0 0.0
    %2148 = vmatprep.subr.mxu0 0.0
    %2149 = vmatpush1.msra.mxu0 0.0
    %2150 = vmatprep.subr.mxu0 0.0
    %2151 = vmatpush1.msra.mxu0 0.0
    %2152 = vmatprep.subr.mxu0 0.0
    %2153 = vmatpush1.msra.mxu0 0.0
    %2154 = vmatprep.subr.mxu0 0.0
    %2155 = vmatpush1.msra.mxu0 0.0
    %2156 = vmatprep.subr.mxu0 0.0
    %2157 = vmatpush1.msra.mxu0 0.0
    %2158 = vmatprep.subr.mxu0 0.0
    %2159 = vmatpush1.msra.mxu0 0.0
    %2160 = vmatprep.subr.mxu0 0.0
    %2161 = vmatpush1.msra.mxu0 0.0
    %2162 = vmatprep.subr.mxu0 0.0
    %2163 = vmatpush1.msra.mxu0 0.0
    %2164 = vmatprep.subr.mxu0 0.0
    %2165 = vmatpush1.msra.mxu0 0.0
    %2166 = vmatprep.subr.mxu0 0.0
    %2167 = vmatpush1.msra.mxu0 0.0
    %2168 = vmatprep.subr.mxu0 0.0
    %2169 = vmatpush1.msra.mxu0 0.0
    %2170 = vmatprep.subr.mxu0 0.0
    %2171 = vmatpush1.msra.mxu0 0.0
    %2172 = vmatprep.subr.mxu0 0.0
    %2173 = vmatpush1.msra.mxu0 0.0
    %2174 = vmatprep.subr.mxu0 0.0
    %2175 = vmatpush1.msra.mxu0 0.0
    %2176 = vmatprep.subr.mxu0 0.0
    %2177 = vmatpush1.msra.mxu0 0.0
    %2178 = vmatprep.subr.mxu0 0.0
    %2179 = vmatpush1.msra.mxu0 0.0
    %2180 = vmatprep.subr.mxu0 0.0
    %2181 = vmatpush1.msra.mxu0 0.0
    %2182 = vmatprep.subr.mxu0 0.0
    %2183 = vmatpush1.msra.mxu0 0.0
    %2184 = vmatprep.subr.mxu0 0.0
    %2185 = vmatpush1.msra.mxu0 0.0
    %2186 = vmatprep.subr.mxu0 0.0
    %2187 = vmatpush1.msra.mxu0 0.0
    %2188 = vmatprep.subr.mxu0 0.0
    %2189 = vmatpush1.msra.mxu0 0.0
    %2190 = vmatprep.subr.mxu0 0.0
    %2191 = vmatpush1.msra.mxu0 0.0
    %2192 = vmatprep.subr.mxu0 0.0
    %2193 = vmatpush1.msra.mxu0 0.0
    %2194 = vmatprep.subr.mxu0 0.0
    %2195 = vmatpush1.msra.mxu0 0.0
    %2196 = vmatprep.subr.mxu0 0.0
    %2197 = vmatpush1.msra.mxu0 0.0
    %2198 = vmatprep.subr.mxu0 0.0
    %2199 = vmatpush1.msra.mxu0 0.0
    %2200 = vmatprep.mubr.f32.mxu0 0.0
    %2201 = vmatmul.mubr.f32.gmra.mrb[0].mxu0 %v2131
    %v2202 = vpop.f32.mrb[0].mxu0
    %v2203 = vadd.f32 0.0, %v2202
    %v2204 = vpop.f32.mrb[0].mxu0
    %2205 = vmatprep.mubr.f32.mxu0 0.0
    %2206 = vmatmul.mubr.f32.gmra.mrb[0].mxu0 %v2134
    %v2207 = vpop.f32.mrb[0].mxu0
    %v2208 = vadd.f32 0.0, %v2207
    %v2209 = vpop.f32.mrb[0].mxu0
    %2210 = vdwg.mxu0
    %v2212 = vsel %vm359, %v2118, 0
    %v2215 = vsel %vm359, %v2119, 0
    %2217 = vmatprep.subr.mxu0 0.0
    %2218 = vmatpush1.msra.mxu0 %v2122
    %2219 = vmatprep.subr.mxu0 0.0
    %2220 = vmatpush1.msra.mxu0 %v2123
    %2221 = vmatprep.subr.mxu0 0.0
    %2222 = vmatpush1.msra.mxu0 %v2124
    %2223 = vmatprep.subr.mxu0 0.0
    %2224 = vmatpush1.msra.mxu0 %v2125
    %2225 = vmatprep.subr.mxu0 0.0
    %2226 = vmatpush1.msra.mxu0 0.0
    %2227 = vmatprep.subr.mxu0 0.0
    %2228 = vmatpush1.msra.mxu0 0.0
    %2229 = vmatprep.subr.mxu0 0.0
    %2230 = vmatpush1.msra.mxu0 0.0
    %2231 = vmatprep.subr.mxu0 0.0
    %2232 = vmatpush1.msra.mxu0 0.0
    %2233 = vmatprep.subr.mxu0 0.0
    %2234 = vmatpush1.msra.mxu0 0.0
    %2235 = vmatprep.subr.mxu0 0.0
    %2236 = vmatpush1.msra.mxu0 0.0
    %2237 = vmatprep.subr.mxu0 0.0
    %2238 = vmatpush1.msra.mxu0 0.0
    %2239 = vmatprep.subr.mxu0 0.0
    %2240 = vmatpush1.msra.mxu0 0.0
    %2241 = vmatprep.subr.mxu0 0.0
    %2242 = vmatpush1.msra.mxu0 0.0
    %2243 = vmatprep.subr.mxu0 0.0
    %2244 = vmatpush1.msra.mxu0 0.0
    %2245 = vmatprep.subr.mxu0 0.0
    %2246 = vmatpush1.msra.mxu0 0.0
    %2247 = vmatprep.subr.mxu0 0.0
    %2248 = vmatpush1.msra.mxu0 0.0
    %2249 = vmatprep.subr.mxu0 0.0
    %2250 = vmatpush1.msra.mxu0 0.0
    %2251 = vmatprep.subr.mxu0 0.0
    %2252 = vmatpush1.msra.mxu0 0.0
    %2253 = vmatprep.subr.mxu0 0.0
    %2254 = vmatpush1.msra.mxu0 0.0
    %2255 = vmatprep.subr.mxu0 0.0
    %2256 = vmatpush1.msra.mxu0 0.0
    %2257 = vmatprep.subr.mxu0 0.0
    %2258 = vmatpush1.msra.mxu0 0.0
    %2259 = vmatprep.subr.mxu0 0.0
    %2260 = vmatpush1.msra.mxu0 0.0
    %2261 = vmatprep.subr.mxu0 0.0
    %2262 = vmatpush1.msra.mxu0 0.0
    %2263 = vmatprep.subr.mxu0 0.0
    %2264 = vmatpush1.msra.mxu0 0.0
    %2265 = vmatprep.subr.mxu0 0.0
    %2266 = vmatpush1.msra.mxu0 0.0
    %2267 = vmatprep.subr.mxu0 0.0
    %2268 = vmatpush1.msra.mxu0 0.0
    %2269 = vmatprep.subr.mxu0 0.0
    %2270 = vmatpush1.msra.mxu0 0.0
    %2271 = vmatprep.subr.mxu0 0.0
    %2272 = vmatpush1.msra.mxu0 0.0
    %2273 = vmatprep.subr.mxu0 0.0
    %2274 = vmatpush1.msra.mxu0 0.0
    %2275 = vmatprep.subr.mxu0 0.0
    %2276 = vmatpush1.msra.mxu0 0.0
    %2277 = vmatprep.subr.mxu0 0.0
    %2278 = vmatpush1.msra.mxu0 0.0
    %2279 = vmatprep.subr.mxu0 0.0
    %2280 = vmatpush1.msra.mxu0 0.0
    %2281 = vmatprep.mubr.f32.mxu0 0.0
    %2282 = vmatmul.mubr.f32.gmra.mrb[0].mxu0 %v2212
    %v2283 = vpop.f32.mrb[0].mxu0
    %v2284 = vadd.f32 %v2203, %v2283
    %v2285 = vpop.f32.mrb[0].mxu0
    %2286 = vmatprep.mubr.f32.mxu0 0.0
    %2287 = vmatmul.mubr.f32.gmra.mrb[0].mxu0 %v2215
    %v2288 = vpop.f32.mrb[0].mxu0
    %v2289 = vadd.f32 %v2208, %v2288
    %v2290 = vpop.f32.mrb[0].mxu0
    %2291 = vdwg.mxu0
    %v2292 = vld [vmem:[%s11] sm:$0x1]
    %v2294 = vlaneseq
    %v2295 = vshrl.u32 %v2294, 7
    %v2296 = vsub.s32 0, %v2295
    %v2297 = vrot.slane %v2292, %v2296
    %v2299 = vadd.f32 %v2284, %v2297
    %v2300 = vadd.f32 %v2289, %v2297
    %v2301 = vld [vmem:[%s12] sm:$0xff]
    %v2302 = vld [vmem:[%s12 + $0x8] sm:$0xff]
    %v2303 = vld [vmem:[%s12 + $0x10] sm:$0xff]
    %v2304 = vld [vmem:[%s12 + $0x18] sm:$0xff]
    %v2305 = vld [vmem:[%s12 + $0x20] sm:$0xff]
    %v2306 = vld [vmem:[%s12 + $0x28] sm:$0xff]
    %v2307 = vld [vmem:[%s12 + $0x30] sm:$0xff]
    %v2308 = vld [vmem:[%s12 + $0x38] sm:$0xff]
    %2309 = vmatprep.subr.mxu0 0.0
    %2310 = vmatpush1.msra.mxu0 %v2305
    %2311 = vmatprep.subr.mxu0 0.0
    %2312 = vmatpush1.msra.mxu0 %v2306
    %2313 = vmatprep.subr.mxu0 0.0
    %2314 = vmatpush1.msra.mxu0 %v2307
    %2315 = vmatprep.subr.mxu0 0.0
    %2316 = vmatpush1.msra.mxu0 %v2308
    %2317 = vmatprep.subr.mxu0 0.0
    %2318 = vmatpush1.msra.mxu0 0.0
    %2319 = vmatprep.subr.mxu0 0.0
    %2320 = vmatpush1.msra.mxu0 0.0
    %2321 = vmatprep.subr.mxu0 0.0
    %2322 = vmatpush1.msra.mxu0 0.0
    %2323 = vmatprep.subr.mxu0 0.0
    %2324 = vmatpush1.msra.mxu0 0.0
    %2325 = vmatprep.subr.mxu0 0.0
    %2326 = vmatpush1.msra.mxu0 0.0
    %2327 = vmatprep.subr.mxu0 0.0
    %2328 = vmatpush1.msra.mxu0 0.0
    %2329 = vmatprep.subr.mxu0 0.0
    %2330 = vmatpush1.msra.mxu0 0.0
    %2331 = vmatprep.subr.mxu0 0.0
    %2332 = vmatpush1.msra.mxu0 0.0
    %2333 = vmatprep.subr.mxu0 0.0
    %2334 = vmatpush1.msra.mxu0 0.0
    %2335 = vmatprep.subr.mxu0 0.0
    %2336 = vmatpush1.msra.mxu0 0.0
    %2337 = vmatprep.subr.mxu0 0.0
    %2338 = vmatpush1.msra.mxu0 0.0
    %2339 = vmatprep.subr.mxu0 0.0
    %2340 = vmatpush1.msra.mxu0 0.0
    %2341 = vmatprep.subr.mxu0 0.0
    %2342 = vmatpush1.msra.mxu0 0.0
    %2343 = vmatprep.subr.mxu0 0.0
    %2344 = vmatpush1.msra.mxu0 0.0
    %2345 = vmatprep.subr.mxu0 0.0
    %2346 = vmatpush1.msra.mxu0 0.0
    %2347 = vmatprep.subr.mxu0 0.0
    %2348 = vmatpush1.msra.mxu0 0.0
    %2349 = vmatprep.subr.mxu0 0.0
    %2350 = vmatpush1.msra.mxu0 0.0
    %2351 = vmatprep.subr.mxu0 0.0
    %2352 = vmatpush1.msra.mxu0 0.0
    %2353 = vmatprep.subr.mxu0 0.0
    %2354 = vmatpush1.msra.mxu0 0.0
    %2355 = vmatprep.subr.mxu0 0.0
    %2356 = vmatpush1.msra.mxu0 0.0
    %2357 = vmatprep.subr.mxu0 0.0
    %2358 = vmatpush1.msra.mxu0 0.0
    %2359 = vmatprep.subr.mxu0 0.0
    %2360 = vmatpush1.msra.mxu0 0.0
    %2361 = vmatprep.subr.mxu0 0.0
    %2362 = vmatpush1.msra.mxu0 0.0
    %2363 = vmatprep.subr.mxu0 0.0
    %2364 = vmatpush1.msra.mxu0 0.0
    %2365 = vmatprep.subr.mxu0 0.0
    %2366 = vmatpush1.msra.mxu0 0.0
    %2367 = vmatprep.subr.mxu0 0.0
    %2368 = vmatpush1.msra.mxu0 0.0
    %2369 = vmatprep.subr.mxu0 0.0
    %2370 = vmatpush1.msra.mxu0 0.0
    %2371 = vmatprep.subr.mxu0 0.0
    %2372 = vmatpush1.msra.mxu0 0.0
    %2373 = vmatprep.mubr.f32.mxu0 0.0
    %2374 = vmatmul.mubr.f32.gmra.mrb[0].mxu0 %v2131
    %v2375 = vpop.f32.mrb[0].mxu0
    %v2376 = vadd.f32 0.0, %v2375
    %v2377 = vpop.f32.mrb[0].mxu0
    %2378 = vmatprep.mubr.f32.mxu0 0.0
    %2379 = vmatmul.mubr.f32.gmra.mrb[0].mxu0 %v2134
    %v2380 = vpop.f32.mrb[0].mxu0
    %v2381 = vadd.f32 0.0, %v2380
    %v2382 = vpop.f32.mrb[0].mxu0
    %2383 = vdwg.mxu0
    %2384 = vmatprep.subr.mxu0 0.0
    %2385 = vmatpush1.msra.mxu0 %v2301
    %2386 = vmatprep.subr.mxu0 0.0
    %2387 = vmatpush1.msra.mxu0 %v2302
    %2388 = vmatprep.subr.mxu0 0.0
    %2389 = vmatpush1.msra.mxu0 %v2303
    %2390 = vmatprep.subr.mxu0 0.0
    %2391 = vmatpush1.msra.mxu0 %v2304
    %2392 = vmatprep.subr.mxu0 0.0
    %2393 = vmatpush1.msra.mxu0 0.0
    %2394 = vmatprep.subr.mxu0 0.0
    %2395 = vmatpush1.msra.mxu0 0.0
    %2396 = vmatprep.subr.mxu0 0.0
    %2397 = vmatpush1.msra.mxu0 0.0
    %2398 = vmatprep.subr.mxu0 0.0
    %2399 = vmatpush1.msra.mxu0 0.0
    %2400 = vmatprep.subr.mxu0 0.0
    %2401 = vmatpush1.msra.mxu0 0.0
    %2402 = vmatprep.subr.mxu0 0.0
    %2403 = vmatpush1.msra.mxu0 0.0
    %2404 = vmatprep.subr.mxu0 0.0
    %2405 = vmatpush1.msra.mxu0 0.0
    %2406 = vmatprep.subr.mxu0 0.0
    %2407 = vmatpush1.msra.mxu0 0.0
    %2408 = vmatprep.subr.mxu0 0.0
    %2409 = vmatpush1.msra.mxu0 0.0
    %2410 = vmatprep.subr.mxu0 0.0
    %2411 = vmatpush1.msra.mxu0 0.0
    %2412 = vmatprep.subr.mxu0 0.0
    %2413 = vmatpush1.msra.mxu0 0.0
    %2414 = vmatprep.subr.mxu0 0.0
    %2415 = vmatpush1.msra.mxu0 0.0
    %2416 = vmatprep.subr.mxu0 0.0
    %2417 = vmatpush1.msra.mxu0 0.0
    %2418 = vmatprep.subr.mxu0 0.0
    %2419 = vmatpush1.msra.mxu0 0.0
    %2420 = vmatprep.subr.mxu0 0.0
    %2421 = vmatpush1.msra.mxu0 0.0
    %2422 = vmatprep.subr.mxu0 0.0
    %2423 = vmatpush1.msra.mxu0 0.0
    %2424 = vmatprep.subr.mxu0 0.0
    %2425 = vmatpush1.msra.mxu0 0.0
    %2426 = vmatprep.subr.mxu0 0.0
    %2427 = vmatpush1.msra.mxu0 0.0
    %2428 = vmatprep.subr.mxu0 0.0
    %2429 = vmatpush1.msra.mxu0 0.0
    %2430 = vmatprep.subr.mxu0 0.0
    %2431 = vmatpush1.msra.mxu0 0.0
    %2432 = vmatprep.subr.mxu0 0.0
    %2433 = vmatpush1.msra.mxu0 0.0
    %2434 = vmatprep.subr.mxu0 0.0
    %2435 = vmatpush1.msra.mxu0 0.0
    %2436 = vmatprep.subr.mxu0 0.0
    %2437 = vmatpush1.msra.mxu0 0.0
    %2438 = vmatprep.subr.mxu0 0.0
    %2439 = vmatpush1.msra.mxu0 0.0
    %2440 = vmatprep.subr.mxu0 0.0
    %2441 = vmatpush1.msra.mxu0 0.0
    %2442 = vmatprep.subr.mxu0 0.0
    %2443 = vmatpush1.msra.mxu0 0.0
    %2444 = vmatprep.subr.mxu0 0.0
    %2445 = vmatpush1.msra.mxu0 0.0
    %2446 = vmatprep.subr.mxu0 0.0
    %2447 = vmatpush1.msra.mxu0 0.0
    %2448 = vmatprep.mubr.f32.mxu0 0.0
    %2449 = vmatmul.mubr.f32.gmra.mrb[0].mxu0 %v2212
    %v2450 = vpop.f32.mrb[0].mxu0
    %v2451 = vadd.f32 %v2376, %v2450
    %v2452 = vpop.f32.mrb[0].mxu0
    %2453 = vmatprep.mubr.f32.mxu0 0.0
    %2454 = vmatmul.mubr.f32.gmra.mrb[0].mxu0 %v2215
    %v2455 = vpop.f32.mrb[0].mxu0
    %v2456 = vadd.f32 %v2381, %v2455
    %v2457 = vpop.f32.mrb[0].mxu0
    %2458 = vdwg.mxu0
    %v2459 = vld [vmem:[%s14] sm:$0x1]
    %v2461 = vlaneseq
    %v2462 = vshrl.u32 %v2461, 7
    %v2463 = vsub.s32 0, %v2462
    %v2464 = vrot.slane %v2459, %v2463
    %v2466 = vadd.f32 %v2451, %v2464
    %v2467 = vadd.f32 %v2456, %v2464
    %v2468 = vld [vmem:[#allocation15] sm:$0xff]
    %v2469 = vld [vmem:[#allocation15 + $0x8] sm:$0xff]
    %v2470 = vld [vmem:[#allocation15 + $0x10] sm:$0xff]
    %v2471 = vld [vmem:[#allocation15 + $0x18] sm:$0xff]
    %v2472 = vld [vmem:[#allocation16] sm:$0xff]
    %v2473 = vld [vmem:[#allocation16 + $0x8] sm:$0xff]
    %v2474 = vld [vmem:[#allocation16 + $0x10] sm:$0xff]
    %v2475 = vld [vmem:[#allocation16 + $0x18] sm:$0xff]
    %s2476 = scalar_lea.vmem [#allocation5], 4
    %v2477 = vld [vmem:[%s2476] sm:$0x3]
    %s2478 = scalar_lea.vmem [#allocation7], 4
    %v2479 = vld [vmem:[%s2478] sm:$0x3]
    %s2480 = scalar_lea.vmem [#allocation5], 6
    %v2481 = vld [vmem:[%s2480] sm:$0x3]
    %s2482 = scalar_lea.vmem [#allocation7], 6
    %v2483 = vld [vmem:[%s2482] sm:$0x3]
    %v2485 = vsel %vm359, %v2477, 0
    %2487 = vmatprep.subr.mxu0 0.0
    %2488 = vmatpush1.msra.mxu0 %v2468
    %2489 = vmatprep.subr.mxu0 0.0
    %2490 = vmatpush1.msra.mxu0 %v2469
    %2491 = vmatprep.subr.mxu0 0.0
    %2492 = vmatpush1.msra.mxu0 %v2470
    %2493 = vmatprep.subr.mxu0 0.0
    %2494 = vmatpush1.msra.mxu0 %v2471
    %2495 = vmatprep.subr.mxu0 0.0
    %2496 = vmatpush1.msra.mxu0 0.0
    %2497 = vmatprep.subr.mxu0 0.0
    %2498 = vmatpush1.msra.mxu0 0.0
    %2499 = vmatprep.subr.mxu0 0.0
    %2500 = vmatpush1.msra.mxu0 0.0
    %2501 = vmatprep.subr.mxu0 0.0
    %2502 = vmatpush1.msra.mxu0 0.0
    %2503 = vmatprep.subr.mxu0 0.0
    %2504 = vmatpush1.msra.mxu0 0.0
    %2505 = vmatprep.subr.mxu0 0.0
    %2506 = vmatpush1.msra.mxu0 0.0
    %2507 = vmatprep.subr.mxu0 0.0
    %2508 = vmatpush1.msra.mxu0 0.0
    %2509 = vmatprep.subr.mxu0 0.0
    %2510 = vmatpush1.msra.mxu0 0.0
    %2511 = vmatprep.subr.mxu0 0.0
    %2512 = vmatpush1.msra.mxu0 0.0
    %2513 = vmatprep.subr.mxu0 0.0
    %2514 = vmatpush1.msra.mxu0 0.0
    %2515 = vmatprep.subr.mxu0 0.0
    %2516 = vmatpush1.msra.mxu0 0.0
    %2517 = vmatprep.subr.mxu0 0.0
    %2518 = vmatpush1.msra.mxu0 0.0
    %2519 = vmatprep.subr.mxu0 0.0
    %2520 = vmatpush1.msra.mxu0 0.0
    %2521 = vmatprep.subr.mxu0 0.0
    %2522 = vmatpush1.msra.mxu0 0.0
    %2523 = vmatprep.subr.mxu0 0.0
    %2524 = vmatpush1.msra.mxu0 0.0
    %2525 = vmatprep.subr.mxu0 0.0
    %2526 = vmatpush1.msra.mxu0 0.0
    %2527 = vmatprep.subr.mxu0 0.0
    %2528 = vmatpush1.msra.mxu0 0.0
    %2529 = vmatprep.subr.mxu0 0.0
    %2530 = vmatpush1.msra.mxu0 0.0
    %2531 = vmatprep.subr.mxu0 0.0
    %2532 = vmatpush1.msra.mxu0 0.0
    %2533 = vmatprep.subr.mxu0 0.0
    %2534 = vmatpush1.msra.mxu0 0.0
    %2535 = vmatprep.subr.mxu0 0.0
    %2536 = vmatpush1.msra.mxu0 0.0
    %2537 = vmatprep.subr.mxu0 0.0
    %2538 = vmatpush1.msra.mxu0 0.0
    %2539 = vmatprep.subr.mxu0 0.0
    %2540 = vmatpush1.msra.mxu0 0.0
    %2541 = vmatprep.subr.mxu0 0.0
    %2542 = vmatpush1.msra.mxu0 0.0
    %2543 = vmatprep.subr.mxu0 0.0
    %2544 = vmatpush1.msra.mxu0 0.0
    %2545 = vmatprep.subr.mxu0 0.0
    %2546 = vmatpush1.msra.mxu0 0.0
    %2547 = vmatprep.subr.mxu0 0.0
    %2548 = vmatpush1.msra.mxu0 0.0
    %2549 = vmatprep.subr.mxu0 0.0
    %2550 = vmatpush1.msra.mxu0 0.0
    %2551 = vmatprep.mubr.f32.mxu0 0.0
    %2552 = vmatmul.mubr.f32.gmra.mrb[0].mxu0 %v2485
    %v2553 = vpop.f32.mrb[0].mxu0
    %v2554 = vadd.f32 0.0, %v2553
    %v2555 = vpop.f32.mrb[0].mxu0
    %2556 = vdwg.mxu0
    %v2557 = vadd.f32 %v2299, %v2554
    %v2558 = vxor.u32 %v2557, 2147483648
    %v2559 = vmul.f32 %v2558, 1.442695
    %v2560 = vpow.pop %v2559
    %v2561 = vadd.f32 %v2560, 1.0
    %v2562 = vrcp.pop %v2561
    %v2563 = vmul.f32 1.0, %v2562
    %v2564 = vtanh.pop %v2557
    %2566 = vrot.lane.b32.xlu0 %v2479, 32
    %v2567 = vpop.permute.xlu0 %2566
    %v2569 = vmul.f32 %v2563, %v2567
    %2571 = vrot.lane.b32.xlu0 %v2564, 64
    %v2572 = vpop.permute.xlu0 %2571
    %v2574 = vmul.f32 %v2563, %v2572
    %2576 = vrot.lane.b32.xlu0 %v2574, 32
    %v2577 = vpop.permute.xlu0 %2576
    %v2579 = vadd.f32 %v2569, %v2577
    %v2580 = vtanh.pop %v2579
    %2582 = vrot.lane.b32.xlu0 %v2580, 64
    %v2583 = vpop.permute.xlu0 %2582
    %v2585 = vmul.f32 %v2563, %v2583
    %2587 = vrot.lane.b32.xlu0 %v2585, 32
    %v2588 = vpop.permute.xlu0 %2587
    %2590 = vst.msk [vmem:[#allocation2] sm:$0x3] %vm466, %v2588
    %v2592 = vsel %vm359, %v2481, 0
    %2594 = vmatprep.subr.mxu0 0.0
    %2595 = vmatpush1.msra.mxu0 %v2472
    %2596 = vmatprep.subr.mxu0 0.0
    %2597 = vmatpush1.msra.mxu0 %v2473
    %2598 = vmatprep.subr.mxu0 0.0
    %2599 = vmatpush1.msra.mxu0 %v2474
    %2600 = vmatprep.subr.mxu0 0.0
    %2601 = vmatpush1.msra.mxu0 %v2475
    %2602 = vmatprep.subr.mxu0 0.0
    %2603 = vmatpush1.msra.mxu0 0.0
    %2604 = vmatprep.subr.mxu0 0.0
    %2605 = vmatpush1.msra.mxu0 0.0
    %2606 = vmatprep.subr.mxu0 0.0
    %2607 = vmatpush1.msra.mxu0 0.0
    %2608 = vmatprep.subr.mxu0 0.0
    %2609 = vmatpush1.msra.mxu0 0.0
    %2610 = vmatprep.subr.mxu0 0.0
    %2611 = vmatpush1.msra.mxu0 0.0
    %2612 = vmatprep.subr.mxu0 0.0
    %2613 = vmatpush1.msra.mxu0 0.0
    %2614 = vmatprep.subr.mxu0 0.0
    %2615 = vmatpush1.msra.mxu0 0.0
    %2616 = vmatprep.subr.mxu0 0.0
    %2617 = vmatpush1.msra.mxu0 0.0
    %2618 = vmatprep.subr.mxu0 0.0
    %2619 = vmatpush1.msra.mxu0 0.0
    %2620 = vmatprep.subr.mxu0 0.0
    %2621 = vmatpush1.msra.mxu0 0.0
    %2622 = vmatprep.subr.mxu0 0.0
    %2623 = vmatpush1.msra.mxu0 0.0
    %2624 = vmatprep.subr.mxu0 0.0
    %2625 = vmatpush1.msra.mxu0 0.0
    %2626 = vmatprep.subr.mxu0 0.0
    %2627 = vmatpush1.msra.mxu0 0.0
    %2628 = vmatprep.subr.mxu0 0.0
    %2629 = vmatpush1.msra.mxu0 0.0
    %2630 = vmatprep.subr.mxu0 0.0
    %2631 = vmatpush1.msra.mxu0 0.0
    %2632 = vmatprep.subr.mxu0 0.0
    %2633 = vmatpush1.msra.mxu0 0.0
    %2634 = vmatprep.subr.mxu0 0.0
    %2635 = vmatpush1.msra.mxu0 0.0
    %2636 = vmatprep.subr.mxu0 0.0
    %2637 = vmatpush1.msra.mxu0 0.0
    %2638 = vmatprep.subr.mxu0 0.0
    %2639 = vmatpush1.msra.mxu0 0.0
    %2640 = vmatprep.subr.mxu0 0.0
    %2641 = vmatpush1.msra.mxu0 0.0
    %2642 = vmatprep.subr.mxu0 0.0
    %2643 = vmatpush1.msra.mxu0 0.0
    %2644 = vmatprep.subr.mxu0 0.0
    %2645 = vmatpush1.msra.mxu0 0.0
    %2646 = vmatprep.subr.mxu0 0.0
    %2647 = vmatpush1.msra.mxu0 0.0
    %2648 = vmatprep.subr.mxu0 0.0
    %2649 = vmatpush1.msra.mxu0 0.0
    %2650 = vmatprep.subr.mxu0 0.0
    %2651 = vmatpush1.msra.mxu0 0.0
    %2652 = vmatprep.subr.mxu0 0.0
    %2653 = vmatpush1.msra.mxu0 0.0
    %2654 = vmatprep.subr.mxu0 0.0
    %2655 = vmatpush1.msra.mxu0 0.0
    %2656 = vmatprep.subr.mxu0 0.0
    %2657 = vmatpush1.msra.mxu0 0.0
    %2658 = vmatprep.mubr.f32.mxu0 0.0
    %2659 = vmatmul.mubr.f32.gmra.mrb[0].mxu0 %v2592
    %v2660 = vpop.f32.mrb[0].mxu0
    %v2661 = vadd.f32 0.0, %v2660
    %v2662 = vpop.f32.mrb[0].mxu0
    %2663 = vdwg.mxu0
    %v2665 = vrot.slane %v2661, 2
    %v2667 = vadd.f32 %v2467, %v2665
    %v2668 = vxor.u32 %v2667, 2147483648
    %v2669 = vmul.f32 %v2668, 1.442695
    %v2670 = vpow.pop %v2669
    %v2671 = vadd.f32 %v2670, 1.0
    %v2672 = vrcp.pop %v2671
    %v2673 = vmul.f32 1.0, %v2672
    %v2674 = vtanh.pop %v2667
    %v2676 = vrot.slane %v2483, 2
    %2677 = vrot.lane.b32.xlu0 %v2676, 32
    %v2678 = vpop.permute.xlu0 %2677
    %v2680 = vmul.f32 %v2673, %v2678
    %2682 = vrot.lane.b32.xlu0 %v2674, 64
    %v2683 = vpop.permute.xlu0 %2682
    %v2685 = vmul.f32 %v2673, %v2683
    %2687 = vrot.lane.b32.xlu0 %v2685, 32
    %v2688 = vpop.permute.xlu0 %2687
    %v2690 = vadd.f32 %v2680, %v2688
    %v2691 = vtanh.pop %v2690
    %2693 = vrot.lane.b32.xlu0 %v2691, 64
    %v2694 = vpop.permute.xlu0 %2693
    %v2696 = vmul.f32 %v2673, %v2694
    %2698 = vrot.lane.b32.xlu0 %v2696, 32
    %v2699 = vpop.permute.xlu0 %2698
    %2701 = vst.msk [vmem:[#allocation3 + $0x8] sm:$0xc0] %vm578, %v2699
    %v2702 = vsel %vm359, %v2588, 0
    %2704 = vmatprep.subr.mxu0 0.0
    %2705 = vmatpush1.msra.mxu0 %v2468
    %2706 = vmatprep.subr.mxu0 0.0
    %2707 = vmatpush1.msra.mxu0 %v2469
    %2708 = vmatprep.subr.mxu0 0.0
    %2709 = vmatpush1.msra.mxu0 %v2470
    %2710 = vmatprep.subr.mxu0 0.0
    %2711 = vmatpush1.msra.mxu0 %v2471
    %2712 = vmatprep.subr.mxu0 0.0
    %2713 = vmatpush1.msra.mxu0 0.0
    %2714 = vmatprep.subr.mxu0 0.0
    %2715 = vmatpush1.msra.mxu0 0.0
    %2716 = vmatprep.subr.mxu0 0.0
    %2717 = vmatpush1.msra.mxu0 0.0
    %2718 = vmatprep.subr.mxu0 0.0
    %2719 = vmatpush1.msra.mxu0 0.0
    %2720 = vmatprep.subr.mxu0 0.0
    %2721 = vmatpush1.msra.mxu0 0.0
    %2722 = vmatprep.subr.mxu0 0.0
    %2723 = vmatpush1.msra.mxu0 0.0
    %2724 = vmatprep.subr.mxu0 0.0
    %2725 = vmatpush1.msra.mxu0 0.0
    %2726 = vmatprep.subr.mxu0 0.0
    %2727 = vmatpush1.msra.mxu0 0.0
    %2728 = vmatprep.subr.mxu0 0.0
    %2729 = vmatpush1.msra.mxu0 0.0
    %2730 = vmatprep.subr.mxu0 0.0
    %2731 = vmatpush1.msra.mxu0 0.0
    %2732 = vmatprep.subr.mxu0 0.0
    %2733 = vmatpush1.msra.mxu0 0.0
    %2734 = vmatprep.subr.mxu0 0.0
    %2735 = vmatpush1.msra.mxu0 0.0
    %2736 = vmatprep.subr.mxu0 0.0
    %2737 = vmatpush1.msra.mxu0 0.0
    %2738 = vmatprep.subr.mxu0 0.0
    %2739 = vmatpush1.msra.mxu0 0.0
    %2740 = vmatprep.subr.mxu0 0.0
    %2741 = vmatpush1.msra.mxu0 0.0
    %2742 = vmatprep.subr.mxu0 0.0
    %2743 = vmatpush1.msra.mxu0 0.0
    %2744 = vmatprep.subr.mxu0 0.0
    %2745 = vmatpush1.msra.mxu0 0.0
    %2746 = vmatprep.subr.mxu0 0.0
    %2747 = vmatpush1.msra.mxu0 0.0
    %2748 = vmatprep.subr.mxu0 0.0
    %2749 = vmatpush1.msra.mxu0 0.0
    %2750 = vmatprep.subr.mxu0 0.0
    %2751 = vmatpush1.msra.mxu0 0.0
    %2752 = vmatprep.subr.mxu0 0.0
    %2753 = vmatpush1.msra.mxu0 0.0
    %2754 = vmatprep.subr.mxu0 0.0
    %2755 = vmatpush1.msra.mxu0 0.0
    %2756 = vmatprep.subr.mxu0 0.0
    %2757 = vmatpush1.msra.mxu0 0.0
    %2758 = vmatprep.subr.mxu0 0.0
    %2759 = vmatpush1.msra.mxu0 0.0
    %2760 = vmatprep.subr.mxu0 0.0
    %2761 = vmatpush1.msra.mxu0 0.0
    %2762 = vmatprep.subr.mxu0 0.0
    %2763 = vmatpush1.msra.mxu0 0.0
    %2764 = vmatprep.subr.mxu0 0.0
    %2765 = vmatpush1.msra.mxu0 0.0
    %2766 = vmatprep.subr.mxu0 0.0
    %2767 = vmatpush1.msra.mxu0 0.0
    %2768 = vmatprep.mubr.f32.mxu0 0.0
    %2769 = vmatmul.mubr.f32.gmra.mrb[0].mxu0 %v2702
    %v2770 = vpop.f32.mrb[0].mxu0
    %v2771 = vadd.f32 0.0, %v2770
    %v2772 = vpop.f32.mrb[0].mxu0
    %2773 = vdwg.mxu0
    %v2775 = vrot.slane %v2771, 6
    %v2777 = vadd.f32 %v2299, %v2775
    %v2778 = vxor.u32 %v2777, 2147483648
    %v2779 = vmul.f32 %v2778, 1.442695
    %v2780 = vpow.pop %v2779
    %v2781 = vadd.f32 %v2780, 1.0
    %v2782 = vrcp.pop %v2781
    %v2783 = vmul.f32 1.0, %v2782
    %v2784 = vtanh.pop %v2777
    %v2786 = vrot.slane %v2579, 6
    %v2788 = vmul.f32 %v2783, %v2786
    %2790 = vrot.lane.b32.xlu0 %v2784, 64
    %v2791 = vpop.permute.xlu0 %2790
    %v2793 = vmul.f32 %v2783, %v2791
    %2795 = vrot.lane.b32.xlu0 %v2793, 32
    %v2796 = vpop.permute.xlu0 %2795
    %v2798 = vadd.f32 %v2788, %v2796
    %v2799 = vtanh.pop %v2798
    %2801 = vrot.lane.b32.xlu0 %v2799, 64
    %v2802 = vpop.permute.xlu0 %2801
    %v2804 = vmul.f32 %v2783, %v2802
    %2806 = vrot.lane.b32.xlu0 %v2804, 32
    %v2807 = vpop.permute.xlu0 %2806
    %2809 = vst.msk [vmem:[#allocation2] sm:$0xc] %vm687, %v2807
    %v2810 = vrot.slane %v2696, 6
    %2811 = vrot.lane.b32.xlu0 %v2810, 32
    %v2812 = vpop.permute.xlu0 %2811
    %v2813 = vsel %vm359, %v2812, 0
    %2815 = vmatprep.subr.mxu0 0.0
    %2816 = vmatpush1.msra.mxu0 %v2472
    %2817 = vmatprep.subr.mxu0 0.0
    %2818 = vmatpush1.msra.mxu0 %v2473
    %2819 = vmatprep.subr.mxu0 0.0
    %2820 = vmatpush1.msra.mxu0 %v2474
    %2821 = vmatprep.subr.mxu0 0.0
    %2822 = vmatpush1.msra.mxu0 %v2475
    %2823 = vmatprep.subr.mxu0 0.0
    %2824 = vmatpush1.msra.mxu0 0.0
    %2825 = vmatprep.subr.mxu0 0.0
    %2826 = vmatpush1.msra.mxu0 0.0
    %2827 = vmatprep.subr.mxu0 0.0
    %2828 = vmatpush1.msra.mxu0 0.0
    %2829 = vmatprep.subr.mxu0 0.0
    %2830 = vmatpush1.msra.mxu0 0.0
    %2831 = vmatprep.subr.mxu0 0.0
    %2832 = vmatpush1.msra.mxu0 0.0
    %2833 = vmatprep.subr.mxu0 0.0
    %2834 = vmatpush1.msra.mxu0 0.0
    %2835 = vmatprep.subr.mxu0 0.0
    %2836 = vmatpush1.msra.mxu0 0.0
    %2837 = vmatprep.subr.mxu0 0.0
    %2838 = vmatpush1.msra.mxu0 0.0
    %2839 = vmatprep.subr.mxu0 0.0
    %2840 = vmatpush1.msra.mxu0 0.0
    %2841 = vmatprep.subr.mxu0 0.0
    %2842 = vmatpush1.msra.mxu0 0.0
    %2843 = vmatprep.subr.mxu0 0.0
    %2844 = vmatpush1.msra.mxu0 0.0
    %2845 = vmatprep.subr.mxu0 0.0
    %2846 = vmatpush1.msra.mxu0 0.0
    %2847 = vmatprep.subr.mxu0 0.0
    %2848 = vmatpush1.msra.mxu0 0.0
    %2849 = vmatprep.subr.mxu0 0.0
    %2850 = vmatpush1.msra.mxu0 0.0
    %2851 = vmatprep.subr.mxu0 0.0
    %2852 = vmatpush1.msra.mxu0 0.0
    %2853 = vmatprep.subr.mxu0 0.0
    %2854 = vmatpush1.msra.mxu0 0.0
    %2855 = vmatprep.subr.mxu0 0.0
    %2856 = vmatpush1.msra.mxu0 0.0
    %2857 = vmatprep.subr.mxu0 0.0
    %2858 = vmatpush1.msra.mxu0 0.0
    %2859 = vmatprep.subr.mxu0 0.0
    %2860 = vmatpush1.msra.mxu0 0.0
    %2861 = vmatprep.subr.mxu0 0.0
    %2862 = vmatpush1.msra.mxu0 0.0
    %2863 = vmatprep.subr.mxu0 0.0
    %2864 = vmatpush1.msra.mxu0 0.0
    %2865 = vmatprep.subr.mxu0 0.0
    %2866 = vmatpush1.msra.mxu0 0.0
    %2867 = vmatprep.subr.mxu0 0.0
    %2868 = vmatpush1.msra.mxu0 0.0
    %2869 = vmatprep.subr.mxu0 0.0
    %2870 = vmatpush1.msra.mxu0 0.0
    %2871 = vmatprep.subr.mxu0 0.0
    %2872 = vmatpush1.msra.mxu0 0.0
    %2873 = vmatprep.subr.mxu0 0.0
    %2874 = vmatpush1.msra.mxu0 0.0
    %2875 = vmatprep.subr.mxu0 0.0
    %2876 = vmatpush1.msra.mxu0 0.0
    %2877 = vmatprep.subr.mxu0 0.0
    %2878 = vmatpush1.msra.mxu0 0.0
    %2879 = vmatprep.mubr.f32.mxu0 0.0
    %2880 = vmatmul.mubr.f32.gmra.mrb[0].mxu0 %v2813
    %v2881 = vpop.f32.mrb[0].mxu0
    %v2882 = vadd.f32 0.0, %v2881
    %v2883 = vpop.f32.mrb[0].mxu0
    %2884 = vdwg.mxu0
    %v2886 = vrot.slane %v2882, 4
    %v2888 = vadd.f32 %v2467, %v2886
    %v2889 = vxor.u32 %v2888, 2147483648
    %v2890 = vmul.f32 %v2889, 1.442695
    %v2891 = vpow.pop %v2890
    %v2892 = vadd.f32 %v2891, 1.0
    %v2893 = vrcp.pop %v2892
    %v2894 = vmul.f32 1.0, %v2893
    %v2895 = vtanh.pop %v2888
    %v2897 = vrot.slane %v2690, 2
    %v2899 = vmul.f32 %v2894, %v2897
    %2901 = vrot.lane.b32.xlu0 %v2895, 64
    %v2902 = vpop.permute.xlu0 %2901
    %v2904 = vmul.f32 %v2894, %v2902
    %2906 = vrot.lane.b32.xlu0 %v2904, 32
    %v2907 = vpop.permute.xlu0 %2906
    %v2909 = vadd.f32 %v2899, %v2907
    %v2910 = vtanh.pop %v2909
    %2912 = vrot.lane.b32.xlu0 %v2910, 64
    %v2913 = vpop.permute.xlu0 %2912
    %v2915 = vmul.f32 %v2894, %v2913
    %2917 = vrot.lane.b32.xlu0 %v2915, 32
    %v2918 = vpop.permute.xlu0 %2917
    %2920 = vst.msk [vmem:[#allocation3 + $0x8] sm:$0x30] %vm799, %v2918
    %v2921 = vrot.slane %v2804, 2
    %2922 = vrot.lane.b32.xlu0 %v2921, 32
    %v2923 = vpop.permute.xlu0 %2922
    %v2924 = vsel %vm359, %v2923, 0
    %2926 = vmatprep.subr.mxu0 0.0
    %2927 = vmatpush1.msra.mxu0 %v2468
    %2928 = vmatprep.subr.mxu0 0.0
    %2929 = vmatpush1.msra.mxu0 %v2469
    %2930 = vmatprep.subr.mxu0 0.0
    %2931 = vmatpush1.msra.mxu0 %v2470
    %2932 = vmatprep.subr.mxu0 0.0
    %2933 = vmatpush1.msra.mxu0 %v2471
    %2934 = vmatprep.subr.mxu0 0.0
    %2935 = vmatpush1.msra.mxu0 0.0
    %2936 = vmatprep.subr.mxu0 0.0
    %2937 = vmatpush1.msra.mxu0 0.0
    %2938 = vmatprep.subr.mxu0 0.0
    %2939 = vmatpush1.msra.mxu0 0.0
    %2940 = vmatprep.subr.mxu0 0.0
    %2941 = vmatpush1.msra.mxu0 0.0
    %2942 = vmatprep.subr.mxu0 0.0
    %2943 = vmatpush1.msra.mxu0 0.0
    %2944 = vmatprep.subr.mxu0 0.0
    %2945 = vmatpush1.msra.mxu0 0.0
    %2946 = vmatprep.subr.mxu0 0.0
    %2947 = vmatpush1.msra.mxu0 0.0
    %2948 = vmatprep.subr.mxu0 0.0
    %2949 = vmatpush1.msra.mxu0 0.0
    %2950 = vmatprep.subr.mxu0 0.0
    %2951 = vmatpush1.msra.mxu0 0.0
    %2952 = vmatprep.subr.mxu0 0.0
    %2953 = vmatpush1.msra.mxu0 0.0
    %2954 = vmatprep.subr.mxu0 0.0
    %2955 = vmatpush1.msra.mxu0 0.0
    %2956 = vmatprep.subr.mxu0 0.0
    %2957 = vmatpush1.msra.mxu0 0.0
    %2958 = vmatprep.subr.mxu0 0.0
    %2959 = vmatpush1.msra.mxu0 0.0
    %2960 = vmatprep.subr.mxu0 0.0
    %2961 = vmatpush1.msra.mxu0 0.0
    %2962 = vmatprep.subr.mxu0 0.0
    %2963 = vmatpush1.msra.mxu0 0.0
    %2964 = vmatprep.subr.mxu0 0.0
    %2965 = vmatpush1.msra.mxu0 0.0
    %2966 = vmatprep.subr.mxu0 0.0
    %2967 = vmatpush1.msra.mxu0 0.0
    %2968 = vmatprep.subr.mxu0 0.0
    %2969 = vmatpush1.msra.mxu0 0.0
    %2970 = vmatprep.subr.mxu0 0.0
    %2971 = vmatpush1.msra.mxu0 0.0
    %2972 = vmatprep.subr.mxu0 0.0
    %2973 = vmatpush1.msra.mxu0 0.0
    %2974 = vmatprep.subr.mxu0 0.0
    %2975 = vmatpush1.msra.mxu0 0.0
    %2976 = vmatprep.subr.mxu0 0.0
    %2977 = vmatpush1.msra.mxu0 0.0
    %2978 = vmatprep.subr.mxu0 0.0
    %2979 = vmatpush1.msra.mxu0 0.0
    %2980 = vmatprep.subr.mxu0 0.0
    %2981 = vmatpush1.msra.mxu0 0.0
    %2982 = vmatprep.subr.mxu0 0.0
    %2983 = vmatpush1.msra.mxu0 0.0
    %2984 = vmatprep.subr.mxu0 0.0
    %2985 = vmatpush1.msra.mxu0 0.0
    %2986 = vmatprep.subr.mxu0 0.0
    %2987 = vmatpush1.msra.mxu0 0.0
    %2988 = vmatprep.subr.mxu0 0.0
    %2989 = vmatpush1.msra.mxu0 0.0
    %2990 = vmatprep.mubr.f32.mxu0 0.0
    %2991 = vmatmul.mubr.f32.gmra.mrb[0].mxu0 %v2924
    %v2992 = vpop.f32.mrb[0].mxu0
    %v2993 = vadd.f32 0.0, %v2992
    %v2994 = vpop.f32.mrb[0].mxu0
    %2995 = vdwg.mxu0
    %v2997 = vrot.slane %v2993, 4
    %v2999 = vadd.f32 %v2299, %v2997
    %v3000 = vxor.u32 %v2999, 2147483648
    %v3001 = vmul.f32 %v3000, 1.442695
    %v3002 = vpow.pop %v3001
    %v3003 = vadd.f32 %v3002, 1.0
    %v3004 = vrcp.pop %v3003
    %v3005 = vmul.f32 1.0, %v3004
    %v3006 = vtanh.pop %v2999
    %v3008 = vrot.slane %v2798, 6
    %v3010 = vmul.f32 %v3005, %v3008
    %3012 = vrot.lane.b32.xlu0 %v3006, 64
    %v3013 = vpop.permute.xlu0 %3012
    %v3015 = vmul.f32 %v3005, %v3013
    %3017 = vrot.lane.b32.xlu0 %v3015, 32
    %v3018 = vpop.permute.xlu0 %3017
    %v3020 = vadd.f32 %v3010, %v3018
    %v3021 = vtanh.pop %v3020
    %3023 = vrot.lane.b32.xlu0 %v3021, 64
    %v3024 = vpop.permute.xlu0 %3023
    %v3026 = vmul.f32 %v3005, %v3024
    %3028 = vrot.lane.b32.xlu0 %v3026, 32
    %v3029 = vpop.permute.xlu0 %3028
    %3031 = vst.msk [vmem:[#allocation2] sm:$0x30] %vm799, %v3029
    %v3032 = vrot.slane %v2915, 4
    %3033 = vrot.lane.b32.xlu0 %v3032, 32
    %v3034 = vpop.permute.xlu0 %3033
    %v3035 = vsel %vm359, %v3034, 0
    %3037 = vmatprep.subr.mxu0 0.0
    %3038 = vmatpush1.msra.mxu0 %v2472
    %3039 = vmatprep.subr.mxu0 0.0
    %3040 = vmatpush1.msra.mxu0 %v2473
    %3041 = vmatprep.subr.mxu0 0.0
    %3042 = vmatpush1.msra.mxu0 %v2474
    %3043 = vmatprep.subr.mxu0 0.0
    %3044 = vmatpush1.msra.mxu0 %v2475
    %3045 = vmatprep.subr.mxu0 0.0
    %3046 = vmatpush1.msra.mxu0 0.0
    %3047 = vmatprep.subr.mxu0 0.0
    %3048 = vmatpush1.msra.mxu0 0.0
    %3049 = vmatprep.subr.mxu0 0.0
    %3050 = vmatpush1.msra.mxu0 0.0
    %3051 = vmatprep.subr.mxu0 0.0
    %3052 = vmatpush1.msra.mxu0 0.0
    %3053 = vmatprep.subr.mxu0 0.0
    %3054 = vmatpush1.msra.mxu0 0.0
    %3055 = vmatprep.subr.mxu0 0.0
    %3056 = vmatpush1.msra.mxu0 0.0
    %3057 = vmatprep.subr.mxu0 0.0
    %3058 = vmatpush1.msra.mxu0 0.0
    %3059 = vmatprep.subr.mxu0 0.0
    %3060 = vmatpush1.msra.mxu0 0.0
    %3061 = vmatprep.subr.mxu0 0.0
    %3062 = vmatpush1.msra.mxu0 0.0
    %3063 = vmatprep.subr.mxu0 0.0
    %3064 = vmatpush1.msra.mxu0 0.0
    %3065 = vmatprep.subr.mxu0 0.0
    %3066 = vmatpush1.msra.mxu0 0.0
    %3067 = vmatprep.subr.mxu0 0.0
    %3068 = vmatpush1.msra.mxu0 0.0
    %3069 = vmatprep.subr.mxu0 0.0
    %3070 = vmatpush1.msra.mxu0 0.0
    %3071 = vmatprep.subr.mxu0 0.0
    %3072 = vmatpush1.msra.mxu0 0.0
    %3073 = vmatprep.subr.mxu0 0.0
    %3074 = vmatpush1.msra.mxu0 0.0
    %3075 = vmatprep.subr.mxu0 0.0
    %3076 = vmatpush1.msra.mxu0 0.0
    %3077 = vmatprep.subr.mxu0 0.0
    %3078 = vmatpush1.msra.mxu0 0.0
    %3079 = vmatprep.subr.mxu0 0.0
    %3080 = vmatpush1.msra.mxu0 0.0
    %3081 = vmatprep.subr.mxu0 0.0
    %3082 = vmatpush1.msra.mxu0 0.0
    %3083 = vmatprep.subr.mxu0 0.0
    %3084 = vmatpush1.msra.mxu0 0.0
    %3085 = vmatprep.subr.mxu0 0.0
    %3086 = vmatpush1.msra.mxu0 0.0
    %3087 = vmatprep.subr.mxu0 0.0
    %3088 = vmatpush1.msra.mxu0 0.0
    %3089 = vmatprep.subr.mxu0 0.0
    %3090 = vmatpush1.msra.mxu0 0.0
    %3091 = vmatprep.subr.mxu0 0.0
    %3092 = vmatpush1.msra.mxu0 0.0
    %3093 = vmatprep.subr.mxu0 0.0
    %3094 = vmatpush1.msra.mxu0 0.0
    %3095 = vmatprep.subr.mxu0 0.0
    %3096 = vmatpush1.msra.mxu0 0.0
    %3097 = vmatprep.subr.mxu0 0.0
    %3098 = vmatpush1.msra.mxu0 0.0
    %3099 = vmatprep.subr.mxu0 0.0
    %3100 = vmatpush1.msra.mxu0 0.0
    %3101 = vmatprep.mubr.f32.mxu0 0.0
    %3102 = vmatmul.mubr.f32.gmra.mrb[0].mxu0 %v3035
    %v3103 = vpop.f32.mrb[0].mxu0
    %v3104 = vadd.f32 0.0, %v3103
    %v3105 = vpop.f32.mrb[0].mxu0
    %3106 = vdwg.mxu0
    %v3108 = vrot.slane %v3104, 6
    %v3110 = vadd.f32 %v2467, %v3108
    %v3111 = vxor.u32 %v3110, 2147483648
    %v3112 = vmul.f32 %v3111, 1.442695
    %v3113 = vpow.pop %v3112
    %v3114 = vadd.f32 %v3113, 1.0
    %v3115 = vrcp.pop %v3114
    %v3116 = vmul.f32 1.0, %v3115
    %v3117 = vtanh.pop %v3110
    %v3119 = vrot.slane %v2909, 2
    %v3121 = vmul.f32 %v3116, %v3119
    %3123 = vrot.lane.b32.xlu0 %v3117, 64
    %v3124 = vpop.permute.xlu0 %3123
    %v3126 = vmul.f32 %v3116, %v3124
    %3128 = vrot.lane.b32.xlu0 %v3126, 32
    %v3129 = vpop.permute.xlu0 %3128
    %v3131 = vadd.f32 %v3121, %v3129
    %v3132 = vtanh.pop %v3131
    %3134 = vrot.lane.b32.xlu0 %v3132, 64
    %v3135 = vpop.permute.xlu0 %3134
    %v3137 = vmul.f32 %v3116, %v3135
    %3139 = vrot.lane.b32.xlu0 %v3137, 32
    %v3140 = vpop.permute.xlu0 %3139
    %3142 = vst.msk [vmem:[#allocation3 + $0x8] sm:$0xc] %vm687, %v3140
    %v3143 = vrot.slane %v3026, 4
    %3144 = vrot.lane.b32.xlu0 %v3143, 32
    %v3145 = vpop.permute.xlu0 %3144
    %v3146 = vsel %vm359, %v3145, 0
    %3148 = vmatprep.subr.mxu0 0.0
    %3149 = vmatpush1.msra.mxu0 %v2468
    %3150 = vmatprep.subr.mxu0 0.0
    %3151 = vmatpush1.msra.mxu0 %v2469
    %3152 = vmatprep.subr.mxu0 0.0
    %3153 = vmatpush1.msra.mxu0 %v2470
    %3154 = vmatprep.subr.mxu0 0.0
    %3155 = vmatpush1.msra.mxu0 %v2471
    %3156 = vmatprep.subr.mxu0 0.0
    %3157 = vmatpush1.msra.mxu0 0.0
    %3158 = vmatprep.subr.mxu0 0.0
    %3159 = vmatpush1.msra.mxu0 0.0
    %3160 = vmatprep.subr.mxu0 0.0
    %3161 = vmatpush1.msra.mxu0 0.0
    %3162 = vmatprep.subr.mxu0 0.0
    %3163 = vmatpush1.msra.mxu0 0.0
    %3164 = vmatprep.subr.mxu0 0.0
    %3165 = vmatpush1.msra.mxu0 0.0
    %3166 = vmatprep.subr.mxu0 0.0
    %3167 = vmatpush1.msra.mxu0 0.0
    %3168 = vmatprep.subr.mxu0 0.0
    %3169 = vmatpush1.msra.mxu0 0.0
    %3170 = vmatprep.subr.mxu0 0.0
    %3171 = vmatpush1.msra.mxu0 0.0
    %3172 = vmatprep.subr.mxu0 0.0
    %3173 = vmatpush1.msra.mxu0 0.0
    %3174 = vmatprep.subr.mxu0 0.0
    %3175 = vmatpush1.msra.mxu0 0.0
    %3176 = vmatprep.subr.mxu0 0.0
    %3177 = vmatpush1.msra.mxu0 0.0
    %3178 = vmatprep.subr.mxu0 0.0
    %3179 = vmatpush1.msra.mxu0 0.0
    %3180 = vmatprep.subr.mxu0 0.0
    %3181 = vmatpush1.msra.mxu0 0.0
    %3182 = vmatprep.subr.mxu0 0.0
    %3183 = vmatpush1.msra.mxu0 0.0
    %3184 = vmatprep.subr.mxu0 0.0
    %3185 = vmatpush1.msra.mxu0 0.0
    %3186 = vmatprep.subr.mxu0 0.0
    %3187 = vmatpush1.msra.mxu0 0.0
    %3188 = vmatprep.subr.mxu0 0.0
    %3189 = vmatpush1.msra.mxu0 0.0
    %3190 = vmatprep.subr.mxu0 0.0
    %3191 = vmatpush1.msra.mxu0 0.0
    %3192 = vmatprep.subr.mxu0 0.0
    %3193 = vmatpush1.msra.mxu0 0.0
    %3194 = vmatprep.subr.mxu0 0.0
    %3195 = vmatpush1.msra.mxu0 0.0
    %3196 = vmatprep.subr.mxu0 0.0
    %3197 = vmatpush1.msra.mxu0 0.0
    %3198 = vmatprep.subr.mxu0 0.0
    %3199 = vmatpush1.msra.mxu0 0.0
    %3200 = vmatprep.subr.mxu0 0.0
    %3201 = vmatpush1.msra.mxu0 0.0
    %3202 = vmatprep.subr.mxu0 0.0
    %3203 = vmatpush1.msra.mxu0 0.0
    %3204 = vmatprep.subr.mxu0 0.0
    %3205 = vmatpush1.msra.mxu0 0.0
    %3206 = vmatprep.subr.mxu0 0.0
    %3207 = vmatpush1.msra.mxu0 0.0
    %3208 = vmatprep.subr.mxu0 0.0
    %3209 = vmatpush1.msra.mxu0 0.0
    %3210 = vmatprep.subr.mxu0 0.0
    %3211 = vmatpush1.msra.mxu0 0.0
    %3212 = vmatprep.mubr.f32.mxu0 0.0
    %3213 = vmatmul.mubr.f32.gmra.mrb[0].mxu0 %v3146
    %v3214 = vpop.f32.mrb[0].mxu0
    %v3215 = vadd.f32 0.0, %v3214
    %v3216 = vpop.f32.mrb[0].mxu0
    %3217 = vdwg.mxu0
    %v3219 = vrot.slane %v3215, 2
    %v3221 = vadd.f32 %v2299, %v3219
    %v3222 = vxor.u32 %v3221, 2147483648
    %v3223 = vmul.f32 %v3222, 1.442695
    %v3224 = vpow.pop %v3223
    %v3225 = vadd.f32 %v3224, 1.0
    %v3226 = vrcp.pop %v3225
    %v3227 = vmul.f32 1.0, %v3226
    %v3228 = vtanh.pop %v3221
    %v3230 = vrot.slane %v3020, 6
    %v3232 = vmul.f32 %v3227, %v3230
    %3234 = vrot.lane.b32.xlu0 %v3228, 64
    %v3235 = vpop.permute.xlu0 %3234
    %v3237 = vmul.f32 %v3227, %v3235
    %3239 = vrot.lane.b32.xlu0 %v3237, 32
    %v3240 = vpop.permute.xlu0 %3239
    %v3242 = vadd.f32 %v3232, %v3240
    %v3243 = vtanh.pop %v3242
    %3245 = vrot.lane.b32.xlu0 %v3243, 64
    %v3246 = vpop.permute.xlu0 %3245
    %v3248 = vmul.f32 %v3227, %v3246
    %3250 = vrot.lane.b32.xlu0 %v3248, 32
    %v3251 = vpop.permute.xlu0 %3250
    %3253 = vst.msk [vmem:[#allocation2] sm:$0xc0] %vm578, %v3251
    %v3254 = vrot.slane %v3137, 2
    %3255 = vrot.lane.b32.xlu0 %v3254, 32
    %v3256 = vpop.permute.xlu0 %3255
    %v3257 = vsel %vm359, %v3256, 0
    %3259 = vmatprep.subr.mxu0 0.0
    %3260 = vmatpush1.msra.mxu0 %v2472
    %3261 = vmatprep.subr.mxu0 0.0
    %3262 = vmatpush1.msra.mxu0 %v2473
    %3263 = vmatprep.subr.mxu0 0.0
    %3264 = vmatpush1.msra.mxu0 %v2474
    %3265 = vmatprep.subr.mxu0 0.0
    %3266 = vmatpush1.msra.mxu0 %v2475
    %3267 = vmatprep.subr.mxu0 0.0
    %3268 = vmatpush1.msra.mxu0 0.0
    %3269 = vmatprep.subr.mxu0 0.0
    %3270 = vmatpush1.msra.mxu0 0.0
    %3271 = vmatprep.subr.mxu0 0.0
    %3272 = vmatpush1.msra.mxu0 0.0
    %3273 = vmatprep.subr.mxu0 0.0
    %3274 = vmatpush1.msra.mxu0 0.0
    %3275 = vmatprep.subr.mxu0 0.0
    %3276 = vmatpush1.msra.mxu0 0.0
    %3277 = vmatprep.subr.mxu0 0.0
    %3278 = vmatpush1.msra.mxu0 0.0
    %3279 = vmatprep.subr.mxu0 0.0
    %3280 = vmatpush1.msra.mxu0 0.0
    %3281 = vmatprep.subr.mxu0 0.0
    %3282 = vmatpush1.msra.mxu0 0.0
    %3283 = vmatprep.subr.mxu0 0.0
    %3284 = vmatpush1.msra.mxu0 0.0
    %3285 = vmatprep.subr.mxu0 0.0
    %3286 = vmatpush1.msra.mxu0 0.0
    %3287 = vmatprep.subr.mxu0 0.0
    %3288 = vmatpush1.msra.mxu0 0.0
    %3289 = vmatprep.subr.mxu0 0.0
    %3290 = vmatpush1.msra.mxu0 0.0
    %3291 = vmatprep.subr.mxu0 0.0
    %3292 = vmatpush1.msra.mxu0 0.0
    %3293 = vmatprep.subr.mxu0 0.0
    %3294 = vmatpush1.msra.mxu0 0.0
    %3295 = vmatprep.subr.mxu0 0.0
    %3296 = vmatpush1.msra.mxu0 0.0
    %3297 = vmatprep.subr.mxu0 0.0
    %3298 = vmatpush1.msra.mxu0 0.0
    %3299 = vmatprep.subr.mxu0 0.0
    %3300 = vmatpush1.msra.mxu0 0.0
    %3301 = vmatprep.subr.mxu0 0.0
    %3302 = vmatpush1.msra.mxu0 0.0
    %3303 = vmatprep.subr.mxu0 0.0
    %3304 = vmatpush1.msra.mxu0 0.0
    %3305 = vmatprep.subr.mxu0 0.0
    %3306 = vmatpush1.msra.mxu0 0.0
    %3307 = vmatprep.subr.mxu0 0.0
    %3308 = vmatpush1.msra.mxu0 0.0
    %3309 = vmatprep.subr.mxu0 0.0
    %3310 = vmatpush1.msra.mxu0 0.0
    %3311 = vmatprep.subr.mxu0 0.0
    %3312 = vmatpush1.msra.mxu0 0.0
    %3313 = vmatprep.subr.mxu0 0.0
    %3314 = vmatpush1.msra.mxu0 0.0
    %3315 = vmatprep.subr.mxu0 0.0
    %3316 = vmatpush1.msra.mxu0 0.0
    %3317 = vmatprep.subr.mxu0 0.0
    %3318 = vmatpush1.msra.mxu0 0.0
    %3319 = vmatprep.subr.mxu0 0.0
    %3320 = vmatpush1.msra.mxu0 0.0
    %3321 = vmatprep.subr.mxu0 0.0
    %3322 = vmatpush1.msra.mxu0 0.0
    %3323 = vmatprep.mubr.f32.mxu0 0.0
    %3324 = vmatmul.mubr.f32.gmra.mrb[0].mxu0 %v3257
    %v3325 = vpop.f32.mrb[0].mxu0
    %v3326 = vadd.f32 0.0, %v3325
    %v3327 = vpop.f32.mrb[0].mxu0
    %3328 = vdwg.mxu0
    %v3329 = vadd.f32 %v2467, %v3326
    %v3330 = vxor.u32 %v3329, 2147483648
    %v3331 = vmul.f32 %v3330, 1.442695
    %v3332 = vpow.pop %v3331
    %v3333 = vadd.f32 %v3332, 1.0
    %v3334 = vrcp.pop %v3333
    %v3335 = vmul.f32 1.0, %v3334
    %v3336 = vtanh.pop %v3329
    %v3338 = vrot.slane %v3131, 2
    %v3340 = vmul.f32 %v3335, %v3338
    %3342 = vrot.lane.b32.xlu0 %v3336, 64
    %v3343 = vpop.permute.xlu0 %3342
    %v3345 = vmul.f32 %v3335, %v3343
    %3347 = vrot.lane.b32.xlu0 %v3345, 32
    %v3348 = vpop.permute.xlu0 %3347
    %v3350 = vadd.f32 %v3340, %v3348
    %v3351 = vtanh.pop %v3350
    %3353 = vrot.lane.b32.xlu0 %v3351, 64
    %v3354 = vpop.permute.xlu0 %3353
    %v3356 = vmul.f32 %v3335, %v3354
    %3358 = vrot.lane.b32.xlu0 %v3356, 32
    %v3359 = vpop.permute.xlu0 %3358
    %3361 = vst.msk [vmem:[#allocation3 + $0x8] sm:$0x3] %vm466, %v3359
    %v3362 = vrot.slane %v3248, 6
    %3363 = vrot.lane.b32.xlu0 %v3362, 32
    %v3364 = vpop.permute.xlu0 %3363
    %v3365 = vsel %vm359, %v3364, 0
    %3367 = vmatprep.subr.mxu0 0.0
    %3368 = vmatpush1.msra.mxu0 %v2468
    %3369 = vmatprep.subr.mxu0 0.0
    %3370 = vmatpush1.msra.mxu0 %v2469
    %3371 = vmatprep.subr.mxu0 0.0
    %3372 = vmatpush1.msra.mxu0 %v2470
    %3373 = vmatprep.subr.mxu0 0.0
    %3374 = vmatpush1.msra.mxu0 %v2471
    %3375 = vmatprep.subr.mxu0 0.0
    %3376 = vmatpush1.msra.mxu0 0.0
    %3377 = vmatprep.subr.mxu0 0.0
    %3378 = vmatpush1.msra.mxu0 0.0
    %3379 = vmatprep.subr.mxu0 0.0
    %3380 = vmatpush1.msra.mxu0 0.0
    %3381 = vmatprep.subr.mxu0 0.0
    %3382 = vmatpush1.msra.mxu0 0.0
    %3383 = vmatprep.subr.mxu0 0.0
    %3384 = vmatpush1.msra.mxu0 0.0
    %3385 = vmatprep.subr.mxu0 0.0
    %3386 = vmatpush1.msra.mxu0 0.0
    %3387 = vmatprep.subr.mxu0 0.0
    %3388 = vmatpush1.msra.mxu0 0.0
    %3389 = vmatprep.subr.mxu0 0.0
    %3390 = vmatpush1.msra.mxu0 0.0
    %3391 = vmatprep.subr.mxu0 0.0
    %3392 = vmatpush1.msra.mxu0 0.0
    %3393 = vmatprep.subr.mxu0 0.0
    %3394 = vmatpush1.msra.mxu0 0.0
    %3395 = vmatprep.subr.mxu0 0.0
    %3396 = vmatpush1.msra.mxu0 0.0
    %3397 = vmatprep.subr.mxu0 0.0
    %3398 = vmatpush1.msra.mxu0 0.0
    %3399 = vmatprep.subr.mxu0 0.0
    %3400 = vmatpush1.msra.mxu0 0.0
    %3401 = vmatprep.subr.mxu0 0.0
    %3402 = vmatpush1.msra.mxu0 0.0
    %3403 = vmatprep.subr.mxu0 0.0
    %3404 = vmatpush1.msra.mxu0 0.0
    %3405 = vmatprep.subr.mxu0 0.0
    %3406 = vmatpush1.msra.mxu0 0.0
    %3407 = vmatprep.subr.mxu0 0.0
    %3408 = vmatpush1.msra.mxu0 0.0
    %3409 = vmatprep.subr.mxu0 0.0
    %3410 = vmatpush1.msra.mxu0 0.0
    %3411 = vmatprep.subr.mxu0 0.0
    %3412 = vmatpush1.msra.mxu0 0.0
    %3413 = vmatprep.subr.mxu0 0.0
    %3414 = vmatpush1.msra.mxu0 0.0
    %3415 = vmatprep.subr.mxu0 0.0
    %3416 = vmatpush1.msra.mxu0 0.0
    %3417 = vmatprep.subr.mxu0 0.0
    %3418 = vmatpush1.msra.mxu0 0.0
    %3419 = vmatprep.subr.mxu0 0.0
    %3420 = vmatpush1.msra.mxu0 0.0
    %3421 = vmatprep.subr.mxu0 0.0
    %3422 = vmatpush1.msra.mxu0 0.0
    %3423 = vmatprep.subr.mxu0 0.0
    %3424 = vmatpush1.msra.mxu0 0.0
    %3425 = vmatprep.subr.mxu0 0.0
    %3426 = vmatpush1.msra.mxu0 0.0
    %3427 = vmatprep.subr.mxu0 0.0
    %3428 = vmatpush1.msra.mxu0 0.0
    %3429 = vmatprep.subr.mxu0 0.0
    %3430 = vmatpush1.msra.mxu0 0.0
    %3431 = vmatprep.mubr.f32.mxu0 0.0
    %3432 = vmatmul.mubr.f32.gmra.mrb[0].mxu0 %v3365
    %v3433 = vpop.f32.mrb[0].mxu0
    %v3434 = vadd.f32 0.0, %v3433
    %v3435 = vpop.f32.mrb[0].mxu0
    %3436 = vdwg.mxu0
    %v3437 = vadd.f32 %v2300, %v3434
    %v3438 = vxor.u32 %v3437, 2147483648
    %v3439 = vmul.f32 %v3438, 1.442695
    %v3440 = vpow.pop %v3439
    %v3441 = vadd.f32 %v3440, 1.0
    %v3442 = vrcp.pop %v3441
    %v3443 = vmul.f32 1.0, %v3442
    %v3444 = vtanh.pop %v3437
    %v3446 = vrot.slane %v3242, 6
    %v3448 = vmul.f32 %v3443, %v3446
    %3450 = vrot.lane.b32.xlu0 %v3444, 64
    %v3451 = vpop.permute.xlu0 %3450
    %v3453 = vmul.f32 %v3443, %v3451
    %3455 = vrot.lane.b32.xlu0 %v3453, 32
    %v3456 = vpop.permute.xlu0 %3455
    %v3458 = vadd.f32 %v3448, %v3456
    %v3459 = vtanh.pop %v3458
    %3461 = vrot.lane.b32.xlu0 %v3459, 64
    %v3462 = vpop.permute.xlu0 %3461
    %v3464 = vmul.f32 %v3443, %v3462
    %3466 = vrot.lane.b32.xlu0 %v3464, 32
    %v3467 = vpop.permute.xlu0 %3466
    %3469 = vst.msk [vmem:[#allocation2 + $0x8] sm:$0x3] %vm466, %v3467
    %v3470 = vsel %vm359, %v3359, 0
    %3472 = vmatprep.subr.mxu0 0.0
    %3473 = vmatpush1.msra.mxu0 %v2472
    %3474 = vmatprep.subr.mxu0 0.0
    %3475 = vmatpush1.msra.mxu0 %v2473
    %3476 = vmatprep.subr.mxu0 0.0
    %3477 = vmatpush1.msra.mxu0 %v2474
    %3478 = vmatprep.subr.mxu0 0.0
    %3479 = vmatpush1.msra.mxu0 %v2475
    %3480 = vmatprep.subr.mxu0 0.0
    %3481 = vmatpush1.msra.mxu0 0.0
    %3482 = vmatprep.subr.mxu0 0.0
    %3483 = vmatpush1.msra.mxu0 0.0
    %3484 = vmatprep.subr.mxu0 0.0
    %3485 = vmatpush1.msra.mxu0 0.0
    %3486 = vmatprep.subr.mxu0 0.0
    %3487 = vmatpush1.msra.mxu0 0.0
    %3488 = vmatprep.subr.mxu0 0.0
    %3489 = vmatpush1.msra.mxu0 0.0
    %3490 = vmatprep.subr.mxu0 0.0
    %3491 = vmatpush1.msra.mxu0 0.0
    %3492 = vmatprep.subr.mxu0 0.0
    %3493 = vmatpush1.msra.mxu0 0.0
    %3494 = vmatprep.subr.mxu0 0.0
    %3495 = vmatpush1.msra.mxu0 0.0
    %3496 = vmatprep.subr.mxu0 0.0
    %3497 = vmatpush1.msra.mxu0 0.0
    %3498 = vmatprep.subr.mxu0 0.0
    %3499 = vmatpush1.msra.mxu0 0.0
    %3500 = vmatprep.subr.mxu0 0.0
    %3501 = vmatpush1.msra.mxu0 0.0
    %3502 = vmatprep.subr.mxu0 0.0
    %3503 = vmatpush1.msra.mxu0 0.0
    %3504 = vmatprep.subr.mxu0 0.0
    %3505 = vmatpush1.msra.mxu0 0.0
    %3506 = vmatprep.subr.mxu0 0.0
    %3507 = vmatpush1.msra.mxu0 0.0
    %3508 = vmatprep.subr.mxu0 0.0
    %3509 = vmatpush1.msra.mxu0 0.0
    %3510 = vmatprep.subr.mxu0 0.0
    %3511 = vmatpush1.msra.mxu0 0.0
    %3512 = vmatprep.subr.mxu0 0.0
    %3513 = vmatpush1.msra.mxu0 0.0
    %3514 = vmatprep.subr.mxu0 0.0
    %3515 = vmatpush1.msra.mxu0 0.0
    %3516 = vmatprep.subr.mxu0 0.0
    %3517 = vmatpush1.msra.mxu0 0.0
    %3518 = vmatprep.subr.mxu0 0.0
    %3519 = vmatpush1.msra.mxu0 0.0
    %3520 = vmatprep.subr.mxu0 0.0
    %3521 = vmatpush1.msra.mxu0 0.0
    %3522 = vmatprep.subr.mxu0 0.0
    %3523 = vmatpush1.msra.mxu0 0.0
    %3524 = vmatprep.subr.mxu0 0.0
    %3525 = vmatpush1.msra.mxu0 0.0
    %3526 = vmatprep.subr.mxu0 0.0
    %3527 = vmatpush1.msra.mxu0 0.0
    %3528 = vmatprep.subr.mxu0 0.0
    %3529 = vmatpush1.msra.mxu0 0.0
    %3530 = vmatprep.subr.mxu0 0.0
    %3531 = vmatpush1.msra.mxu0 0.0
    %3532 = vmatprep.subr.mxu0 0.0
    %3533 = vmatpush1.msra.mxu0 0.0
    %3534 = vmatprep.subr.mxu0 0.0
    %3535 = vmatpush1.msra.mxu0 0.0
    %3536 = vmatprep.mubr.f32.mxu0 0.0
    %3537 = vmatmul.mubr.f32.gmra.mrb[0].mxu0 %v3470
    %v3538 = vpop.f32.mrb[0].mxu0
    %v3539 = vadd.f32 0.0, %v3538
    %v3540 = vpop.f32.mrb[0].mxu0
    %3541 = vdwg.mxu0
    %v3543 = vrot.slane %v3539, 2
    %v3545 = vadd.f32 %v2466, %v3543
    %v3546 = vxor.u32 %v3545, 2147483648
    %v3547 = vmul.f32 %v3546, 1.442695
    %v3548 = vpow.pop %v3547
    %v3549 = vadd.f32 %v3548, 1.0
    %v3550 = vrcp.pop %v3549
    %v3551 = vmul.f32 1.0, %v3550
    %v3552 = vtanh.pop %v3545
    %v3554 = vrot.slane %v3350, 2
    %v3556 = vmul.f32 %v3551, %v3554
    %3558 = vrot.lane.b32.xlu0 %v3552, 64
    %v3559 = vpop.permute.xlu0 %3558
    %v3561 = vmul.f32 %v3551, %v3559
    %3563 = vrot.lane.b32.xlu0 %v3561, 32
    %v3564 = vpop.permute.xlu0 %3563
    %v3566 = vadd.f32 %v3556, %v3564
    %v3567 = vtanh.pop %v3566
    %3569 = vrot.lane.b32.xlu0 %v3567, 64
    %v3570 = vpop.permute.xlu0 %3569
    %v3572 = vmul.f32 %v3551, %v3570
    %3574 = vrot.lane.b32.xlu0 %v3572, 32
    %v3575 = vpop.permute.xlu0 %3574
    %3577 = vst.msk [vmem:[#allocation3] sm:$0xc0] %vm578, %v3575
    %v3578 = vsel %vm359, %v3467, 0
    %3580 = vmatprep.subr.mxu0 0.0
    %3581 = vmatpush1.msra.mxu0 %v2468
    %3582 = vmatprep.subr.mxu0 0.0
    %3583 = vmatpush1.msra.mxu0 %v2469
    %3584 = vmatprep.subr.mxu0 0.0
    %3585 = vmatpush1.msra.mxu0 %v2470
    %3586 = vmatprep.subr.mxu0 0.0
    %3587 = vmatpush1.msra.mxu0 %v2471
    %3588 = vmatprep.subr.mxu0 0.0
    %3589 = vmatpush1.msra.mxu0 0.0
    %3590 = vmatprep.subr.mxu0 0.0
    %3591 = vmatpush1.msra.mxu0 0.0
    %3592 = vmatprep.subr.mxu0 0.0
    %3593 = vmatpush1.msra.mxu0 0.0
    %3594 = vmatprep.subr.mxu0 0.0
    %3595 = vmatpush1.msra.mxu0 0.0
    %3596 = vmatprep.subr.mxu0 0.0
    %3597 = vmatpush1.msra.mxu0 0.0
    %3598 = vmatprep.subr.mxu0 0.0
    %3599 = vmatpush1.msra.mxu0 0.0
    %3600 = vmatprep.subr.mxu0 0.0
    %3601 = vmatpush1.msra.mxu0 0.0
    %3602 = vmatprep.subr.mxu0 0.0
    %3603 = vmatpush1.msra.mxu0 0.0
    %3604 = vmatprep.subr.mxu0 0.0
    %3605 = vmatpush1.msra.mxu0 0.0
    %3606 = vmatprep.subr.mxu0 0.0
    %3607 = vmatpush1.msra.mxu0 0.0
    %3608 = vmatprep.subr.mxu0 0.0
    %3609 = vmatpush1.msra.mxu0 0.0
    %3610 = vmatprep.subr.mxu0 0.0
    %3611 = vmatpush1.msra.mxu0 0.0
    %3612 = vmatprep.subr.mxu0 0.0
    %3613 = vmatpush1.msra.mxu0 0.0
    %3614 = vmatprep.subr.mxu0 0.0
    %3615 = vmatpush1.msra.mxu0 0.0
    %3616 = vmatprep.subr.mxu0 0.0
    %3617 = vmatpush1.msra.mxu0 0.0
    %3618 = vmatprep.subr.mxu0 0.0
    %3619 = vmatpush1.msra.mxu0 0.0
    %3620 = vmatprep.subr.mxu0 0.0
    %3621 = vmatpush1.msra.mxu0 0.0
    %3622 = vmatprep.subr.mxu0 0.0
    %3623 = vmatpush1.msra.mxu0 0.0
    %3624 = vmatprep.subr.mxu0 0.0
    %3625 = vmatpush1.msra.mxu0 0.0
    %3626 = vmatprep.subr.mxu0 0.0
    %3627 = vmatpush1.msra.mxu0 0.0
    %3628 = vmatprep.subr.mxu0 0.0
    %3629 = vmatpush1.msra.mxu0 0.0
    %3630 = vmatprep.subr.mxu0 0.0
    %3631 = vmatpush1.msra.mxu0 0.0
    %3632 = vmatprep.subr.mxu0 0.0
    %3633 = vmatpush1.msra.mxu0 0.0
    %3634 = vmatprep.subr.mxu0 0.0
    %3635 = vmatpush1.msra.mxu0 0.0
    %3636 = vmatprep.subr.mxu0 0.0
    %3637 = vmatpush1.msra.mxu0 0.0
    %3638 = vmatprep.subr.mxu0 0.0
    %3639 = vmatpush1.msra.mxu0 0.0
    %3640 = vmatprep.subr.mxu0 0.0
    %3641 = vmatpush1.msra.mxu0 0.0
    %3642 = vmatprep.subr.mxu0 0.0
    %3643 = vmatpush1.msra.mxu0 0.0
    %3644 = vmatprep.mubr.f32.mxu0 0.0
    %3645 = vmatmul.mubr.f32.gmra.mrb[0].mxu0 %v3578
    %v3646 = vpop.f32.mrb[0].mxu0
    %v3647 = vadd.f32 0.0, %v3646
    %v3648 = vpop.f32.mrb[0].mxu0
    %3649 = vdwg.mxu0
    %v3651 = vrot.slane %v3647, 6
    %v3653 = vadd.f32 %v2300, %v3651
    %v3654 = vxor.u32 %v3653, 2147483648
    %v3655 = vmul.f32 %v3654, 1.442695
    %v3656 = vpow.pop %v3655
    %v3657 = vadd.f32 %v3656, 1.0
    %v3658 = vrcp.pop %v3657
    %v3659 = vmul.f32 1.0, %v3658
    %v3660 = vtanh.pop %v3653
    %v3662 = vrot.slane %v3458, 6
    %v3664 = vmul.f32 %v3659, %v3662
    %3666 = vrot.lane.b32.xlu0 %v3660, 64
    %v3667 = vpop.permute.xlu0 %3666
    %v3669 = vmul.f32 %v3659, %v3667
    %3671 = vrot.lane.b32.xlu0 %v3669, 32
    %v3672 = vpop.permute.xlu0 %3671
    %v3674 = vadd.f32 %v3664, %v3672
    %v3675 = vtanh.pop %v3674
    %3677 = vrot.lane.b32.xlu0 %v3675, 64
    %v3678 = vpop.permute.xlu0 %3677
    %v3680 = vmul.f32 %v3659, %v3678
    %3682 = vrot.lane.b32.xlu0 %v3680, 32
    %v3683 = vpop.permute.xlu0 %3682
    %3685 = vst.msk [vmem:[#allocation2 + $0x8] sm:$0xc] %vm687, %v3683
    %v3686 = vrot.slane %v3572, 6
    %3687 = vrot.lane.b32.xlu0 %v3686, 32
    %v3688 = vpop.permute.xlu0 %3687
    %v3689 = vsel %vm359, %v3688, 0
    %3691 = vmatprep.subr.mxu0 0.0
    %3692 = vmatpush1.msra.mxu0 %v2472
    %3693 = vmatprep.subr.mxu0 0.0
    %3694 = vmatpush1.msra.mxu0 %v2473
    %3695 = vmatprep.subr.mxu0 0.0
    %3696 = vmatpush1.msra.mxu0 %v2474
    %3697 = vmatprep.subr.mxu0 0.0
    %3698 = vmatpush1.msra.mxu0 %v2475
    %3699 = vmatprep.subr.mxu0 0.0
    %3700 = vmatpush1.msra.mxu0 0.0
    %3701 = vmatprep.subr.mxu0 0.0
    %3702 = vmatpush1.msra.mxu0 0.0
    %3703 = vmatprep.subr.mxu0 0.0
    %3704 = vmatpush1.msra.mxu0 0.0
    %3705 = vmatprep.subr.mxu0 0.0
    %3706 = vmatpush1.msra.mxu0 0.0
    %3707 = vmatprep.subr.mxu0 0.0
    %3708 = vmatpush1.msra.mxu0 0.0
    %3709 = vmatprep.subr.mxu0 0.0
    %3710 = vmatpush1.msra.mxu0 0.0
    %3711 = vmatprep.subr.mxu0 0.0
    %3712 = vmatpush1.msra.mxu0 0.0
    %3713 = vmatprep.subr.mxu0 0.0
    %3714 = vmatpush1.msra.mxu0 0.0
    %3715 = vmatprep.subr.mxu0 0.0
    %3716 = vmatpush1.msra.mxu0 0.0
    %3717 = vmatprep.subr.mxu0 0.0
    %3718 = vmatpush1.msra.mxu0 0.0
    %3719 = vmatprep.subr.mxu0 0.0
    %3720 = vmatpush1.msra.mxu0 0.0
    %3721 = vmatprep.subr.mxu0 0.0
    %3722 = vmatpush1.msra.mxu0 0.0
    %3723 = vmatprep.subr.mxu0 0.0
    %3724 = vmatpush1.msra.mxu0 0.0
    %3725 = vmatprep.subr.mxu0 0.0
    %3726 = vmatpush1.msra.mxu0 0.0
    %3727 = vmatprep.subr.mxu0 0.0
    %3728 = vmatpush1.msra.mxu0 0.0
    %3729 = vmatprep.subr.mxu0 0.0
    %3730 = vmatpush1.msra.mxu0 0.0
    %3731 = vmatprep.subr.mxu0 0.0
    %3732 = vmatpush1.msra.mxu0 0.0
    %3733 = vmatprep.subr.mxu0 0.0
    %3734 = vmatpush1.msra.mxu0 0.0
    %3735 = vmatprep.subr.mxu0 0.0
    %3736 = vmatpush1.msra.mxu0 0.0
    %3737 = vmatprep.subr.mxu0 0.0
    %3738 = vmatpush1.msra.mxu0 0.0
    %3739 = vmatprep.subr.mxu0 0.0
    %3740 = vmatpush1.msra.mxu0 0.0
    %3741 = vmatprep.subr.mxu0 0.0
    %3742 = vmatpush1.msra.mxu0 0.0
    %3743 = vmatprep.subr.mxu0 0.0
    %3744 = vmatpush1.msra.mxu0 0.0
    %3745 = vmatprep.subr.mxu0 0.0
    %3746 = vmatpush1.msra.mxu0 0.0
    %3747 = vmatprep.subr.mxu0 0.0
    %3748 = vmatpush1.msra.mxu0 0.0
    %3749 = vmatprep.subr.mxu0 0.0
    %3750 = vmatpush1.msra.mxu0 0.0
    %3751 = vmatprep.subr.mxu0 0.0
    %3752 = vmatpush1.msra.mxu0 0.0
    %3753 = vmatprep.subr.mxu0 0.0
    %3754 = vmatpush1.msra.mxu0 0.0
    %3755 = vmatprep.mubr.f32.mxu0 0.0
    %3756 = vmatmul.mubr.f32.gmra.mrb[0].mxu0 %v3689
    %v3757 = vpop.f32.mrb[0].mxu0
    %v3758 = vadd.f32 0.0, %v3757
    %v3759 = vpop.f32.mrb[0].mxu0
    %3760 = vdwg.mxu0
    %v3762 = vrot.slane %v3758, 4
    %v3764 = vadd.f32 %v2466, %v3762
    %v3765 = vxor.u32 %v3764, 2147483648
    %v3766 = vmul.f32 %v3765, 1.442695
    %v3767 = vpow.pop %v3766
    %v3768 = vadd.f32 %v3767, 1.0
    %v3769 = vrcp.pop %v3768
    %v3770 = vmul.f32 1.0, %v3769
    %v3771 = vtanh.pop %v3764
    %v3773 = vrot.slane %v3566, 2
    %v3775 = vmul.f32 %v3770, %v3773
    %3777 = vrot.lane.b32.xlu0 %v3771, 64
    %v3778 = vpop.permute.xlu0 %3777
    %v3780 = vmul.f32 %v3770, %v3778
    %3782 = vrot.lane.b32.xlu0 %v3780, 32
    %v3783 = vpop.permute.xlu0 %3782
    %v3785 = vadd.f32 %v3775, %v3783
    %v3786 = vtanh.pop %v3785
    %3788 = vrot.lane.b32.xlu0 %v3786, 64
    %v3789 = vpop.permute.xlu0 %3788
    %v3791 = vmul.f32 %v3770, %v3789
    %3793 = vrot.lane.b32.xlu0 %v3791, 32
    %v3794 = vpop.permute.xlu0 %3793
    %3796 = vst.msk [vmem:[#allocation3] sm:$0x30] %vm799, %v3794
    %v3797 = vrot.slane %v3680, 2
    %3798 = vrot.lane.b32.xlu0 %v3797, 32
    %v3799 = vpop.permute.xlu0 %3798
    %v3800 = vsel %vm359, %v3799, 0
    %3802 = vmatprep.subr.mxu0 0.0
    %3803 = vmatpush1.msra.mxu0 %v2468
    %3804 = vmatprep.subr.mxu0 0.0
    %3805 = vmatpush1.msra.mxu0 %v2469
    %3806 = vmatprep.subr.mxu0 0.0
    %3807 = vmatpush1.msra.mxu0 %v2470
    %3808 = vmatprep.subr.mxu0 0.0
    %3809 = vmatpush1.msra.mxu0 %v2471
    %3810 = vmatprep.subr.mxu0 0.0
    %3811 = vmatpush1.msra.mxu0 0.0
    %3812 = vmatprep.subr.mxu0 0.0
    %3813 = vmatpush1.msra.mxu0 0.0
    %3814 = vmatprep.subr.mxu0 0.0
    %3815 = vmatpush1.msra.mxu0 0.0
    %3816 = vmatprep.subr.mxu0 0.0
    %3817 = vmatpush1.msra.mxu0 0.0
    %3818 = vmatprep.subr.mxu0 0.0
    %3819 = vmatpush1.msra.mxu0 0.0
    %3820 = vmatprep.subr.mxu0 0.0
    %3821 = vmatpush1.msra.mxu0 0.0
    %3822 = vmatprep.subr.mxu0 0.0
    %3823 = vmatpush1.msra.mxu0 0.0
    %3824 = vmatprep.subr.mxu0 0.0
    %3825 = vmatpush1.msra.mxu0 0.0
    %3826 = vmatprep.subr.mxu0 0.0
    %3827 = vmatpush1.msra.mxu0 0.0
    %3828 = vmatprep.subr.mxu0 0.0
    %3829 = vmatpush1.msra.mxu0 0.0
    %3830 = vmatprep.subr.mxu0 0.0
    %3831 = vmatpush1.msra.mxu0 0.0
    %3832 = vmatprep.subr.mxu0 0.0
    %3833 = vmatpush1.msra.mxu0 0.0
    %3834 = vmatprep.subr.mxu0 0.0
    %3835 = vmatpush1.msra.mxu0 0.0
    %3836 = vmatprep.subr.mxu0 0.0
    %3837 = vmatpush1.msra.mxu0 0.0
    %3838 = vmatprep.subr.mxu0 0.0
    %3839 = vmatpush1.msra.mxu0 0.0
    %3840 = vmatprep.subr.mxu0 0.0
    %3841 = vmatpush1.msra.mxu0 0.0
    %3842 = vmatprep.subr.mxu0 0.0
    %3843 = vmatpush1.msra.mxu0 0.0
    %3844 = vmatprep.subr.mxu0 0.0
    %3845 = vmatpush1.msra.mxu0 0.0
    %3846 = vmatprep.subr.mxu0 0.0
    %3847 = vmatpush1.msra.mxu0 0.0
    %3848 = vmatprep.subr.mxu0 0.0
    %3849 = vmatpush1.msra.mxu0 0.0
    %3850 = vmatprep.subr.mxu0 0.0
    %3851 = vmatpush1.msra.mxu0 0.0
    %3852 = vmatprep.subr.mxu0 0.0
    %3853 = vmatpush1.msra.mxu0 0.0
    %3854 = vmatprep.subr.mxu0 0.0
    %3855 = vmatpush1.msra.mxu0 0.0
    %3856 = vmatprep.subr.mxu0 0.0
    %3857 = vmatpush1.msra.mxu0 0.0
    %3858 = vmatprep.subr.mxu0 0.0
    %3859 = vmatpush1.msra.mxu0 0.0
    %3860 = vmatprep.subr.mxu0 0.0
    %3861 = vmatpush1.msra.mxu0 0.0
    %3862 = vmatprep.subr.mxu0 0.0
    %3863 = vmatpush1.msra.mxu0 0.0
    %3864 = vmatprep.subr.mxu0 0.0
    %3865 = vmatpush1.msra.mxu0 0.0
    %3866 = vmatprep.mubr.f32.mxu0 0.0
    %3867 = vmatmul.mubr.f32.gmra.mrb[0].mxu0 %v3800
    %v3868 = vpop.f32.mrb[0].mxu0
    %v3869 = vadd.f32 0.0, %v3868
    %v3870 = vpop.f32.mrb[0].mxu0
    %3871 = vdwg.mxu0
    %v3873 = vrot.slane %v3869, 4
    %v3875 = vadd.f32 %v2300, %v3873
    %v3876 = vxor.u32 %v3875, 2147483648
    %v3877 = vmul.f32 %v3876, 1.442695
    %v3878 = vpow.pop %v3877
    %v3879 = vadd.f32 %v3878, 1.0
    %v3880 = vrcp.pop %v3879
    %v3881 = vmul.f32 1.0, %v3880
    %v3882 = vtanh.pop %v3875
    %v3884 = vrot.slane %v3674, 6
    %v3886 = vmul.f32 %v3881, %v3884
    %3888 = vrot.lane.b32.xlu0 %v3882, 64
    %v3889 = vpop.permute.xlu0 %3888
    %v3891 = vmul.f32 %v3881, %v3889
    %3893 = vrot.lane.b32.xlu0 %v3891, 32
    %v3894 = vpop.permute.xlu0 %3893
    %v3896 = vadd.f32 %v3886, %v3894
    %v3897 = vtanh.pop %v3896
    %3899 = vrot.lane.b32.xlu0 %v3897, 64
    %v3900 = vpop.permute.xlu0 %3899
    %v3902 = vmul.f32 %v3881, %v3900
    %3904 = vrot.lane.b32.xlu0 %v3902, 32
    %v3905 = vpop.permute.xlu0 %3904
    %3907 = vst.msk [vmem:[#allocation2 + $0x8] sm:$0x30] %vm799, %v3905
    %v3908 = vrot.slane %v3791, 4
    %3909 = vrot.lane.b32.xlu0 %v3908, 32
    %v3910 = vpop.permute.xlu0 %3909
    %v3911 = vsel %vm359, %v3910, 0
    %3913 = vmatprep.subr.mxu0 0.0
    %3914 = vmatpush1.msra.mxu0 %v2472
    %3915 = vmatprep.subr.mxu0 0.0
    %3916 = vmatpush1.msra.mxu0 %v2473
    %3917 = vmatprep.subr.mxu0 0.0
    %3918 = vmatpush1.msra.mxu0 %v2474
    %3919 = vmatprep.subr.mxu0 0.0
    %3920 = vmatpush1.msra.mxu0 %v2475
    %3921 = vmatprep.subr.mxu0 0.0
    %3922 = vmatpush1.msra.mxu0 0.0
    %3923 = vmatprep.subr.mxu0 0.0
    %3924 = vmatpush1.msra.mxu0 0.0
    %3925 = vmatprep.subr.mxu0 0.0
    %3926 = vmatpush1.msra.mxu0 0.0
    %3927 = vmatprep.subr.mxu0 0.0
    %3928 = vmatpush1.msra.mxu0 0.0
    %3929 = vmatprep.subr.mxu0 0.0
    %3930 = vmatpush1.msra.mxu0 0.0
    %3931 = vmatprep.subr.mxu0 0.0
    %3932 = vmatpush1.msra.mxu0 0.0
    %3933 = vmatprep.subr.mxu0 0.0
    %3934 = vmatpush1.msra.mxu0 0.0
    %3935 = vmatprep.subr.mxu0 0.0
    %3936 = vmatpush1.msra.mxu0 0.0
    %3937 = vmatprep.subr.mxu0 0.0
    %3938 = vmatpush1.msra.mxu0 0.0
    %3939 = vmatprep.subr.mxu0 0.0
    %3940 = vmatpush1.msra.mxu0 0.0
    %3941 = vmatprep.subr.mxu0 0.0
    %3942 = vmatpush1.msra.mxu0 0.0
    %3943 = vmatprep.subr.mxu0 0.0
    %3944 = vmatpush1.msra.mxu0 0.0
    %3945 = vmatprep.subr.mxu0 0.0
    %3946 = vmatpush1.msra.mxu0 0.0
    %3947 = vmatprep.subr.mxu0 0.0
    %3948 = vmatpush1.msra.mxu0 0.0
    %3949 = vmatprep.subr.mxu0 0.0
    %3950 = vmatpush1.msra.mxu0 0.0
    %3951 = vmatprep.subr.mxu0 0.0
    %3952 = vmatpush1.msra.mxu0 0.0
    %3953 = vmatprep.subr.mxu0 0.0
    %3954 = vmatpush1.msra.mxu0 0.0
    %3955 = vmatprep.subr.mxu0 0.0
    %3956 = vmatpush1.msra.mxu0 0.0
    %3957 = vmatprep.subr.mxu0 0.0
    %3958 = vmatpush1.msra.mxu0 0.0
    %3959 = vmatprep.subr.mxu0 0.0
    %3960 = vmatpush1.msra.mxu0 0.0
    %3961 = vmatprep.subr.mxu0 0.0
    %3962 = vmatpush1.msra.mxu0 0.0
    %3963 = vmatprep.subr.mxu0 0.0
    %3964 = vmatpush1.msra.mxu0 0.0
    %3965 = vmatprep.subr.mxu0 0.0
    %3966 = vmatpush1.msra.mxu0 0.0
    %3967 = vmatprep.subr.mxu0 0.0
    %3968 = vmatpush1.msra.mxu0 0.0
    %3969 = vmatprep.subr.mxu0 0.0
    %3970 = vmatpush1.msra.mxu0 0.0
    %3971 = vmatprep.subr.mxu0 0.0
    %3972 = vmatpush1.msra.mxu0 0.0
    %3973 = vmatprep.subr.mxu0 0.0
    %3974 = vmatpush1.msra.mxu0 0.0
    %3975 = vmatprep.subr.mxu0 0.0
    %3976 = vmatpush1.msra.mxu0 0.0
    %3977 = vmatprep.mubr.f32.mxu0 0.0
    %3978 = vmatmul.mubr.f32.gmra.mrb[0].mxu0 %v3911
    %v3979 = vpop.f32.mrb[0].mxu0
    %v3980 = vadd.f32 0.0, %v3979
    %v3981 = vpop.f32.mrb[0].mxu0
    %3982 = vdwg.mxu0
    %v3984 = vrot.slane %v3980, 6
    %v3986 = vadd.f32 %v2466, %v3984
    %v3987 = vxor.u32 %v3986, 2147483648
    %v3988 = vmul.f32 %v3987, 1.442695
    %v3989 = vpow.pop %v3988
    %v3990 = vadd.f32 %v3989, 1.0
    %v3991 = vrcp.pop %v3990
    %v3992 = vmul.f32 1.0, %v3991
    %v3993 = vtanh.pop %v3986
    %v3995 = vrot.slane %v3785, 2
    %v3997 = vmul.f32 %v3992, %v3995
    %3999 = vrot.lane.b32.xlu0 %v3993, 64
    %v4000 = vpop.permute.xlu0 %3999
    %v4002 = vmul.f32 %v3992, %v4000
    %4004 = vrot.lane.b32.xlu0 %v4002, 32
    %v4005 = vpop.permute.xlu0 %4004
    %v4007 = vadd.f32 %v3997, %v4005
    %v4008 = vtanh.pop %v4007
    %4010 = vrot.lane.b32.xlu0 %v4008, 64
    %v4011 = vpop.permute.xlu0 %4010
    %v4013 = vmul.f32 %v3992, %v4011
    %4015 = vrot.lane.b32.xlu0 %v4013, 32
    %v4016 = vpop.permute.xlu0 %4015
    %4018 = vst.msk [vmem:[#allocation3] sm:$0xc] %vm687, %v4016
    %v4019 = vrot.slane %v3902, 4
    %4020 = vrot.lane.b32.xlu0 %v4019, 32
    %v4021 = vpop.permute.xlu0 %4020
    %v4022 = vsel %vm359, %v4021, 0
    %4024 = vmatprep.subr.mxu0 0.0
    %4025 = vmatpush1.msra.mxu0 %v2468
    %4026 = vmatprep.subr.mxu0 0.0
    %4027 = vmatpush1.msra.mxu0 %v2469
    %4028 = vmatprep.subr.mxu0 0.0
    %4029 = vmatpush1.msra.mxu0 %v2470
    %4030 = vmatprep.subr.mxu0 0.0
    %4031 = vmatpush1.msra.mxu0 %v2471
    %4032 = vmatprep.subr.mxu0 0.0
    %4033 = vmatpush1.msra.mxu0 0.0
    %4034 = vmatprep.subr.mxu0 0.0
    %4035 = vmatpush1.msra.mxu0 0.0
    %4036 = vmatprep.subr.mxu0 0.0
    %4037 = vmatpush1.msra.mxu0 0.0
    %4038 = vmatprep.subr.mxu0 0.0
    %4039 = vmatpush1.msra.mxu0 0.0
    %4040 = vmatprep.subr.mxu0 0.0
    %4041 = vmatpush1.msra.mxu0 0.0
    %4042 = vmatprep.subr.mxu0 0.0
    %4043 = vmatpush1.msra.mxu0 0.0
    %4044 = vmatprep.subr.mxu0 0.0
    %4045 = vmatpush1.msra.mxu0 0.0
    %4046 = vmatprep.subr.mxu0 0.0
    %4047 = vmatpush1.msra.mxu0 0.0
    %4048 = vmatprep.subr.mxu0 0.0
    %4049 = vmatpush1.msra.mxu0 0.0
    %4050 = vmatprep.subr.mxu0 0.0
    %4051 = vmatpush1.msra.mxu0 0.0
    %4052 = vmatprep.subr.mxu0 0.0
    %4053 = vmatpush1.msra.mxu0 0.0
    %4054 = vmatprep.subr.mxu0 0.0
    %4055 = vmatpush1.msra.mxu0 0.0
    %4056 = vmatprep.subr.mxu0 0.0
    %4057 = vmatpush1.msra.mxu0 0.0
    %4058 = vmatprep.subr.mxu0 0.0
    %4059 = vmatpush1.msra.mxu0 0.0
    %4060 = vmatprep.subr.mxu0 0.0
    %4061 = vmatpush1.msra.mxu0 0.0
    %4062 = vmatprep.subr.mxu0 0.0
    %4063 = vmatpush1.msra.mxu0 0.0
    %4064 = vmatprep.subr.mxu0 0.0
    %4065 = vmatpush1.msra.mxu0 0.0
    %4066 = vmatprep.subr.mxu0 0.0
    %4067 = vmatpush1.msra.mxu0 0.0
    %4068 = vmatprep.subr.mxu0 0.0
    %4069 = vmatpush1.msra.mxu0 0.0
    %4070 = vmatprep.subr.mxu0 0.0
    %4071 = vmatpush1.msra.mxu0 0.0
    %4072 = vmatprep.subr.mxu0 0.0
    %4073 = vmatpush1.msra.mxu0 0.0
    %4074 = vmatprep.subr.mxu0 0.0
    %4075 = vmatpush1.msra.mxu0 0.0
    %4076 = vmatprep.subr.mxu0 0.0
    %4077 = vmatpush1.msra.mxu0 0.0
    %4078 = vmatprep.subr.mxu0 0.0
    %4079 = vmatpush1.msra.mxu0 0.0
    %4080 = vmatprep.subr.mxu0 0.0
    %4081 = vmatpush1.msra.mxu0 0.0
    %4082 = vmatprep.subr.mxu0 0.0
    %4083 = vmatpush1.msra.mxu0 0.0
    %4084 = vmatprep.subr.mxu0 0.0
    %4085 = vmatpush1.msra.mxu0 0.0
    %4086 = vmatprep.subr.mxu0 0.0
    %4087 = vmatpush1.msra.mxu0 0.0
    %4088 = vmatprep.mubr.f32.mxu0 0.0
    %4089 = vmatmul.mubr.f32.gmra.mrb[0].mxu0 %v4022
    %v4090 = vpop.f32.mrb[0].mxu0
    %v4091 = vadd.f32 0.0, %v4090
    %v4092 = vpop.f32.mrb[0].mxu0
    %4093 = vdwg.mxu0
    %v4095 = vrot.slane %v4091, 2
    %v4097 = vadd.f32 %v2300, %v4095
    %v4098 = vxor.u32 %v4097, 2147483648
    %v4099 = vmul.f32 %v4098, 1.442695
    %v4100 = vpow.pop %v4099
    %v4101 = vadd.f32 %v4100, 1.0
    %v4102 = vrcp.pop %v4101
    %v4103 = vmul.f32 1.0, %v4102
    %v4104 = vtanh.pop %v4097
    %v4106 = vrot.slane %v3896, 6
    %v4108 = vmul.f32 %v4103, %v4106
    %4110 = vrot.lane.b32.xlu0 %v4104, 64
    %v4111 = vpop.permute.xlu0 %4110
    %v4113 = vmul.f32 %v4103, %v4111
    %4115 = vrot.lane.b32.xlu0 %v4113, 32
    %v4116 = vpop.permute.xlu0 %4115
    %v4118 = vadd.f32 %v4108, %v4116
    %v4119 = vtanh.pop %v4118
    %4121 = vrot.lane.b32.xlu0 %v4119, 64
    %v4122 = vpop.permute.xlu0 %4121
    %v4124 = vmul.f32 %v4103, %v4122
    %4126 = vrot.lane.b32.xlu0 %v4124, 32
    %v4127 = vpop.permute.xlu0 %4126
    %4129 = vst.msk [vmem:[#allocation2 + $0x8] sm:$0xc0] %vm578, %v4127
    %v4130 = vrot.slane %v4013, 2
    %4131 = vrot.lane.b32.xlu0 %v4130, 32
    %v4132 = vpop.permute.xlu0 %4131
    %v4133 = vsel %vm359, %v4132, 0
    %4135 = vmatprep.subr.mxu0 0.0
    %4136 = vmatpush1.msra.mxu0 %v2472
    %4137 = vmatprep.subr.mxu0 0.0
    %4138 = vmatpush1.msra.mxu0 %v2473
    %4139 = vmatprep.subr.mxu0 0.0
    %4140 = vmatpush1.msra.mxu0 %v2474
    %4141 = vmatprep.subr.mxu0 0.0
    %4142 = vmatpush1.msra.mxu0 %v2475
    %4143 = vmatprep.subr.mxu0 0.0
    %4144 = vmatpush1.msra.mxu0 0.0
    %4145 = vmatprep.subr.mxu0 0.0
    %4146 = vmatpush1.msra.mxu0 0.0
    %4147 = vmatprep.subr.mxu0 0.0
    %4148 = vmatpush1.msra.mxu0 0.0
    %4149 = vmatprep.subr.mxu0 0.0
    %4150 = vmatpush1.msra.mxu0 0.0
    %4151 = vmatprep.subr.mxu0 0.0
    %4152 = vmatpush1.msra.mxu0 0.0
    %4153 = vmatprep.subr.mxu0 0.0
    %4154 = vmatpush1.msra.mxu0 0.0
    %4155 = vmatprep.subr.mxu0 0.0
    %4156 = vmatpush1.msra.mxu0 0.0
    %4157 = vmatprep.subr.mxu0 0.0
    %4158 = vmatpush1.msra.mxu0 0.0
    %4159 = vmatprep.subr.mxu0 0.0
    %4160 = vmatpush1.msra.mxu0 0.0
    %4161 = vmatprep.subr.mxu0 0.0
    %4162 = vmatpush1.msra.mxu0 0.0
    %4163 = vmatprep.subr.mxu0 0.0
    %4164 = vmatpush1.msra.mxu0 0.0
    %4165 = vmatprep.subr.mxu0 0.0
    %4166 = vmatpush1.msra.mxu0 0.0
    %4167 = vmatprep.subr.mxu0 0.0
    %4168 = vmatpush1.msra.mxu0 0.0
    %4169 = vmatprep.subr.mxu0 0.0
    %4170 = vmatpush1.msra.mxu0 0.0
    %4171 = vmatprep.subr.mxu0 0.0
    %4172 = vmatpush1.msra.mxu0 0.0
    %4173 = vmatprep.subr.mxu0 0.0
    %4174 = vmatpush1.msra.mxu0 0.0
    %4175 = vmatprep.subr.mxu0 0.0
    %4176 = vmatpush1.msra.mxu0 0.0
    %4177 = vmatprep.subr.mxu0 0.0
    %4178 = vmatpush1.msra.mxu0 0.0
    %4179 = vmatprep.subr.mxu0 0.0
    %4180 = vmatpush1.msra.mxu0 0.0
    %4181 = vmatprep.subr.mxu0 0.0
    %4182 = vmatpush1.msra.mxu0 0.0
    %4183 = vmatprep.subr.mxu0 0.0
    %4184 = vmatpush1.msra.mxu0 0.0
    %4185 = vmatprep.subr.mxu0 0.0
    %4186 = vmatpush1.msra.mxu0 0.0
    %4187 = vmatprep.subr.mxu0 0.0
    %4188 = vmatpush1.msra.mxu0 0.0
    %4189 = vmatprep.subr.mxu0 0.0
    %4190 = vmatpush1.msra.mxu0 0.0
    %4191 = vmatprep.subr.mxu0 0.0
    %4192 = vmatpush1.msra.mxu0 0.0
    %4193 = vmatprep.subr.mxu0 0.0
    %4194 = vmatpush1.msra.mxu0 0.0
    %4195 = vmatprep.subr.mxu0 0.0
    %4196 = vmatpush1.msra.mxu0 0.0
    %4197 = vmatprep.subr.mxu0 0.0
    %4198 = vmatpush1.msra.mxu0 0.0
    %4199 = vmatprep.mubr.f32.mxu0 0.0
    %4200 = vmatmul.mubr.f32.gmra.mrb[0].mxu0 %v4133
    %v4201 = vpop.f32.mrb[0].mxu0
    %v4202 = vadd.f32 0.0, %v4201
    %v4203 = vpop.f32.mrb[0].mxu0
    %4204 = vdwg.mxu0
    %v4205 = vadd.f32 %v2466, %v4202
    %v4206 = vxor.u32 %v4205, 2147483648
    %v4207 = vmul.f32 %v4206, 1.442695
    %v4208 = vpow.pop %v4207
    %v4209 = vadd.f32 %v4208, 1.0
    %v4210 = vrcp.pop %v4209
    %v4211 = vmul.f32 1.0, %v4210
    %v4212 = vtanh.pop %v4205
    %v4214 = vrot.slane %v4007, 2
    %v4216 = vmul.f32 %v4211, %v4214
    %4218 = vrot.lane.b32.xlu0 %v4212, 64
    %v4219 = vpop.permute.xlu0 %4218
    %v4221 = vmul.f32 %v4211, %v4219
    %4223 = vrot.lane.b32.xlu0 %v4221, 32
    %v4224 = vpop.permute.xlu0 %4223
    %v4226 = vadd.f32 %v4216, %v4224
    %v4227 = vtanh.pop %v4226
    %4229 = vrot.lane.b32.xlu0 %v4227, 64
    %v4230 = vpop.permute.xlu0 %4229
    %v4232 = vmul.f32 %v4211, %v4230
    %4234 = vrot.lane.b32.xlu0 %v4232, 32
    %v4235 = vpop.permute.xlu0 %4234
    %4237 = vst.msk [vmem:[#allocation3] sm:$0x3] %vm466, %v4235
    %v4238 = vld [vmem:[#allocation2] sm:$0xff]
    %v4239 = vld [vmem:[#allocation2 + $0x8] sm:$0xff]
    %v4240 = vld [vmem:[#allocation3] sm:$0xff]
    %v4241 = vld [vmem:[#allocation3 + $0x8] sm:$0xff]
    %v4242 = vld [vmem:[%s15] sm:$0xff]
    %v4243 = vld [vmem:[%s15 + $0x8] sm:$0xff]
    %v4244 = vld [vmem:[%s15 + $0x10] sm:$0xff]
    %v4245 = vld [vmem:[%s15 + $0x18] sm:$0xff]
    %v4246 = vld [vmem:[%s15 + $0x20] sm:$0xff]
    %v4247 = vld [vmem:[%s15 + $0x28] sm:$0xff]
    %v4248 = vld [vmem:[%s15 + $0x30] sm:$0xff]
    %v4249 = vld [vmem:[%s15 + $0x38] sm:$0xff]
    %v4251 = vsel %vm359, %v4240, 0
    %v4254 = vsel %vm359, %v4241, 0
    %4256 = vmatprep.subr.mxu0 0.0
    %4257 = vmatpush1.msra.mxu0 %v4246
    %4258 = vmatprep.subr.mxu0 0.0
    %4259 = vmatpush1.msra.mxu0 %v4247
    %4260 = vmatprep.subr.mxu0 0.0
    %4261 = vmatpush1.msra.mxu0 %v4248
    %4262 = vmatprep.subr.mxu0 0.0
    %4263 = vmatpush1.msra.mxu0 %v4249
    %4264 = vmatprep.subr.mxu0 0.0
    %4265 = vmatpush1.msra.mxu0 0.0
    %4266 = vmatprep.subr.mxu0 0.0
    %4267 = vmatpush1.msra.mxu0 0.0
    %4268 = vmatprep.subr.mxu0 0.0
    %4269 = vmatpush1.msra.mxu0 0.0
    %4270 = vmatprep.subr.mxu0 0.0
    %4271 = vmatpush1.msra.mxu0 0.0
    %4272 = vmatprep.subr.mxu0 0.0
    %4273 = vmatpush1.msra.mxu0 0.0
    %4274 = vmatprep.subr.mxu0 0.0
    %4275 = vmatpush1.msra.mxu0 0.0
    %4276 = vmatprep.subr.mxu0 0.0
    %4277 = vmatpush1.msra.mxu0 0.0
    %4278 = vmatprep.subr.mxu0 0.0
    %4279 = vmatpush1.msra.mxu0 0.0
    %4280 = vmatprep.subr.mxu0 0.0
    %4281 = vmatpush1.msra.mxu0 0.0
    %4282 = vmatprep.subr.mxu0 0.0
    %4283 = vmatpush1.msra.mxu0 0.0
    %4284 = vmatprep.subr.mxu0 0.0
    %4285 = vmatpush1.msra.mxu0 0.0
    %4286 = vmatprep.subr.mxu0 0.0
    %4287 = vmatpush1.msra.mxu0 0.0
    %4288 = vmatprep.subr.mxu0 0.0
    %4289 = vmatpush1.msra.mxu0 0.0
    %4290 = vmatprep.subr.mxu0 0.0
    %4291 = vmatpush1.msra.mxu0 0.0
    %4292 = vmatprep.subr.mxu0 0.0
    %4293 = vmatpush1.msra.mxu0 0.0
    %4294 = vmatprep.subr.mxu0 0.0
    %4295 = vmatpush1.msra.mxu0 0.0
    %4296 = vmatprep.subr.mxu0 0.0
    %4297 = vmatpush1.msra.mxu0 0.0
    %4298 = vmatprep.subr.mxu0 0.0
    %4299 = vmatpush1.msra.mxu0 0.0
    %4300 = vmatprep.subr.mxu0 0.0
    %4301 = vmatpush1.msra.mxu0 0.0
    %4302 = vmatprep.subr.mxu0 0.0
    %4303 = vmatpush1.msra.mxu0 0.0
    %4304 = vmatprep.subr.mxu0 0.0
    %4305 = vmatpush1.msra.mxu0 0.0
    %4306 = vmatprep.subr.mxu0 0.0
    %4307 = vmatpush1.msra.mxu0 0.0
    %4308 = vmatprep.subr.mxu0 0.0
    %4309 = vmatpush1.msra.mxu0 0.0
    %4310 = vmatprep.subr.mxu0 0.0
    %4311 = vmatpush1.msra.mxu0 0.0
    %4312 = vmatprep.subr.mxu0 0.0
    %4313 = vmatpush1.msra.mxu0 0.0
    %4314 = vmatprep.subr.mxu0 0.0
    %4315 = vmatpush1.msra.mxu0 0.0
    %4316 = vmatprep.subr.mxu0 0.0
    %4317 = vmatpush1.msra.mxu0 0.0
    %4318 = vmatprep.subr.mxu0 0.0
    %4319 = vmatpush1.msra.mxu0 0.0
    %4320 = vmatprep.mubr.f32.mxu0 0.0
    %4321 = vmatmul.mubr.f32.gmra.mrb[0].mxu0 %v4251
    %v4322 = vpop.f32.mrb[0].mxu0
    %v4323 = vadd.f32 0.0, %v4322
    %v4324 = vpop.f32.mrb[0].mxu0
    %4325 = vmatprep.mubr.f32.mxu0 0.0
    %4326 = vmatmul.mubr.f32.gmra.mrb[0].mxu0 %v4254
    %v4327 = vpop.f32.mrb[0].mxu0
    %v4328 = vadd.f32 0.0, %v4327
    %v4329 = vpop.f32.mrb[0].mxu0
    %4330 = vdwg.mxu0
    %v4332 = vsel %vm359, %v4238, 0
    %v4335 = vsel %vm359, %v4239, 0
    %4337 = vmatprep.subr.mxu0 0.0
    %4338 = vmatpush1.msra.mxu0 %v4242
    %4339 = vmatprep.subr.mxu0 0.0
    %4340 = vmatpush1.msra.mxu0 %v4243
    %4341 = vmatprep.subr.mxu0 0.0
    %4342 = vmatpush1.msra.mxu0 %v4244
    %4343 = vmatprep.subr.mxu0 0.0
    %4344 = vmatpush1.msra.mxu0 %v4245
    %4345 = vmatprep.subr.mxu0 0.0
    %4346 = vmatpush1.msra.mxu0 0.0
    %4347 = vmatprep.subr.mxu0 0.0
    %4348 = vmatpush1.msra.mxu0 0.0
    %4349 = vmatprep.subr.mxu0 0.0
    %4350 = vmatpush1.msra.mxu0 0.0
    %4351 = vmatprep.subr.mxu0 0.0
    %4352 = vmatpush1.msra.mxu0 0.0
    %4353 = vmatprep.subr.mxu0 0.0
    %4354 = vmatpush1.msra.mxu0 0.0
    %4355 = vmatprep.subr.mxu0 0.0
    %4356 = vmatpush1.msra.mxu0 0.0
    %4357 = vmatprep.subr.mxu0 0.0
    %4358 = vmatpush1.msra.mxu0 0.0
    %4359 = vmatprep.subr.mxu0 0.0
    %4360 = vmatpush1.msra.mxu0 0.0
    %4361 = vmatprep.subr.mxu0 0.0
    %4362 = vmatpush1.msra.mxu0 0.0
    %4363 = vmatprep.subr.mxu0 0.0
    %4364 = vmatpush1.msra.mxu0 0.0
    %4365 = vmatprep.subr.mxu0 0.0
    %4366 = vmatpush1.msra.mxu0 0.0
    %4367 = vmatprep.subr.mxu0 0.0
    %4368 = vmatpush1.msra.mxu0 0.0
    %4369 = vmatprep.subr.mxu0 0.0
    %4370 = vmatpush1.msra.mxu0 0.0
    %4371 = vmatprep.subr.mxu0 0.0
    %4372 = vmatpush1.msra.mxu0 0.0
    %4373 = vmatprep.subr.mxu0 0.0
    %4374 = vmatpush1.msra.mxu0 0.0
    %4375 = vmatprep.subr.mxu0 0.0
    %4376 = vmatpush1.msra.mxu0 0.0
    %4377 = vmatprep.subr.mxu0 0.0
    %4378 = vmatpush1.msra.mxu0 0.0
    %4379 = vmatprep.subr.mxu0 0.0
    %4380 = vmatpush1.msra.mxu0 0.0
    %4381 = vmatprep.subr.mxu0 0.0
    %4382 = vmatpush1.msra.mxu0 0.0
    %4383 = vmatprep.subr.mxu0 0.0
    %4384 = vmatpush1.msra.mxu0 0.0
    %4385 = vmatprep.subr.mxu0 0.0
    %4386 = vmatpush1.msra.mxu0 0.0
    %4387 = vmatprep.subr.mxu0 0.0
    %4388 = vmatpush1.msra.mxu0 0.0
    %4389 = vmatprep.subr.mxu0 0.0
    %4390 = vmatpush1.msra.mxu0 0.0
    %4391 = vmatprep.subr.mxu0 0.0
    %4392 = vmatpush1.msra.mxu0 0.0
    %4393 = vmatprep.subr.mxu0 0.0
    %4394 = vmatpush1.msra.mxu0 0.0
    %4395 = vmatprep.subr.mxu0 0.0
    %4396 = vmatpush1.msra.mxu0 0.0
    %4397 = vmatprep.subr.mxu0 0.0
    %4398 = vmatpush1.msra.mxu0 0.0
    %4399 = vmatprep.subr.mxu0 0.0
    %4400 = vmatpush1.msra.mxu0 0.0
    %4401 = vmatprep.mubr.f32.mxu0 0.0
    %4402 = vmatmul.mubr.f32.gmra.mrb[0].mxu0 %v4332
    %v4403 = vpop.f32.mrb[0].mxu0
    %v4404 = vadd.f32 %v4323, %v4403
    %v4405 = vpop.f32.mrb[0].mxu0
    %4406 = vmatprep.mubr.f32.mxu0 0.0
    %4407 = vmatmul.mubr.f32.gmra.mrb[0].mxu0 %v4335
    %v4408 = vpop.f32.mrb[0].mxu0
    %v4409 = vadd.f32 %v4328, %v4408
    %v4410 = vpop.f32.mrb[0].mxu0
    %4411 = vdwg.mxu0
    %v4412 = vld [vmem:[#allocation4] sm:$0x1]
    %v4414 = vlaneseq
    %v4415 = vshrl.u32 %v4414, 7
    %v4416 = vsub.s32 0, %v4415
    %v4417 = vrot.slane %v4412, %v4416
    %v4419 = vadd.f32 %v4404, %v4417
    %v4420 = vadd.f32 %v4409, %v4417
    %vm4421 = vcmask 7168
    %4422 = vst.msk [vmem:[%s17] sm:$0xff] %vm4421, %v4419
    %4423 = vst.msk [vmem:[%s17 + $0x8] sm:$0xff] %vm4421, %v4420
    // Predicated region
    $region102: #{seq2seq_lstm_forward.1} parent=1 // pred_check
      _
    $region103: #{seq2seq_lstm_forward.1} parent=1 // pred_check_branch
      %4425 = sbr.rel (0) target = $region105
    $region104: #{seq2seq_lstm_forward.1} parent=1 // pred_region
      _
    $region105: #{seq2seq_lstm_forward.1} parent=1 // pred_fallthru
      _
    // Predicated region
    $region106: #{seq2seq_lstm_forward.1} parent=1 // pred_check
      _
    $region107: #{seq2seq_lstm_forward.1} parent=1 // pred_check_branch
      %4427 = sbr.rel (0) target = $region109
    $region108: #{seq2seq_lstm_forward.1} parent=1 // pred_region
      _
    $region109: #{seq2seq_lstm_forward.1} parent=1 // pred_fallthru
      _
    %4428 = vsyncpa [#allocation6], 1
    %4429 = vsyncpa [#allocation8], 1
    %4430 = vsyncpa [#allocation11], 1
    %4431 = vsyncpa [#allocation14], 1
    %4432 = vsyncpa [#allocation17], 1

</llo_original>
